<compile_context>
chip_gen: v7x
topology: tpu7x:2x2x1
jax: 0.10.0
libtpu: 0.0.40
codegen_flags: <defaults>
</compile_context>

<pallas_src>
import functools
import math

import jax
import jax.numpy as jnp
from jax import lax
from jax.experimental import pallas as pl
from jax.experimental.pallas import tpu as pltpu


EPS = 1e-5


def _rms_norm(x, w, eps):
    # variance = mean(x^2, -1, keepdim); x * rsqrt(var + eps); weight * (...)
    var = jnp.mean(x * x, axis=-1, keepdims=True)
    return w * (x * lax.rsqrt(var + eps))


def _rotate_half(x):
    half = x.shape[-1] // 2
    x1 = x[..., :half]
    x2 = x[..., half:]
    return jnp.concatenate([-x2, x1], axis=-1)


def llama_decoder_kernel(
    x_ref, cos_q_ref, sin_q_ref, cos_k_ref, sin_k_ref,
    rms1_w_ref, rms2_w_ref,
    wq_ref, bq_ref, wk_ref, bk_ref, wv_ref, bv_ref, wo_ref, bo_ref,
    w1_ref, b1_ref, w3_ref, b3_ref, w2_ref, b2_ref,
    out_ref,
    hn_ref,                      # VMEM scratch: rms2-normalized residual, bf16 (T, D)
    *, n_heads, eps,
):
    hi = pl.program_id(1)        # FFN hidden-dim tile index (reduction axis)

    # ---------------- tile 0: RMSNorm1 + attention + residual (runs once per row) ----
    @pl.when(hi == 0)
    def _attention():
        x = x_ref[0]                                   # (T, D) f32
        T, D = x.shape
        hd = D // n_heads

        xn = _rms_norm(x, rms1_w_ref[0], eps)
        xnb = xn.astype(jnp.bfloat16)

        # fused (T,D)x(D,D) projections: bf16 operands, f32 accumulate on the MXU
        q = jnp.dot(xnb, wq_ref[...], preferred_element_type=jnp.float32) + bq_ref[0]
        k = jnp.dot(xnb, wk_ref[...], preferred_element_type=jnp.float32) + bk_ref[0]
        v = jnp.dot(xnb, wv_ref[...], preferred_element_type=jnp.float32) + bv_ref[0]

        # q tables carry the folded 1/sqrt(hd) score scale
        cq = cos_q_ref[...]; sq = sin_q_ref[...]       # (T, hd)
        ck = cos_k_ref[...]; sk = sin_k_ref[...]

        # split heads (lane slice + stack to a leading batch dim) with RoPE applied
        q_hs, k_hs, v_hs = [], [], []
        for h in range(n_heads):
            sl = slice(h * hd, (h + 1) * hd)
            qh = q[:, sl]
            kh = k[:, sl]
            q_hs.append(qh * cq + _rotate_half(qh) * sq)
            k_hs.append(kh * ck + _rotate_half(kh) * sk)
            v_hs.append(v[:, sl])
        q3 = jnp.stack(q_hs, axis=0).astype(jnp.bfloat16)   # (NH, T, hd)
        k3 = jnp.stack(k_hs, axis=0).astype(jnp.bfloat16)
        v3 = jnp.stack(v_hs, axis=0).astype(jnp.bfloat16)

        # batched scores: contraction over the head dim of both operands (no k.T copy)
        s = jnp.einsum("hqd,hkd->hqk", q3, k3,
                       preferred_element_type=jnp.float32)  # (NH, T, T) f32

        # causal mask built in-kernel (no (T,T) HBM traffic)
        row = lax.broadcasted_iota(jnp.int32, (T, T), 0)
        col = lax.broadcasted_iota(jnp.int32, (T, T), 1)
        s = jnp.where((row >= col)[None, :, :], s, -1e30)

        # softmax in f32; divide goes through the EUP reciprocal
        s = s - jnp.max(s, axis=-1, keepdims=True)
        p = jnp.exp(s)
        p = p * pl.reciprocal(jnp.sum(p, axis=-1, keepdims=True), approx=True)

        ctx = jnp.einsum("hqk,hkd->hqd", p.astype(jnp.bfloat16), v3,
                         preferred_element_type=jnp.float32)  # (NH, T, hd)
        attn = jnp.concatenate([ctx[h] for h in range(n_heads)], axis=-1)  # (T, D)
        attn_out = (jnp.dot(attn.astype(jnp.bfloat16), wo_ref[...],
                            preferred_element_type=jnp.float32) + bo_ref[0])

        h_res = x + attn_out                                 # residual 1 (f32)
        hn_ref[...] = _rms_norm(h_res, rms2_w_ref[0], eps).astype(jnp.bfloat16)
        # output block is resident across the FFN-tile axis: init accumulator with
        # the residual plus the w2 bias (added exactly once).
        out_ref[0] = h_res + b2_ref[0]

    # ---------------- every tile: one hidden-dim slab of the SwiGLU FFN --------------
    hn = hn_ref[...]                                          # (T, D) bf16
    g1 = jnp.dot(hn, w1_ref[...], preferred_element_type=jnp.float32) + b1_ref[0]
    g3 = jnp.dot(hn, w3_ref[...], preferred_element_type=jnp.float32) + b3_ref[0]
    gated = (g1 * jax.nn.sigmoid(g1)) * g3                    # silu(w1 x) * (w3 x), f32
    out_ref[0] += jnp.dot(gated.astype(jnp.bfloat16), w2_ref[...],
                          preferred_element_type=jnp.float32)


def llama_decoder(x, params, cos, sin, *, n_heads, ffn_tile=None):
    B, T, D = x.shape
    H = params["w1"].shape[1]
    hd = D // n_heads

    if ffn_tile is None:
        ffn_tile = min(H, 256)
    assert H % ffn_tile == 0 and ffn_tile % 128 == 0
    n_ffn = H // ffn_tile

    # fold the 1/sqrt(hd) attention scale into the q RoPE tables
    scale = 1.0 / math.sqrt(hd)
    cos_q = cos * scale
    sin_q = sin * scale

    const2d = lambda arr: pl.BlockSpec(arr.shape, lambda b, h: (0, 0))

    in_specs = [
        pl.BlockSpec((1, T, D), lambda b, h: (b, 0, 0)),      # x
        const2d(cos_q), const2d(sin_q), const2d(cos), const2d(sin),
        const2d(params["rms1_w"]), const2d(params["rms2_w"]),
        const2d(params["wq"]), const2d(params["bq"]),
        const2d(params["wk"]), const2d(params["bk"]),
        const2d(params["wv"]), const2d(params["bv"]),
        const2d(params["wo"]), const2d(params["bo"]),
        pl.BlockSpec((D, ffn_tile), lambda b, h: (0, h)),     # w1 (N-tiled)
        pl.BlockSpec((1, ffn_tile), lambda b, h: (0, h)),     # b1
        pl.BlockSpec((D, ffn_tile), lambda b, h: (0, h)),     # w3 (N-tiled)
        pl.BlockSpec((1, ffn_tile), lambda b, h: (0, h)),     # b3
        pl.BlockSpec((ffn_tile, D), lambda b, h: (h, 0)),     # w2 (K-tiled, accumulated)
        const2d(params["b2"]),                                # b2 (added once)
    ]

    kernel = functools.partial(llama_decoder_kernel, n_heads=n_heads, eps=EPS)

    args = (x, cos_q, sin_q, cos, sin,
            params["rms1_w"], params["rms2_w"],
            params["wq"], params["bq"], params["wk"], params["bk"],
            params["wv"], params["bv"], params["wo"], params["bo"],
            params["w1"], params["b1"], params["w3"], params["b3"],
            params["w2"], params["b2"])

    flops = 2 * B * T * D * (4 * D + 3 * H) + 4 * B * n_heads * T * T * hd
    transcendentals = B * (n_heads * T * T + T * H)
    bytes_accessed = sum(int(a.size) * a.dtype.itemsize for a in args) + B * T * D * 4

    return pl.pallas_call(
        kernel,
        out_shape=jax.ShapeDtypeStruct((B, T, D), jnp.float32),
        grid_spec=pltpu.PrefetchScalarGridSpec(
            num_scalar_prefetch=0,
            grid=(B, n_ffn),
            in_specs=in_specs,
            out_specs=pl.BlockSpec((1, T, D), lambda b, h: (b, 0, 0)),
            scratch_shapes=[pltpu.VMEM((T, D), jnp.bfloat16)],
        ),
        compiler_params=pltpu.CompilerParams(
            dimension_semantics=("parallel", "arbitrary"),
            # explicit budget: safe on v5e/v6e (128 MiB) and v7x (64 MiB physical)
            vmem_limit_bytes=32 * 1024 * 1024,
        ),
        cost_estimate=pl.CostEstimate(
            flops=int(flops),
            transcendentals=int(transcendentals),
            bytes_accessed=int(bytes_accessed),
        ),
    )(*args)


# ---------------- parameter / table setup (plain JAX glue) ----------------

def init_params(key, D, multiple_of, ffn_dim_multiplier):
    H = int(ffn_dim_multiplier * 8 * D // 3)
    H = multiple_of * ((H + multiple_of - 1) // multiple_of)
    ks = jax.random.split(key, 14)

    def lin_w(k, din, dout):
        # matmul weights stored bf16 (MXU operands); values rounded once at init
        return (jax.random.normal(k, (din, dout), jnp.float32) * 0.02).astype(jnp.bfloat16)

    def lin_b(k, dout):
        return jax.random.normal(k, (1, dout), jnp.float32) * 0.02

    params = {
        "rms1_w": jnp.ones((1, D), jnp.float32),
        "rms2_w": jnp.ones((1, D), jnp.float32),
        "wq": lin_w(ks[0], D, D), "bq": lin_b(ks[1], D),
        "wk": lin_w(ks[2], D, D), "bk": lin_b(ks[3], D),
        "wv": lin_w(ks[4], D, D), "bv": lin_b(ks[5], D),
        "wo": lin_w(ks[6], D, D), "bo": lin_b(ks[7], D),
        "w1": lin_w(ks[8], D, H), "b1": lin_b(ks[9], H),
        "w3": lin_w(ks[10], D, H), "b3": lin_b(ks[11], H),
        "w2": lin_w(ks[12], H, D), "b2": lin_b(ks[13], D),
    }
    return params, H


def rope_tables(T, hd, theta=10000.0):
    inv_freq = 1.0 / (theta ** (jnp.arange(0, hd, 2, dtype=jnp.float32) / hd))
    freqs = jnp.outer(jnp.arange(T, dtype=jnp.float32), inv_freq)   # (T, hd/2)
    emb = jnp.concatenate([freqs, freqs], axis=-1)                  # (T, hd)
    return jnp.cos(emb), jnp.sin(emb)


# ---------------- pure-JAX f32 reference for verification ----------------

def reference(x, params, cos, sin, n_heads):
    B, T, D = x.shape
    hd = D // n_heads
    scale = 1.0 / math.sqrt(hd)
    f32 = lambda a: a.astype(jnp.float32)

    def rms(v, w):
        var = jnp.mean(v * v, axis=-1, keepdims=True)
        return w[0] * (v * lax.rsqrt(var + EPS))

    # causal mask exactly as in the PyTorch forward: 1 - triu(ones, diagonal=1)
    mask = 1 - jnp.triu(jnp.ones((T, T), jnp.int32), k=1)

    xn = rms(x, params["rms1_w"])
    q = xn @ f32(params["wq"]) + params["bq"][0]
    k = xn @ f32(params["wk"]) + params["bk"][0]
    v = xn @ f32(params["wv"]) + params["bv"][0]
    q = q.reshape(B, T, n_heads, hd)
    k = k.reshape(B, T, n_heads, hd)
    v = v.reshape(B, T, n_heads, hd)
    c = cos[None, :, None, :]
    s = sin[None, :, None, :]
    q = q * c + _rotate_half(q) * s
    k = k * c + _rotate_half(k) * s
    scores = jnp.einsum("bqhd,bkhd->bhqk", q, k) * scale
    scores = jnp.where(mask[None, None] > 0, scores, -1e30)
    p = jax.nn.softmax(scores, axis=-1)
    attn = jnp.einsum("bhqk,bkhd->bqhd", p, v).reshape(B, T, D)
    attn_out = attn @ f32(params["wo"]) + params["bo"][0]
    h = x + attn_out
    hn = rms(h, params["rms2_w"])
    g1 = hn @ f32(params["w1"]) + params["b1"][0]
    g3 = hn @ f32(params["w3"]) + params["b3"][0]
    ffn = (jax.nn.silu(g1) * g3) @ f32(params["w2"]) + params["b2"][0]
    return h + ffn


if __name__ == "__main__":
    B, T, D = 2, 8, 128
    N_HEADS = 4
    MULTIPLE_OF = 128          # small "multiple_of" for a small synthetic model
    FFN_MULT = 1.3
    HD = D // N_HEADS

    key = jax.random.PRNGKey(0)
    kx, kp = jax.random.split(key)
    x = jax.random.normal(kx, (B, T, D), jnp.float32)
    params, H = init_params(kp, D, MULTIPLE_OF, FFN_MULT)
    cos, sin = rope_tables(T, HD)

    out = llama_decoder(x, params, cos, sin, n_heads=N_HEADS)
    out = jax.block_until_ready(out)

    ref = reference(x, params, cos, sin, N_HEADS)
    assert out.shape == (B, T, D)
    err = float(jnp.max(jnp.abs(out - ref)))
    # bf16 matmul operands + approx reciprocal vs f32 reference -> loosened tolerance
    assert jnp.allclose(out, ref, atol=2e-2, rtol=2e-2), f"mismatch vs reference (max abs err {err})"

    print("KERNEL_OK")
</pallas_src>

<mosaic_0001>
module attributes {stable_mosaic.version = 11 : i64} {
  func.func @llama_decoder_kernel(%arg0: i32, %arg1: i32, %arg2: memref<1x8x128xf32, #tpu.memory_space<vmem>>, %arg3: memref<8x32xf32, #tpu.memory_space<vmem>>, %arg4: memref<8x32xf32, #tpu.memory_space<vmem>>, %arg5: memref<8x32xf32, #tpu.memory_space<vmem>>, %arg6: memref<8x32xf32, #tpu.memory_space<vmem>>, %arg7: memref<1x128xf32, #tpu.memory_space<vmem>>, %arg8: memref<1x128xf32, #tpu.memory_space<vmem>>, %arg9: memref<128x128xbf16, #tpu.memory_space<vmem>>, %arg10: memref<1x128xf32, #tpu.memory_space<vmem>>, %arg11: memref<128x128xbf16, #tpu.memory_space<vmem>>, %arg12: memref<1x128xf32, #tpu.memory_space<vmem>>, %arg13: memref<128x128xbf16, #tpu.memory_space<vmem>>, %arg14: memref<1x128xf32, #tpu.memory_space<vmem>>, %arg15: memref<128x128xbf16, #tpu.memory_space<vmem>>, %arg16: memref<1x128xf32, #tpu.memory_space<vmem>>, %arg17: memref<128x256xbf16, #tpu.memory_space<vmem>>, %arg18: memref<1x256xf32, #tpu.memory_space<vmem>>, %arg19: memref<128x256xbf16, #tpu.memory_space<vmem>>, %arg20: memref<1x256xf32, #tpu.memory_space<vmem>>, %arg21: memref<256x128xbf16, #tpu.memory_space<vmem>>, %arg22: memref<1x128xf32, #tpu.memory_space<vmem>>, %arg23: memref<1x8x128xf32, #tpu.memory_space<vmem>>, %arg24: memref<8x128xbf16, #tpu.memory_space<vmem>>) attributes {dimension_semantics = [#tpu.dimension_semantics<parallel>, #tpu.dimension_semantics<arbitrary>], iteration_bounds = array<i64: 2, 2>, scalar_prefetch = 0 : i64, scratch_operands = 1 : i64, tpu.core_type = #tpu.core_type<tc>, window_params = [{transform_indices = @transform_0, window_bounds = array<i64: 1, 8, 128>}, {pipeline_mode = #tpu.pipeline_mode<synchronous>, transform_indices = @transform_1, window_bounds = array<i64: 8, 32>}, {pipeline_mode = #tpu.pipeline_mode<synchronous>, transform_indices = @transform_2, window_bounds = array<i64: 8, 32>}, {pipeline_mode = #tpu.pipeline_mode<synchronous>, transform_indices = @transform_3, window_bounds = array<i64: 8, 32>}, {pipeline_mode = #tpu.pipeline_mode<synchronous>, transform_indices = @transform_4, window_bounds = array<i64: 8, 32>}, {pipeline_mode = #tpu.pipeline_mode<synchronous>, transform_indices = @transform_5, window_bounds = array<i64: 1, 128>}, {pipeline_mode = #tpu.pipeline_mode<synchronous>, transform_indices = @transform_6, window_bounds = array<i64: 1, 128>}, {pipeline_mode = #tpu.pipeline_mode<synchronous>, transform_indices = @transform_7, window_bounds = array<i64: 128, 128>}, {pipeline_mode = #tpu.pipeline_mode<synchronous>, transform_indices = @transform_8, window_bounds = array<i64: 1, 128>}, {pipeline_mode = #tpu.pipeline_mode<synchronous>, transform_indices = @transform_9, window_bounds = array<i64: 128, 128>}, {pipeline_mode = #tpu.pipeline_mode<synchronous>, transform_indices = @transform_10, window_bounds = array<i64: 1, 128>}, {pipeline_mode = #tpu.pipeline_mode<synchronous>, transform_indices = @transform_11, window_bounds = array<i64: 128, 128>}, {pipeline_mode = #tpu.pipeline_mode<synchronous>, transform_indices = @transform_12, window_bounds = array<i64: 1, 128>}, {pipeline_mode = #tpu.pipeline_mode<synchronous>, transform_indices = @transform_13, window_bounds = array<i64: 128, 128>}, {pipeline_mode = #tpu.pipeline_mode<synchronous>, transform_indices = @transform_14, window_bounds = array<i64: 1, 128>}, {transform_indices = @transform_15, window_bounds = array<i64: 128, 256>}, {transform_indices = @transform_16, window_bounds = array<i64: 1, 256>}, {transform_indices = @transform_17, window_bounds = array<i64: 128, 256>}, {transform_indices = @transform_18, window_bounds = array<i64: 1, 256>}, {transform_indices = @transform_19, window_bounds = array<i64: 256, 128>}, {pipeline_mode = #tpu.pipeline_mode<synchronous>, transform_indices = @transform_20, window_bounds = array<i64: 1, 128>}, {transform_indices = @transform_21, window_bounds = array<i64: 1, 8, 128>}]} {
    %c0_i32 = arith.constant 0 : i32
    %0 = arith.cmpi eq, %arg1, %c0_i32 : i32
    %1 = arith.extui %0 : i1 to i32
    %c0_i32_0 = arith.constant 0 : i32
    %2 = arith.cmpi ne, %1, %c0_i32_0 : i32
    scf.if %2 {
      %c0_21 = arith.constant 0 : index
      %c0_22 = arith.constant 0 : index
      %c0_23 = arith.constant 0 : index
      %34 = vector.load %arg2[%c0_21, %c0_22, %c0_23] : memref<1x8x128xf32, #tpu.memory_space<vmem>>, vector<1x8x128xf32>
      %35 = vector.shape_cast %34 : vector<1x8x128xf32> to vector<8x128xf32>
      %c0_24 = arith.constant 0 : index
      %c0_25 = arith.constant 0 : index
      %36 = vector.load %arg7[%c0_24, %c0_25] : memref<1x128xf32, #tpu.memory_space<vmem>>, vector<1x128xf32>
      %37 = vector.shape_cast %36 : vector<1x128xf32> to vector<128xf32>
      %38 = arith.mulf %35, %35 : vector<8x128xf32>
      %cst_26 = arith.constant dense<0.000000e+00> : vector<8xf32>
      %39 = vector.multi_reduction <add>, %38, %cst_26 [1] : vector<8x128xf32> to vector<8xf32>
      %40 = vector.shape_cast %39 : vector<8xf32> to vector<8x1xf32>
      %cst_27 = arith.constant 1.280000e+02 : f32
      %41 = vector.broadcast %cst_27 : f32 to vector<8x1xf32>
      %42 = arith.divf %40, %41 : vector<8x1xf32>
      %cst_28 = arith.constant 9.99999974E-6 : f32
      %43 = vector.broadcast %cst_28 : f32 to vector<8x1xf32>
      %44 = arith.addf %42, %43 : vector<8x1xf32>
      %45 = math.rsqrt %44 : vector<8x1xf32>
      %46 = vector.broadcast %45 : vector<8x1xf32> to vector<8x128xf32>
      %47 = arith.mulf %35, %46 : vector<8x128xf32>
      %48 = vector.shape_cast %37 : vector<128xf32> to vector<1x128xf32>
      %49 = vector.broadcast %48 : vector<1x128xf32> to vector<8x128xf32>
      %50 = arith.mulf %49, %47 : vector<8x128xf32>
      %51 = arith.truncf %50 : vector<8x128xf32> to vector<8x128xbf16>
      %c0_29 = arith.constant 0 : index
      %c0_30 = arith.constant 0 : index
      %52 = vector.load %arg9[%c0_29, %c0_30] : memref<128x128xbf16, #tpu.memory_space<vmem>>, vector<128x128xbf16>
      %cst_31 = arith.constant dense<0.000000e+00> : vector<8x128xf32>
      %53 = tpu.matmul %51, %52, %cst_31 {dimension_numbers = #tpu.dot_dimension_numbers<[1], [0], [0], [1], [0, 0, 1, 1], [], []>} : vector<8x128xbf16>, vector<128x128xbf16>, vector<8x128xf32> -> vector<8x128xf32>
      %c0_32 = arith.constant 0 : index
      %c0_33 = arith.constant 0 : index
      %54 = vector.load %arg10[%c0_32, %c0_33] : memref<1x128xf32, #tpu.memory_space<vmem>>, vector<1x128xf32>
      %55 = vector.shape_cast %54 : vector<1x128xf32> to vector<128xf32>
      %56 = vector.shape_cast %55 : vector<128xf32> to vector<1x128xf32>
      %57 = vector.broadcast %56 : vector<1x128xf32> to vector<8x128xf32>
      %58 = arith.addf %53, %57 : vector<8x128xf32>
      %c0_34 = arith.constant 0 : index
      %c0_35 = arith.constant 0 : index
      %59 = vector.load %arg11[%c0_34, %c0_35] : memref<128x128xbf16, #tpu.memory_space<vmem>>, vector<128x128xbf16>
      %cst_36 = arith.constant dense<0.000000e+00> : vector<8x128xf32>
      %60 = tpu.matmul %51, %59, %cst_36 {dimension_numbers = #tpu.dot_dimension_numbers<[1], [0], [0], [1], [0, 0, 1, 1], [], []>} : vector<8x128xbf16>, vector<128x128xbf16>, vector<8x128xf32> -> vector<8x128xf32>
      %c0_37 = arith.constant 0 : index
      %c0_38 = arith.constant 0 : index
      %61 = vector.load %arg12[%c0_37, %c0_38] : memref<1x128xf32, #tpu.memory_space<vmem>>, vector<1x128xf32>
      %62 = vector.shape_cast %61 : vector<1x128xf32> to vector<128xf32>
      %63 = vector.shape_cast %62 : vector<128xf32> to vector<1x128xf32>
      %64 = vector.broadcast %63 : vector<1x128xf32> to vector<8x128xf32>
      %65 = arith.addf %60, %64 : vector<8x128xf32>
      %c0_39 = arith.constant 0 : index
      %c0_40 = arith.constant 0 : index
      %66 = vector.load %arg13[%c0_39, %c0_40] : memref<128x128xbf16, #tpu.memory_space<vmem>>, vector<128x128xbf16>
      %cst_41 = arith.constant dense<0.000000e+00> : vector<8x128xf32>
      %67 = tpu.matmul %51, %66, %cst_41 {dimension_numbers = #tpu.dot_dimension_numbers<[1], [0], [0], [1], [0, 0, 1, 1], [], []>} : vector<8x128xbf16>, vector<128x128xbf16>, vector<8x128xf32> -> vector<8x128xf32>
      %c0_42 = arith.constant 0 : index
      %c0_43 = arith.constant 0 : index
      %68 = vector.load %arg14[%c0_42, %c0_43] : memref<1x128xf32, #tpu.memory_space<vmem>>, vector<1x128xf32>
      %69 = vector.shape_cast %68 : vector<1x128xf32> to vector<128xf32>
      %70 = vector.shape_cast %69 : vector<128xf32> to vector<1x128xf32>
      %71 = vector.broadcast %70 : vector<1x128xf32> to vector<8x128xf32>
      %72 = arith.addf %67, %71 : vector<8x128xf32>
      %c0_44 = arith.constant 0 : index
      %c0_45 = arith.constant 0 : index
      %73 = vector.load %arg3[%c0_44, %c0_45] : memref<8x32xf32, #tpu.memory_space<vmem>>, vector<8x32xf32>
      %c0_46 = arith.constant 0 : index
      %c0_47 = arith.constant 0 : index
      %74 = vector.load %arg4[%c0_46, %c0_47] : memref<8x32xf32, #tpu.memory_space<vmem>>, vector<8x32xf32>
      %c0_48 = arith.constant 0 : index
      %c0_49 = arith.constant 0 : index
      %75 = vector.load %arg5[%c0_48, %c0_49] : memref<8x32xf32, #tpu.memory_space<vmem>>, vector<8x32xf32>
      %c0_50 = arith.constant 0 : index
      %c0_51 = arith.constant 0 : index
      %76 = vector.load %arg6[%c0_50, %c0_51] : memref<8x32xf32, #tpu.memory_space<vmem>>, vector<8x32xf32>
      %77 = vector.extract_strided_slice %58 {offsets = [0, 0], sizes = [8, 32], strides = [1, 1]} : vector<8x128xf32> to vector<8x32xf32>
      %78 = vector.extract_strided_slice %65 {offsets = [0, 0], sizes = [8, 32], strides = [1, 1]} : vector<8x128xf32> to vector<8x32xf32>
      %79 = arith.mulf %77, %73 : vector<8x32xf32>
      %80 = vector.extract_strided_slice %77 {offsets = [0, 0], sizes = [8, 16], strides = [1, 1]} : vector<8x32xf32> to vector<8x16xf32>
      %81 = vector.extract_strided_slice %77 {offsets = [0, 16], sizes = [8, 16], strides = [1, 1]} : vector<8x32xf32> to vector<8x16xf32>
      %cst_52 = arith.constant 0.000000e+00 : f32
      %82 = vector.broadcast %cst_52 : f32 to vector<8x16xf32>
      %83 = arith.subf %82, %81 : vector<8x16xf32>
      %84 = tpu.concatenate %83, %80 in 1 : vector<8x16xf32>, vector<8x16xf32> -> vector<8x32xf32>
      %85 = arith.mulf %84, %74 : vector<8x32xf32>
      %86 = arith.addf %79, %85 : vector<8x32xf32>
      %87 = arith.mulf %78, %75 : vector<8x32xf32>
      %88 = vector.extract_strided_slice %78 {offsets = [0, 0], sizes = [8, 16], strides = [1, 1]} : vector<8x32xf32> to vector<8x16xf32>
      %89 = vector.extract_strided_slice %78 {offsets = [0, 16], sizes = [8, 16], strides = [1, 1]} : vector<8x32xf32> to vector<8x16xf32>
      %cst_53 = arith.constant 0.000000e+00 : f32
      %90 = vector.broadcast %cst_53 : f32 to vector<8x16xf32>
      %91 = arith.subf %90, %89 : vector<8x16xf32>
      %92 = tpu.concatenate %91, %88 in 1 : vector<8x16xf32>, vector<8x16xf32> -> vector<8x32xf32>
      %93 = arith.mulf %92, %76 : vector<8x32xf32>
      %94 = arith.addf %87, %93 : vector<8x32xf32>
      %95 = vector.extract_strided_slice %72 {offsets = [0, 0], sizes = [8, 32], strides = [1, 1]} : vector<8x128xf32> to vector<8x32xf32>
      %96 = vector.extract_strided_slice %58 {offsets = [0, 32], sizes = [8, 32], strides = [1, 1]} : vector<8x128xf32> to vector<8x32xf32>
      %97 = vector.extract_strided_slice %65 {offsets = [0, 32], sizes = [8, 32], strides = [1, 1]} : vector<8x128xf32> to vector<8x32xf32>
      %98 = arith.mulf %96, %73 : vector<8x32xf32>
      %99 = vector.extract_strided_slice %96 {offsets = [0, 0], sizes = [8, 16], strides = [1, 1]} : vector<8x32xf32> to vector<8x16xf32>
      %100 = vector.extract_strided_slice %96 {offsets = [0, 16], sizes = [8, 16], strides = [1, 1]} : vector<8x32xf32> to vector<8x16xf32>
      %cst_54 = arith.constant 0.000000e+00 : f32
      %101 = vector.broadcast %cst_54 : f32 to vector<8x16xf32>
      %102 = arith.subf %101, %100 : vector<8x16xf32>
      %103 = tpu.concatenate %102, %99 in 1 : vector<8x16xf32>, vector<8x16xf32> -> vector<8x32xf32>
      %104 = arith.mulf %103, %74 : vector<8x32xf32>
      %105 = arith.addf %98, %104 : vector<8x32xf32>
      %106 = arith.mulf %97, %75 : vector<8x32xf32>
      %107 = vector.extract_strided_slice %97 {offsets = [0, 0], sizes = [8, 16], strides = [1, 1]} : vector<8x32xf32> to vector<8x16xf32>
      %108 = vector.extract_strided_slice %97 {offsets = [0, 16], sizes = [8, 16], strides = [1, 1]} : vector<8x32xf32> to vector<8x16xf32>
      %cst_55 = arith.constant 0.000000e+00 : f32
      %109 = vector.broadcast %cst_55 : f32 to vector<8x16xf32>
      %110 = arith.subf %109, %108 : vector<8x16xf32>
      %111 = tpu.concatenate %110, %107 in 1 : vector<8x16xf32>, vector<8x16xf32> -> vector<8x32xf32>
      %112 = arith.mulf %111, %76 : vector<8x32xf32>
      %113 = arith.addf %106, %112 : vector<8x32xf32>
      %114 = vector.extract_strided_slice %72 {offsets = [0, 32], sizes = [8, 32], strides = [1, 1]} : vector<8x128xf32> to vector<8x32xf32>
      %115 = vector.extract_strided_slice %58 {offsets = [0, 64], sizes = [8, 32], strides = [1, 1]} : vector<8x128xf32> to vector<8x32xf32>
      %116 = vector.extract_strided_slice %65 {offsets = [0, 64], sizes = [8, 32], strides = [1, 1]} : vector<8x128xf32> to vector<8x32xf32>
      %117 = arith.mulf %115, %73 : vector<8x32xf32>
      %118 = vector.extract_strided_slice %115 {offsets = [0, 0], sizes = [8, 16], strides = [1, 1]} : vector<8x32xf32> to vector<8x16xf32>
      %119 = vector.extract_strided_slice %115 {offsets = [0, 16], sizes = [8, 16], strides = [1, 1]} : vector<8x32xf32> to vector<8x16xf32>
      %cst_56 = arith.constant 0.000000e+00 : f32
      %120 = vector.broadcast %cst_56 : f32 to vector<8x16xf32>
      %121 = arith.subf %120, %119 : vector<8x16xf32>
      %122 = tpu.concatenate %121, %118 in 1 : vector<8x16xf32>, vector<8x16xf32> -> vector<8x32xf32>
      %123 = arith.mulf %122, %74 : vector<8x32xf32>
      %124 = arith.addf %117, %123 : vector<8x32xf32>
      %125 = arith.mulf %116, %75 : vector<8x32xf32>
      %126 = vector.extract_strided_slice %116 {offsets = [0, 0], sizes = [8, 16], strides = [1, 1]} : vector<8x32xf32> to vector<8x16xf32>
      %127 = vector.extract_strided_slice %116 {offsets = [0, 16], sizes = [8, 16], strides = [1, 1]} : vector<8x32xf32> to vector<8x16xf32>
      %cst_57 = arith.constant 0.000000e+00 : f32
      %128 = vector.broadcast %cst_57 : f32 to vector<8x16xf32>
      %129 = arith.subf %128, %127 : vector<8x16xf32>
      %130 = tpu.concatenate %129, %126 in 1 : vector<8x16xf32>, vector<8x16xf32> -> vector<8x32xf32>
      %131 = arith.mulf %130, %76 : vector<8x32xf32>
      %132 = arith.addf %125, %131 : vector<8x32xf32>
      %133 = vector.extract_strided_slice %72 {offsets = [0, 64], sizes = [8, 32], strides = [1, 1]} : vector<8x128xf32> to vector<8x32xf32>
      %134 = vector.extract_strided_slice %58 {offsets = [0, 96], sizes = [8, 32], strides = [1, 1]} : vector<8x128xf32> to vector<8x32xf32>
      %135 = vector.extract_strided_slice %65 {offsets = [0, 96], sizes = [8, 32], strides = [1, 1]} : vector<8x128xf32> to vector<8x32xf32>
      %136 = arith.mulf %134, %73 : vector<8x32xf32>
      %137 = vector.extract_strided_slice %134 {offsets = [0, 0], sizes = [8, 16], strides = [1, 1]} : vector<8x32xf32> to vector<8x16xf32>
      %138 = vector.extract_strided_slice %134 {offsets = [0, 16], sizes = [8, 16], strides = [1, 1]} : vector<8x32xf32> to vector<8x16xf32>
      %cst_58 = arith.constant 0.000000e+00 : f32
      %139 = vector.broadcast %cst_58 : f32 to vector<8x16xf32>
      %140 = arith.subf %139, %138 : vector<8x16xf32>
      %141 = tpu.concatenate %140, %137 in 1 : vector<8x16xf32>, vector<8x16xf32> -> vector<8x32xf32>
      %142 = arith.mulf %141, %74 : vector<8x32xf32>
      %143 = arith.addf %136, %142 : vector<8x32xf32>
      %144 = arith.mulf %135, %75 : vector<8x32xf32>
      %145 = vector.extract_strided_slice %135 {offsets = [0, 0], sizes = [8, 16], strides = [1, 1]} : vector<8x32xf32> to vector<8x16xf32>
      %146 = vector.extract_strided_slice %135 {offsets = [0, 16], sizes = [8, 16], strides = [1, 1]} : vector<8x32xf32> to vector<8x16xf32>
      %cst_59 = arith.constant 0.000000e+00 : f32
      %147 = vector.broadcast %cst_59 : f32 to vector<8x16xf32>
      %148 = arith.subf %147, %146 : vector<8x16xf32>
      %149 = tpu.concatenate %148, %145 in 1 : vector<8x16xf32>, vector<8x16xf32> -> vector<8x32xf32>
      %150 = arith.mulf %149, %76 : vector<8x32xf32>
      %151 = arith.addf %144, %150 : vector<8x32xf32>
      %152 = vector.extract_strided_slice %72 {offsets = [0, 96], sizes = [8, 32], strides = [1, 1]} : vector<8x128xf32> to vector<8x32xf32>
      %153 = vector.shape_cast %86 : vector<8x32xf32> to vector<1x8x32xf32>
      %154 = vector.shape_cast %105 : vector<8x32xf32> to vector<1x8x32xf32>
      %155 = vector.shape_cast %124 : vector<8x32xf32> to vector<1x8x32xf32>
      %156 = vector.shape_cast %143 : vector<8x32xf32> to vector<1x8x32xf32>
      %157 = tpu.concatenate %153, %154, %155, %156 in 0 : vector<1x8x32xf32>, vector<1x8x32xf32>, vector<1x8x32xf32>, vector<1x8x32xf32> -> vector<4x8x32xf32>
      %158 = arith.truncf %157 : vector<4x8x32xf32> to vector<4x8x32xbf16>
      %159 = vector.shape_cast %94 : vector<8x32xf32> to vector<1x8x32xf32>
      %160 = vector.shape_cast %113 : vector<8x32xf32> to vector<1x8x32xf32>
      %161 = vector.shape_cast %132 : vector<8x32xf32> to vector<1x8x32xf32>
      %162 = vector.shape_cast %151 : vector<8x32xf32> to vector<1x8x32xf32>
      %163 = tpu.concatenate %159, %160, %161, %162 in 0 : vector<1x8x32xf32>, vector<1x8x32xf32>, vector<1x8x32xf32>, vector<1x8x32xf32> -> vector<4x8x32xf32>
      %164 = arith.truncf %163 : vector<4x8x32xf32> to vector<4x8x32xbf16>
      %165 = vector.shape_cast %95 : vector<8x32xf32> to vector<1x8x32xf32>
      %166 = vector.shape_cast %114 : vector<8x32xf32> to vector<1x8x32xf32>
      %167 = vector.shape_cast %133 : vector<8x32xf32> to vector<1x8x32xf32>
      %168 = vector.shape_cast %152 : vector<8x32xf32> to vector<1x8x32xf32>
      %169 = tpu.concatenate %165, %166, %167, %168 in 0 : vector<1x8x32xf32>, vector<1x8x32xf32>, vector<1x8x32xf32>, vector<1x8x32xf32> -> vector<4x8x32xf32>
      %170 = arith.truncf %169 : vector<4x8x32xf32> to vector<4x8x32xbf16>
      "tpu.trace_start"() <{level = 10 : i32, message = "hqd,hkd->hqk"}> : () -> ()
      %cst_60 = arith.constant dense<0.000000e+00> : vector<4x8x8xf32>
      %171 = tpu.matmul %158, %164, %cst_60 {dimension_numbers = #tpu.dot_dimension_numbers<[2], [2], [1], [1], [0, 0, 0, 1, 1, 1], [0], [0]>} : vector<4x8x32xbf16>, vector<4x8x32xbf16>, vector<4x8x8xf32> -> vector<4x8x8xf32>
      "tpu.trace_stop"() : () -> ()
      %172 = tpu.iota {dimensions = array<i32: 0>} : vector<8x8xi32>
      %173 = tpu.iota {dimensions = array<i32: 1>} : vector<8x8xi32>
      %174 = arith.cmpi sge, %172, %173 : vector<8x8xi32>
      %175 = vector.shape_cast %174 : vector<8x8xi1> to vector<1x8x8xi1>
      %cst_61 = arith.constant -1.000000e+30 : f32
      %176 = vector.shape_cast %175 : vector<1x8x8xi1> to vector<1x8x8xi1>
      %177 = vector.broadcast %176 : vector<1x8x8xi1> to vector<4x8x8xi1>
      %178 = vector.broadcast %cst_61 : f32 to vector<4x8x8xf32>
      %179 = arith.select %177, %171, %178 : vector<4x8x8xi1>, vector<4x8x8xf32>
      %cst_62 = arith.constant dense<0xFF800000> : vector<4x8xf32>
      %180 = vector.multi_reduction <maximumf>, %179, %cst_62 [2] : vector<4x8x8xf32> to vector<4x8xf32>
      %181 = vector.shape_cast %180 : vector<4x8xf32> to vector<4x8x1xf32>
      %182 = vector.broadcast %181 : vector<4x8x1xf32> to vector<4x8x8xf32>
      %183 = arith.subf %179, %182 : vector<4x8x8xf32>
      %184 = math.exp %183 : vector<4x8x8xf32>
      %cst_63 = arith.constant dense<0.000000e+00> : vector<4x8xf32>
      %185 = vector.multi_reduction <add>, %184, %cst_63 [2] : vector<4x8x8xf32> to vector<4x8xf32>
      %186 = vector.shape_cast %185 : vector<4x8xf32> to vector<4x8x1xf32>
      %187 = tpu.reciprocal %186 {approx = true} : vector<4x8x1xf32> -> vector<4x8x1xf32>
      %188 = vector.broadcast %187 : vector<4x8x1xf32> to vector<4x8x8xf32>
      %189 = arith.mulf %184, %188 : vector<4x8x8xf32>
      %190 = arith.truncf %189 : vector<4x8x8xf32> to vector<4x8x8xbf16>
      "tpu.trace_start"() <{level = 10 : i32, message = "hqk,hkd->hqd"}> : () -> ()
      %cst_64 = arith.constant dense<0.000000e+00> : vector<4x8x32xf32>
      %191 = tpu.matmul %190, %170, %cst_64 {dimension_numbers = #tpu.dot_dimension_numbers<[2], [1], [1], [2], [0, 0, 0, 1, 1, 2], [0], [0]>} : vector<4x8x8xbf16>, vector<4x8x32xbf16>, vector<4x8x32xf32> -> vector<4x8x32xf32>
      "tpu.trace_stop"() : () -> ()
      %192 = vector.extract_strided_slice %191 {offsets = [0, 0, 0], sizes = [1, 8, 32], strides = [1, 1, 1]} : vector<4x8x32xf32> to vector<1x8x32xf32>
      %193 = vector.shape_cast %192 : vector<1x8x32xf32> to vector<8x32xf32>
      %194 = vector.extract_strided_slice %191 {offsets = [1, 0, 0], sizes = [1, 8, 32], strides = [1, 1, 1]} : vector<4x8x32xf32> to vector<1x8x32xf32>
      %195 = vector.shape_cast %194 : vector<1x8x32xf32> to vector<8x32xf32>
      %196 = vector.extract_strided_slice %191 {offsets = [2, 0, 0], sizes = [1, 8, 32], strides = [1, 1, 1]} : vector<4x8x32xf32> to vector<1x8x32xf32>
      %197 = vector.shape_cast %196 : vector<1x8x32xf32> to vector<8x32xf32>
      %198 = vector.extract_strided_slice %191 {offsets = [3, 0, 0], sizes = [1, 8, 32], strides = [1, 1, 1]} : vector<4x8x32xf32> to vector<1x8x32xf32>
      %199 = vector.shape_cast %198 : vector<1x8x32xf32> to vector<8x32xf32>
      %200 = tpu.concatenate %193, %195, %197, %199 in 1 : vector<8x32xf32>, vector<8x32xf32>, vector<8x32xf32>, vector<8x32xf32> -> vector<8x128xf32>
      %201 = arith.truncf %200 : vector<8x128xf32> to vector<8x128xbf16>
      %c0_65 = arith.constant 0 : index
      %c0_66 = arith.constant 0 : index
      %202 = vector.load %arg15[%c0_65, %c0_66] : memref<128x128xbf16, #tpu.memory_space<vmem>>, vector<128x128xbf16>
      %cst_67 = arith.constant dense<0.000000e+00> : vector<8x128xf32>
      %203 = tpu.matmul %201, %202, %cst_67 {dimension_numbers = #tpu.dot_dimension_numbers<[1], [0], [0], [1], [0, 0, 1, 1], [], []>} : vector<8x128xbf16>, vector<128x128xbf16>, vector<8x128xf32> -> vector<8x128xf32>
      %c0_68 = arith.constant 0 : index
      %c0_69 = arith.constant 0 : index
      %204 = vector.load %arg16[%c0_68, %c0_69] : memref<1x128xf32, #tpu.memory_space<vmem>>, vector<1x128xf32>
      %205 = vector.shape_cast %204 : vector<1x128xf32> to vector<128xf32>
      %206 = vector.shape_cast %205 : vector<128xf32> to vector<1x128xf32>
      %207 = vector.broadcast %206 : vector<1x128xf32> to vector<8x128xf32>
      %208 = arith.addf %203, %207 : vector<8x128xf32>
      %209 = arith.addf %35, %208 : vector<8x128xf32>
      %c0_70 = arith.constant 0 : index
      %c0_71 = arith.constant 0 : index
      %210 = vector.load %arg8[%c0_70, %c0_71] : memref<1x128xf32, #tpu.memory_space<vmem>>, vector<1x128xf32>
      %211 = vector.shape_cast %210 : vector<1x128xf32> to vector<128xf32>
      %212 = arith.mulf %209, %209 : vector<8x128xf32>
      %cst_72 = arith.constant dense<0.000000e+00> : vector<8xf32>
      %213 = vector.multi_reduction <add>, %212, %cst_72 [1] : vector<8x128xf32> to vector<8xf32>
      %214 = vector.shape_cast %213 : vector<8xf32> to vector<8x1xf32>
      %cst_73 = arith.constant 1.280000e+02 : f32
      %215 = vector.broadcast %cst_73 : f32 to vector<8x1xf32>
      %216 = arith.divf %214, %215 : vector<8x1xf32>
      %cst_74 = arith.constant 9.99999974E-6 : f32
      %217 = vector.broadcast %cst_74 : f32 to vector<8x1xf32>
      %218 = arith.addf %216, %217 : vector<8x1xf32>
      %219 = math.rsqrt %218 : vector<8x1xf32>
      %220 = vector.broadcast %219 : vector<8x1xf32> to vector<8x128xf32>
      %221 = arith.mulf %209, %220 : vector<8x128xf32>
      %222 = vector.shape_cast %211 : vector<128xf32> to vector<1x128xf32>
      %223 = vector.broadcast %222 : vector<1x128xf32> to vector<8x128xf32>
      %224 = arith.mulf %223, %221 : vector<8x128xf32>
      %225 = arith.truncf %224 : vector<8x128xf32> to vector<8x128xbf16>
      %c0_75 = arith.constant 0 : index
      %c0_76 = arith.constant 0 : index
      %226 = vector.load %arg24[%c0_75, %c0_76] : memref<8x128xbf16, #tpu.memory_space<vmem>>, vector<8x128xbf16>
      tpu.vector_store %arg24[%c0_75, %c0_76], %225 {strides = array<i32>} : memref<8x128xbf16, #tpu.memory_space<vmem>>, vector<8x128xbf16>,
      %c0_77 = arith.constant 0 : index
      %c0_78 = arith.constant 0 : index
      %227 = vector.load %arg22[%c0_77, %c0_78] : memref<1x128xf32, #tpu.memory_space<vmem>>, vector<1x128xf32>
      %228 = vector.shape_cast %227 : vector<1x128xf32> to vector<128xf32>
      %229 = vector.shape_cast %228 : vector<128xf32> to vector<1x128xf32>
      %230 = vector.broadcast %229 : vector<1x128xf32> to vector<8x128xf32>
      %231 = arith.addf %209, %230 : vector<8x128xf32>
      %c0_79 = arith.constant 0 : index
      %c0_80 = arith.constant 0 : index
      %c0_81 = arith.constant 0 : index
      %232 = vector.load %arg23[%c0_79, %c0_80, %c0_81] : memref<1x8x128xf32, #tpu.memory_space<vmem>>, vector<1x8x128xf32>
      %233 = vector.shape_cast %232 : vector<1x8x128xf32> to vector<8x128xf32>
      %234 = vector.shape_cast %231 : vector<8x128xf32> to vector<1x8x128xf32>
      tpu.vector_store %arg23[%c0_79, %c0_80, %c0_81], %234 {strides = array<i32>} : memref<1x8x128xf32, #tpu.memory_space<vmem>>, vector<1x8x128xf32>,
    } else {
    }
    %c0 = arith.constant 0 : index
    %c0_1 = arith.constant 0 : index
    %3 = vector.load %arg24[%c0, %c0_1] : memref<8x128xbf16, #tpu.memory_space<vmem>>, vector<8x128xbf16>
    %c0_2 = arith.constant 0 : index
    %c0_3 = arith.constant 0 : index
    %4 = vector.load %arg17[%c0_2, %c0_3] : memref<128x256xbf16, #tpu.memory_space<vmem>>, vector<128x256xbf16>
    %cst = arith.constant dense<0.000000e+00> : vector<8x256xf32>
    %5 = tpu.matmul %3, %4, %cst {dimension_numbers = #tpu.dot_dimension_numbers<[1], [0], [0], [1], [0, 0, 1, 1], [], []>} : vector<8x128xbf16>, vector<128x256xbf16>, vector<8x256xf32> -> vector<8x256xf32>
    %c0_4 = arith.constant 0 : index
    %c0_5 = arith.constant 0 : index
    %6 = vector.load %arg18[%c0_4, %c0_5] : memref<1x256xf32, #tpu.memory_space<vmem>>, vector<1x256xf32>
    %7 = vector.shape_cast %6 : vector<1x256xf32> to vector<256xf32>
    %8 = vector.shape_cast %7 : vector<256xf32> to vector<1x256xf32>
    %9 = vector.broadcast %8 : vector<1x256xf32> to vector<8x256xf32>
    %10 = arith.addf %5, %9 : vector<8x256xf32>
    %c0_6 = arith.constant 0 : index
    %c0_7 = arith.constant 0 : index
    %11 = vector.load %arg19[%c0_6, %c0_7] : memref<128x256xbf16, #tpu.memory_space<vmem>>, vector<128x256xbf16>
    %cst_8 = arith.constant dense<0.000000e+00> : vector<8x256xf32>
    %12 = tpu.matmul %3, %11, %cst_8 {dimension_numbers = #tpu.dot_dimension_numbers<[1], [0], [0], [1], [0, 0, 1, 1], [], []>} : vector<8x128xbf16>, vector<128x256xbf16>, vector<8x256xf32> -> vector<8x256xf32>
    %c0_9 = arith.constant 0 : index
    %c0_10 = arith.constant 0 : index
    %13 = vector.load %arg20[%c0_9, %c0_10] : memref<1x256xf32, #tpu.memory_space<vmem>>, vector<1x256xf32>
    %14 = vector.shape_cast %13 : vector<1x256xf32> to vector<256xf32>
    %15 = vector.shape_cast %14 : vector<256xf32> to vector<1x256xf32>
    %16 = vector.broadcast %15 : vector<1x256xf32> to vector<8x256xf32>
    %17 = arith.addf %12, %16 : vector<8x256xf32>
    %18 = arith.negf %10 : vector<8x256xf32>
    %19 = math.exp %18 : vector<8x256xf32>
    %cst_11 = arith.constant 1.000000e+00 : f32
    %20 = vector.broadcast %cst_11 : f32 to vector<8x256xf32>
    %21 = arith.addf %20, %19 : vector<8x256xf32>
    %22 = arith.divf %20, %21 : vector<8x256xf32>
    %23 = arith.mulf %10, %22 : vector<8x256xf32>
    %24 = arith.mulf %23, %17 : vector<8x256xf32>
    %c0_12 = arith.constant 0 : index
    %c0_13 = arith.constant 0 : index
    %c0_14 = arith.constant 0 : index
    %25 = vector.load %arg23[%c0_12, %c0_13, %c0_14] : memref<1x8x128xf32, #tpu.memory_space<vmem>>, vector<1x8x128xf32>
    %26 = vector.shape_cast %25 : vector<1x8x128xf32> to vector<8x128xf32>
    %27 = arith.truncf %24 : vector<8x256xf32> to vector<8x256xbf16>
    %c0_15 = arith.constant 0 : index
    %c0_16 = arith.constant 0 : index
    %28 = vector.load %arg21[%c0_15, %c0_16] : memref<256x128xbf16, #tpu.memory_space<vmem>>, vector<256x128xbf16>
    %cst_17 = arith.constant dense<0.000000e+00> : vector<8x128xf32>
    %29 = tpu.matmul %27, %28, %cst_17 {dimension_numbers = #tpu.dot_dimension_numbers<[1], [0], [0], [1], [0, 0, 1, 1], [], []>} : vector<8x256xbf16>, vector<256x128xbf16>, vector<8x128xf32> -> vector<8x128xf32>
    %30 = arith.addf %26, %29 : vector<8x128xf32>
    %c0_18 = arith.constant 0 : index
    %c0_19 = arith.constant 0 : index
    %c0_20 = arith.constant 0 : index
    %31 = vector.load %arg23[%c0_18, %c0_19, %c0_20] : memref<1x8x128xf32, #tpu.memory_space<vmem>>, vector<1x8x128xf32>
    %32 = vector.shape_cast %31 : vector<1x8x128xf32> to vector<8x128xf32>
    %33 = vector.shape_cast %30 : vector<8x128xf32> to vector<1x8x128xf32>
    tpu.vector_store %arg23[%c0_18, %c0_19, %c0_20], %33 {strides = array<i32>} : memref<1x8x128xf32, #tpu.memory_space<vmem>>, vector<1x8x128xf32>,
    return
  }
  func.func @transform_0(%arg0: i32, %arg1: i32) -> (i32, i32, i32) {
    %c0_i32 = arith.constant 0 : i32
    %c0_i32_0 = arith.constant 0 : i32
    %c0_i32_1 = arith.constant 0 : i32
    return %arg0, %c0_i32, %c0_i32_0 : i32, i32, i32
  }
  func.func @transform_1(%arg0: i32, %arg1: i32) -> (i32, i32) {
    %c0_i32 = arith.constant 0 : i32
    %c0_i32_0 = arith.constant 0 : i32
    %c0_i32_1 = arith.constant 0 : i32
    return %c0_i32, %c0_i32_0 : i32, i32
  }
  func.func @transform_2(%arg0: i32, %arg1: i32) -> (i32, i32) {
    %c0_i32 = arith.constant 0 : i32
    %c0_i32_0 = arith.constant 0 : i32
    %c0_i32_1 = arith.constant 0 : i32
    return %c0_i32, %c0_i32_0 : i32, i32
  }
  func.func @transform_3(%arg0: i32, %arg1: i32) -> (i32, i32) {
    %c0_i32 = arith.constant 0 : i32
    %c0_i32_0 = arith.constant 0 : i32
    %c0_i32_1 = arith.constant 0 : i32
    return %c0_i32, %c0_i32_0 : i32, i32
  }
  func.func @transform_4(%arg0: i32, %arg1: i32) -> (i32, i32) {
    %c0_i32 = arith.constant 0 : i32
    %c0_i32_0 = arith.constant 0 : i32
    %c0_i32_1 = arith.constant 0 : i32
    return %c0_i32, %c0_i32_0 : i32, i32
  }
  func.func @transform_5(%arg0: i32, %arg1: i32) -> (i32, i32) {
    %c0_i32 = arith.constant 0 : i32
    %c0_i32_0 = arith.constant 0 : i32
    %c0_i32_1 = arith.constant 0 : i32
    return %c0_i32, %c0_i32_0 : i32, i32
  }
  func.func @transform_6(%arg0: i32, %arg1: i32) -> (i32, i32) {
    %c0_i32 = arith.constant 0 : i32
    %c0_i32_0 = arith.constant 0 : i32
    %c0_i32_1 = arith.constant 0 : i32
    return %c0_i32, %c0_i32_0 : i32, i32
  }
  func.func @transform_7(%arg0: i32, %arg1: i32) -> (i32, i32) {
    %c0_i32 = arith.constant 0 : i32
    %c0_i32_0 = arith.constant 0 : i32
    %c0_i32_1 = arith.constant 0 : i32
    return %c0_i32, %c0_i32_0 : i32, i32
  }
  func.func @transform_8(%arg0: i32, %arg1: i32) -> (i32, i32) {
    %c0_i32 = arith.constant 0 : i32
    %c0_i32_0 = arith.constant 0 : i32
    %c0_i32_1 = arith.constant 0 : i32
    return %c0_i32, %c0_i32_0 : i32, i32
  }
  func.func @transform_9(%arg0: i32, %arg1: i32) -> (i32, i32) {
    %c0_i32 = arith.constant 0 : i32
    %c0_i32_0 = arith.constant 0 : i32
    %c0_i32_1 = arith.constant 0 : i32
    return %c0_i32, %c0_i32_0 : i32, i32
  }
  func.func @transform_10(%arg0: i32, %arg1: i32) -> (i32, i32) {
    %c0_i32 = arith.constant 0 : i32
    %c0_i32_0 = arith.constant 0 : i32
    %c0_i32_1 = arith.constant 0 : i32
    return %c0_i32, %c0_i32_0 : i32, i32
  }
  func.func @transform_11(%arg0: i32, %arg1: i32) -> (i32, i32) {
    %c0_i32 = arith.constant 0 : i32
    %c0_i32_0 = arith.constant 0 : i32
    %c0_i32_1 = arith.constant 0 : i32
    return %c0_i32, %c0_i32_0 : i32, i32
  }
  func.func @transform_12(%arg0: i32, %arg1: i32) -> (i32, i32) {
    %c0_i32 = arith.constant 0 : i32
    %c0_i32_0 = arith.constant 0 : i32
    %c0_i32_1 = arith.constant 0 : i32
    return %c0_i32, %c0_i32_0 : i32, i32
  }
  func.func @transform_13(%arg0: i32, %arg1: i32) -> (i32, i32) {
    %c0_i32 = arith.constant 0 : i32
    %c0_i32_0 = arith.constant 0 : i32
    %c0_i32_1 = arith.constant 0 : i32
    return %c0_i32, %c0_i32_0 : i32, i32
  }
  func.func @transform_14(%arg0: i32, %arg1: i32) -> (i32, i32) {
    %c0_i32 = arith.constant 0 : i32
    %c0_i32_0 = arith.constant 0 : i32
    %c0_i32_1 = arith.constant 0 : i32
    return %c0_i32, %c0_i32_0 : i32, i32
  }
  func.func @transform_15(%arg0: i32, %arg1: i32) -> (i32, i32) {
    %c0_i32 = arith.constant 0 : i32
    %c0_i32_0 = arith.constant 0 : i32
    return %c0_i32, %arg1 : i32, i32
  }
  func.func @transform_16(%arg0: i32, %arg1: i32) -> (i32, i32) {
    %c0_i32 = arith.constant 0 : i32
    %c0_i32_0 = arith.constant 0 : i32
    return %c0_i32, %arg1 : i32, i32
  }
  func.func @transform_17(%arg0: i32, %arg1: i32) -> (i32, i32) {
    %c0_i32 = arith.constant 0 : i32
    %c0_i32_0 = arith.constant 0 : i32
    return %c0_i32, %arg1 : i32, i32
  }
  func.func @transform_18(%arg0: i32, %arg1: i32) -> (i32, i32) {
    %c0_i32 = arith.constant 0 : i32
    %c0_i32_0 = arith.constant 0 : i32
    return %c0_i32, %arg1 : i32, i32
  }
  func.func @transform_19(%arg0: i32, %arg1: i32) -> (i32, i32) {
    %c0_i32 = arith.constant 0 : i32
    %c0_i32_0 = arith.constant 0 : i32
    return %arg1, %c0_i32 : i32, i32
  }
  func.func @transform_20(%arg0: i32, %arg1: i32) -> (i32, i32) {
    %c0_i32 = arith.constant 0 : i32
    %c0_i32_0 = arith.constant 0 : i32
    %c0_i32_1 = arith.constant 0 : i32
    return %c0_i32, %c0_i32_0 : i32, i32
  }
  func.func @transform_21(%arg0: i32, %arg1: i32) -> (i32, i32, i32) {
    %c0_i32 = arith.constant 0 : i32
    %c0_i32_0 = arith.constant 0 : i32
    %c0_i32_1 = arith.constant 0 : i32
    return %arg0, %c0_i32, %c0_i32_0 : i32, i32, i32
  }
}

</mosaic_0001>

<llo_original>
// kernel: tpu_custom_call.1
$region0: #{tpu_custom_call.1}
  #allocation0 [shape = 'u32[]', space=smem, size = 0x4, offset = 0x4, fixed_abs, tag = 'smem constant byte address 0x4 - core index']
  #allocation1 [shape = 'u32[144,128]{1,0:T(1,128)}', space=vmem, size = 0x12000, scoped, tag = 'internal scratch']
  #allocation2 [shape = 'bf16[8,128]{1,0:T(8,128)(2,1)}', space=vmem, size = 0x800, scoped, tag = 'scratch operand']
  %s0 = inlined_call_operand.hbm [shape: f32[2,8,128], index: 0, kind: input, shape index: {}]
  %s1 = inlined_call_operand.hbm [shape: f32[8,32], index: 1, kind: input, shape index: {}]
  %s2 = inlined_call_operand.hbm [shape: f32[8,32], index: 2, kind: input, shape index: {}]
  %s3 = inlined_call_operand.vmem [shape: f32[8,32], index: 3, kind: input, shape index: {}]
  %s4 = inlined_call_operand.hbm [shape: f32[8,32], index: 4, kind: input, shape index: {}]
  %s5 = inlined_call_operand.vmem [shape: f32[1,128], index: 5, kind: input, shape index: {}]
  %s6 = inlined_call_operand.vmem [shape: f32[1,128], index: 6, kind: input, shape index: {}]
  %s7 = inlined_call_operand.hbm [shape: bf16[128,128], index: 7, kind: input, shape index: {}]
  %s8 = inlined_call_operand.vmem [shape: f32[1,128], index: 8, kind: input, shape index: {}]
  %s9 = inlined_call_operand.hbm [shape: bf16[128,128], index: 9, kind: input, shape index: {}]
  %s10 = inlined_call_operand.vmem [shape: f32[1,128], index: 10, kind: input, shape index: {}]
  %s11 = inlined_call_operand.hbm [shape: bf16[128,128], index: 11, kind: input, shape index: {}]
  %s12 = inlined_call_operand.vmem [shape: f32[1,128], index: 12, kind: input, shape index: {}]
  %s13 = inlined_call_operand.hbm [shape: bf16[128,128], index: 13, kind: input, shape index: {}]
  %s14 = inlined_call_operand.vmem [shape: f32[1,128], index: 14, kind: input, shape index: {}]
  %s15 = inlined_call_operand.hbm [shape: bf16[128,512], index: 15, kind: input, shape index: {}]
  %s16 = inlined_call_operand.vmem [shape: f32[1,512], index: 16, kind: input, shape index: {}]
  %s17 = inlined_call_operand.hbm [shape: bf16[128,512], index: 17, kind: input, shape index: {}]
  %s18 = inlined_call_operand.vmem [shape: f32[1,512], index: 18, kind: input, shape index: {}]
  %s19 = inlined_call_operand.hbm [shape: bf16[512,128], index: 19, kind: input, shape index: {}]
  %s20 = inlined_call_operand.vmem [shape: f32[1,128], index: 20, kind: input, shape index: {}]
  %s21 = inlined_call_operand.hbm [shape: f32[2,8,128], index: 21, kind: output, shape index: {}]
  %s22 = sld [smem:[#allocation0]]
  $region165: #{tpu_custom_call.1} parent=0
    _
  %s24 = ssub.s32 1, %s22
  %s25 = scalar_select 0, %s24, %s22
  $region1: #{tpu_custom_call.1} parent=0
    #allocation3 [shape = 'u8[8192]{0}', space=vmem, size = 0x2000, scoped, tag = 'input window, operand 0']
    #allocation4 [shape = 's32[2]{0}', space=sflag, size = 0x8, scoped, tag = 'scoped memory for tpu_custom_call.1']
    #allocation5 [shape = 's32[2]{0}', space=sflag, size = 0x8, scoped, tag = 'scoped memory for tpu_custom_call.1']
    #allocation6 [shape = 'u8[4096]{0}', space=vmem, size = 0x1000, scoped, tag = 'input window, operand 1, single buffered']
    #allocation7 [shape = 's32[1]{0}', space=sflag, size = 0x4, scoped, tag = 'scoped memory for tpu_custom_call.1']
    #allocation8 [shape = 'u8[4096]{0}', space=vmem, size = 0x1000, scoped, tag = 'input window, operand 2, single buffered']
    #allocation9 [shape = 'u8[4096]{0}', space=vmem, size = 0x1000, scoped, tag = 'input window, operand 4, single buffered']
    #allocation10 [shape = 's32[1]{0}', space=sflag, size = 0x4, scoped, tag = 'scoped memory for tpu_custom_call.1']
    #allocation11 [shape = 'u8[32768]{0}', space=vmem, size = 0x8000, scoped, tag = 'input window, operand 7, single buffered']
    #allocation12 [shape = 'u8[32768]{0}', space=vmem, size = 0x8000, scoped, tag = 'input window, operand 9, single buffered']
    #allocation13 [shape = 's32[1]{0}', space=sflag, size = 0x4, scoped, tag = 'scoped memory for tpu_custom_call.1']
    #allocation14 [shape = 'u8[32768]{0}', space=vmem, size = 0x8000, scoped, tag = 'input window, operand 11, single buffered']
    #allocation15 [shape = 'u8[32768]{0}', space=vmem, size = 0x8000, scoped, tag = 'input window, operand 13, single buffered']
    #allocation16 [shape = 's32[1]{0}', space=sflag, size = 0x4, scoped, tag = 'scoped memory for tpu_custom_call.1']
    #allocation17 [shape = 'u8[131072]{0}', space=vmem, size = 0x20000, scoped, tag = 'input window, operand 15']
    #allocation18 [shape = 'u8[131072]{0}', space=vmem, size = 0x20000, scoped, tag = 'input window, operand 17']
    #allocation19 [shape = 'u8[131072]{0}', space=vmem, size = 0x20000, scoped, tag = 'input window, operand 19']
    #allocation20 [shape = 'u8[8192]{0}', space=vmem, size = 0x2000, scoped, tag = 'output window, operand 0']
    %26 = vsyncpa [#allocation4], 0
    %s27 = scalar_lea.sflag [#allocation4], 1
    %28 = vsyncpa %s27, 0
    %29 = vsyncpa [#allocation7], 0
    %30 = vsyncpa [#allocation10], 0
    %31 = vsyncpa [#allocation13], 0
    %32 = vsyncpa [#allocation16], 0
    %33 = vsyncpa [#allocation5], 0
    %s34 = scalar_lea.sflag [#allocation5], 1
    %35 = vsyncpa %s34, 0
    loop: start=0, step=1, limit=6
    $region2: #{tpu_custom_call.1} parent=1 // loop_pre_header
      _
    $region3: #{tpu_custom_call.1} parent=1 // loop_header
      %s37 = sphi 0, %s41
      %p38 = scmp.ge.s32.totalorder %s37, 6
      %s44 = sphi 0, %s56
      %s45 = sphi 0, %s52
      %s46 = sphi 0, %s44
      %s47 = sphi 0, %s45
      %s48 = sphi 0, %s46
      %s49 = sphi 0, %s47
      %s59 = sphi 0, %s61
      %s62 = sphi 0, %s59
      %s63 = sphi 0, %s62
      %s79 = sphi 0, %s63
      %s83 = sphi 0, %s83
      %s85 = sphi 0, %s83
      %s86 = sphi 0, %s85
      %s100 = sphi 0, %s86
      %s104 = sphi 0, %s104
      %s106 = sphi 0, %s104
      %s107 = sphi 0, %s106
      %s121 = sphi 0, %s107
      %s125 = sphi 0, %s125
      %s127 = sphi 0, %s125
      %s128 = sphi 0, %s127
      %s142 = sphi 0, %s128
      %s146 = sphi 0, %s146
      %s148 = sphi 0, %s146
      %s149 = sphi 0, %s148
      %s163 = sphi 0, %s149
      %s167 = sphi 0, %s167
      %s169 = sphi 0, %s167
      %s170 = sphi 0, %s169
      %s184 = sphi 0, %s170
      %s188 = sphi 0, %s188
      %s190 = sphi 0, %s188
      %s191 = sphi 0, %s190
      %s205 = sphi 0, %s191
      %s209 = sphi 0, %s209
      %s211 = sphi 0, %s209
      %s212 = sphi 0, %s211
      %s226 = sphi 0, %s212
      %s230 = sphi 0, %s230
      %s232 = sphi 0, %s230
      %s233 = sphi 0, %s232
      %s247 = sphi 0, %s233
      %s251 = sphi 0, %s251
      %s253 = sphi 0, %s251
      %s254 = sphi 0, %s253
      %s268 = sphi 0, %s254
      %s272 = sphi 0, %s272
      %s274 = sphi 0, %s272
      %s275 = sphi 0, %s274
      %s289 = sphi 0, %s275
      %s293 = sphi 0, %s293
      %s295 = sphi 0, %s293
      %s296 = sphi 0, %s295
      %s310 = sphi 0, %s296
      %s314 = sphi 0, %s314
      %s316 = sphi 0, %s314
      %s317 = sphi 0, %s316
      %s331 = sphi 0, %s317
      %s335 = sphi 0, %s335
      %s337 = sphi 0, %s335
      %s338 = sphi 0, %s337
      %s352 = sphi 0, %s338
      %s356 = sphi 0, %s356
      %s358 = sphi 0, %s356
      %s359 = sphi 0, %s358
      %s373 = sphi 0, %s359
      %s379 = sphi 0, %s381
      %s382 = sphi 0, %s379
      %s383 = sphi 0, %s382
      %s399 = sphi 0, %s383
      %s405 = sphi 0, %s407
      %s408 = sphi 0, %s405
      %s409 = sphi 0, %s408
      %s425 = sphi 0, %s409
      %s431 = sphi 0, %s433
      %s434 = sphi 0, %s431
      %s435 = sphi 0, %s434
      %s451 = sphi 0, %s435
      %s457 = sphi 0, %s459
      %s460 = sphi 0, %s457
      %s461 = sphi 0, %s460
      %s477 = sphi 0, %s461
      %s483 = sphi 0, %s485
      %s486 = sphi 0, %s483
      %s487 = sphi 0, %s486
      %s503 = sphi 0, %s487
      %s507 = sphi 0, %s507
      %s509 = sphi 0, %s507
      %s510 = sphi 0, %s509
      %s524 = sphi 0, %s510
      %s530 = sphi 0, %s532
      %s533 = sphi 0, %s530
      %s534 = sphi 0, %s533
      %s550 = sphi 0, %s534
    $region4: #{tpu_custom_call.1} parent=1 // loop_header_branch
      %40 = sbr.rel (%p38) target = $region8
    $region5: #{tpu_custom_call.1} parent=1 // loop_body
      %s42 = ssub.s32 %s37, 1
      %s43 = ssub.s32 %s37, 2
      %s50 = sadd.s32 1, %s45
      %p51 = scmp.ge.s32.totalorder %s50, 2
      %s52 = scalar_select %p51, 0, %s50
      %s53 = sadd.s32 1, %s44
      %s54 = scalar_select %p51, %s53, %s44
      %p55 = scmp.ge.s32.totalorder %s54, 2
      %s56 = scalar_select %p55, 0, %s54
      %s57 = ssub.s32 %s44, %s56
      %p58 = scmp.eq.s32.totalorder %s57, 0
      %s60 = sadd.s32 %s59, 1
      %s61 = scalar_select %p58, %s59, %s60
      %p64 = pneg %p58
      %p65 = scmp.eq.s32.totalorder %s37, 3
      %p66 = por %p64, %p65
      %p67 = scmp.ne.s32.totalorder %s59, %s62
      %p68 = scmp.eq.s32.totalorder %s37, 0
      %p69 = por %p67, %p68
      %p70 = scmp.ne.s32.totalorder %s59, %s62
      %p71 = scmp.eq.s32.totalorder %s42, 3
      %p72 = por %p70, %p71
      %p73 = scmp.ne.s32.totalorder %s62, %s63
      %p74 = scmp.eq.s32.totalorder %s42, 0
      %p75 = por %p73, %p74
      %p76 = scmp.ne.s32.totalorder %s62, %s63
      %p77 = scmp.eq.s32.totalorder %s43, 3
      %p78 = por %p76, %p77
      %p80 = scmp.ne.s32.totalorder %s63, %s79
      %p81 = scmp.eq.s32.totalorder %s43, 0
      %p82 = por %p80, %p81
      %s84 = sadd.s32 %s83, 1
      %p87 = scmp.eq.s32.totalorder %s37, 3
      %p88 = scmp.ne.s32.totalorder %s83, %s85
      %p89 = scmp.eq.s32.totalorder %s37, 0
      %p90 = por %p88, %p89
      %p91 = scmp.ne.s32.totalorder %s83, %s85
      %p92 = scmp.eq.s32.totalorder %s42, 3
      %p93 = por %p91, %p92
      %p94 = scmp.ne.s32.totalorder %s85, %s86
      %p95 = scmp.eq.s32.totalorder %s42, 0
      %p96 = por %p94, %p95
      %p97 = scmp.ne.s32.totalorder %s85, %s86
      %p98 = scmp.eq.s32.totalorder %s43, 3
      %p99 = por %p97, %p98
      %p101 = scmp.ne.s32.totalorder %s86, %s100
      %p102 = scmp.eq.s32.totalorder %s43, 0
      %p103 = por %p101, %p102
      %s105 = sadd.s32 %s104, 1
      %p108 = scmp.eq.s32.totalorder %s37, 3
      %p109 = scmp.ne.s32.totalorder %s104, %s106
      %p110 = scmp.eq.s32.totalorder %s37, 0
      %p111 = por %p109, %p110
      %p112 = scmp.ne.s32.totalorder %s104, %s106
      %p113 = scmp.eq.s32.totalorder %s42, 3
      %p114 = por %p112, %p113
      %p115 = scmp.ne.s32.totalorder %s106, %s107
      %p116 = scmp.eq.s32.totalorder %s42, 0
      %p117 = por %p115, %p116
      %p118 = scmp.ne.s32.totalorder %s106, %s107
      %p119 = scmp.eq.s32.totalorder %s43, 3
      %p120 = por %p118, %p119
      %p122 = scmp.ne.s32.totalorder %s107, %s121
      %p123 = scmp.eq.s32.totalorder %s43, 0
      %p124 = por %p122, %p123
      %s126 = sadd.s32 %s125, 1
      %p129 = scmp.eq.s32.totalorder %s37, 3
      %p130 = scmp.ne.s32.totalorder %s125, %s127
      %p131 = scmp.eq.s32.totalorder %s37, 0
      %p132 = por %p130, %p131
      %p133 = scmp.ne.s32.totalorder %s125, %s127
      %p134 = scmp.eq.s32.totalorder %s42, 3
      %p135 = por %p133, %p134
      %p136 = scmp.ne.s32.totalorder %s127, %s128
      %p137 = scmp.eq.s32.totalorder %s42, 0
      %p138 = por %p136, %p137
      %p139 = scmp.ne.s32.totalorder %s127, %s128
      %p140 = scmp.eq.s32.totalorder %s43, 3
      %p141 = por %p139, %p140
      %p143 = scmp.ne.s32.totalorder %s128, %s142
      %p144 = scmp.eq.s32.totalorder %s43, 0
      %p145 = por %p143, %p144
      %s147 = sadd.s32 %s146, 1
      %p150 = scmp.eq.s32.totalorder %s37, 3
      %p151 = scmp.ne.s32.totalorder %s146, %s148
      %p152 = scmp.eq.s32.totalorder %s37, 0
      %p153 = por %p151, %p152
      %p154 = scmp.ne.s32.totalorder %s146, %s148
      %p155 = scmp.eq.s32.totalorder %s42, 3
      %p156 = por %p154, %p155
      %p157 = scmp.ne.s32.totalorder %s148, %s149
      %p158 = scmp.eq.s32.totalorder %s42, 0
      %p159 = por %p157, %p158
      %p160 = scmp.ne.s32.totalorder %s148, %s149
      %p161 = scmp.eq.s32.totalorder %s43, 3
      %p162 = por %p160, %p161
      %p164 = scmp.ne.s32.totalorder %s149, %s163
      %p165 = scmp.eq.s32.totalorder %s43, 0
      %p166 = por %p164, %p165
      %s168 = sadd.s32 %s167, 1
      %p171 = scmp.eq.s32.totalorder %s37, 3
      %p172 = scmp.ne.s32.totalorder %s167, %s169
      %p173 = scmp.eq.s32.totalorder %s37, 0
      %p174 = por %p172, %p173
      %p175 = scmp.ne.s32.totalorder %s167, %s169
      %p176 = scmp.eq.s32.totalorder %s42, 3
      %p177 = por %p175, %p176
      %p178 = scmp.ne.s32.totalorder %s169, %s170
      %p179 = scmp.eq.s32.totalorder %s42, 0
      %p180 = por %p178, %p179
      %p181 = scmp.ne.s32.totalorder %s169, %s170
      %p182 = scmp.eq.s32.totalorder %s43, 3
      %p183 = por %p181, %p182
      %p185 = scmp.ne.s32.totalorder %s170, %s184
      %p186 = scmp.eq.s32.totalorder %s43, 0
      %p187 = por %p185, %p186
      %s189 = sadd.s32 %s188, 1
      %p192 = scmp.eq.s32.totalorder %s37, 3
      %p193 = scmp.ne.s32.totalorder %s188, %s190
      %p194 = scmp.eq.s32.totalorder %s37, 0
      %p195 = por %p193, %p194
      %p196 = scmp.ne.s32.totalorder %s188, %s190
      %p197 = scmp.eq.s32.totalorder %s42, 3
      %p198 = por %p196, %p197
      %p199 = scmp.ne.s32.totalorder %s190, %s191
      %p200 = scmp.eq.s32.totalorder %s42, 0
      %p201 = por %p199, %p200
      %p202 = scmp.ne.s32.totalorder %s190, %s191
      %p203 = scmp.eq.s32.totalorder %s43, 3
      %p204 = por %p202, %p203
      %p206 = scmp.ne.s32.totalorder %s191, %s205
      %p207 = scmp.eq.s32.totalorder %s43, 0
      %p208 = por %p206, %p207
      %s210 = sadd.s32 %s209, 1
      %p213 = scmp.eq.s32.totalorder %s37, 3
      %p214 = scmp.ne.s32.totalorder %s209, %s211
      %p215 = scmp.eq.s32.totalorder %s37, 0
      %p216 = por %p214, %p215
      %p217 = scmp.ne.s32.totalorder %s209, %s211
      %p218 = scmp.eq.s32.totalorder %s42, 3
      %p219 = por %p217, %p218
      %p220 = scmp.ne.s32.totalorder %s211, %s212
      %p221 = scmp.eq.s32.totalorder %s42, 0
      %p222 = por %p220, %p221
      %p223 = scmp.ne.s32.totalorder %s211, %s212
      %p224 = scmp.eq.s32.totalorder %s43, 3
      %p225 = por %p223, %p224
      %p227 = scmp.ne.s32.totalorder %s212, %s226
      %p228 = scmp.eq.s32.totalorder %s43, 0
      %p229 = por %p227, %p228
      %s231 = sadd.s32 %s230, 1
      %p234 = scmp.eq.s32.totalorder %s37, 3
      %p235 = scmp.ne.s32.totalorder %s230, %s232
      %p236 = scmp.eq.s32.totalorder %s37, 0
      %p237 = por %p235, %p236
      %p238 = scmp.ne.s32.totalorder %s230, %s232
      %p239 = scmp.eq.s32.totalorder %s42, 3
      %p240 = por %p238, %p239
      %p241 = scmp.ne.s32.totalorder %s232, %s233
      %p242 = scmp.eq.s32.totalorder %s42, 0
      %p243 = por %p241, %p242
      %p244 = scmp.ne.s32.totalorder %s232, %s233
      %p245 = scmp.eq.s32.totalorder %s43, 3
      %p246 = por %p244, %p245
      %p248 = scmp.ne.s32.totalorder %s233, %s247
      %p249 = scmp.eq.s32.totalorder %s43, 0
      %p250 = por %p248, %p249
      %s252 = sadd.s32 %s251, 1
      %p255 = scmp.eq.s32.totalorder %s37, 3
      %p256 = scmp.ne.s32.totalorder %s251, %s253
      %p257 = scmp.eq.s32.totalorder %s37, 0
      %p258 = por %p256, %p257
      %p259 = scmp.ne.s32.totalorder %s251, %s253
      %p260 = scmp.eq.s32.totalorder %s42, 3
      %p261 = por %p259, %p260
      %p262 = scmp.ne.s32.totalorder %s253, %s254
      %p263 = scmp.eq.s32.totalorder %s42, 0
      %p264 = por %p262, %p263
      %p265 = scmp.ne.s32.totalorder %s253, %s254
      %p266 = scmp.eq.s32.totalorder %s43, 3
      %p267 = por %p265, %p266
      %p269 = scmp.ne.s32.totalorder %s254, %s268
      %p270 = scmp.eq.s32.totalorder %s43, 0
      %p271 = por %p269, %p270
      %s273 = sadd.s32 %s272, 1
      %p276 = scmp.eq.s32.totalorder %s37, 3
      %p277 = scmp.ne.s32.totalorder %s272, %s274
      %p278 = scmp.eq.s32.totalorder %s37, 0
      %p279 = por %p277, %p278
      %p280 = scmp.ne.s32.totalorder %s272, %s274
      %p281 = scmp.eq.s32.totalorder %s42, 3
      %p282 = por %p280, %p281
      %p283 = scmp.ne.s32.totalorder %s274, %s275
      %p284 = scmp.eq.s32.totalorder %s42, 0
      %p285 = por %p283, %p284
      %p286 = scmp.ne.s32.totalorder %s274, %s275
      %p287 = scmp.eq.s32.totalorder %s43, 3
      %p288 = por %p286, %p287
      %p290 = scmp.ne.s32.totalorder %s275, %s289
      %p291 = scmp.eq.s32.totalorder %s43, 0
      %p292 = por %p290, %p291
      %s294 = sadd.s32 %s293, 1
      %p297 = scmp.eq.s32.totalorder %s37, 3
      %p298 = scmp.ne.s32.totalorder %s293, %s295
      %p299 = scmp.eq.s32.totalorder %s37, 0
      %p300 = por %p298, %p299
      %p301 = scmp.ne.s32.totalorder %s293, %s295
      %p302 = scmp.eq.s32.totalorder %s42, 3
      %p303 = por %p301, %p302
      %p304 = scmp.ne.s32.totalorder %s295, %s296
      %p305 = scmp.eq.s32.totalorder %s42, 0
      %p306 = por %p304, %p305
      %p307 = scmp.ne.s32.totalorder %s295, %s296
      %p308 = scmp.eq.s32.totalorder %s43, 3
      %p309 = por %p307, %p308
      %p311 = scmp.ne.s32.totalorder %s296, %s310
      %p312 = scmp.eq.s32.totalorder %s43, 0
      %p313 = por %p311, %p312
      %s315 = sadd.s32 %s314, 1
      %p318 = scmp.eq.s32.totalorder %s37, 3
      %p319 = scmp.ne.s32.totalorder %s314, %s316
      %p320 = scmp.eq.s32.totalorder %s37, 0
      %p321 = por %p319, %p320
      %p322 = scmp.ne.s32.totalorder %s314, %s316
      %p323 = scmp.eq.s32.totalorder %s42, 3
      %p324 = por %p322, %p323
      %p325 = scmp.ne.s32.totalorder %s316, %s317
      %p326 = scmp.eq.s32.totalorder %s42, 0
      %p327 = por %p325, %p326
      %p328 = scmp.ne.s32.totalorder %s316, %s317
      %p329 = scmp.eq.s32.totalorder %s43, 3
      %p330 = por %p328, %p329
      %p332 = scmp.ne.s32.totalorder %s317, %s331
      %p333 = scmp.eq.s32.totalorder %s43, 0
      %p334 = por %p332, %p333
      %s336 = sadd.s32 %s335, 1
      %p339 = scmp.eq.s32.totalorder %s37, 3
      %p340 = scmp.ne.s32.totalorder %s335, %s337
      %p341 = scmp.eq.s32.totalorder %s37, 0
      %p342 = por %p340, %p341
      %p343 = scmp.ne.s32.totalorder %s335, %s337
      %p344 = scmp.eq.s32.totalorder %s42, 3
      %p345 = por %p343, %p344
      %p346 = scmp.ne.s32.totalorder %s337, %s338
      %p347 = scmp.eq.s32.totalorder %s42, 0
      %p348 = por %p346, %p347
      %p349 = scmp.ne.s32.totalorder %s337, %s338
      %p350 = scmp.eq.s32.totalorder %s43, 3
      %p351 = por %p349, %p350
      %p353 = scmp.ne.s32.totalorder %s338, %s352
      %p354 = scmp.eq.s32.totalorder %s43, 0
      %p355 = por %p353, %p354
      %s357 = sadd.s32 %s356, 1
      %p360 = scmp.eq.s32.totalorder %s37, 3
      %p361 = scmp.ne.s32.totalorder %s356, %s358
      %p362 = scmp.eq.s32.totalorder %s37, 0
      %p363 = por %p361, %p362
      %p364 = scmp.ne.s32.totalorder %s356, %s358
      %p365 = scmp.eq.s32.totalorder %s42, 3
      %p366 = por %p364, %p365
      %p367 = scmp.ne.s32.totalorder %s358, %s359
      %p368 = scmp.eq.s32.totalorder %s42, 0
      %p369 = por %p367, %p368
      %p370 = scmp.ne.s32.totalorder %s358, %s359
      %p371 = scmp.eq.s32.totalorder %s43, 3
      %p372 = por %p370, %p371
      %p374 = scmp.ne.s32.totalorder %s359, %s373
      %p375 = scmp.eq.s32.totalorder %s43, 0
      %p376 = por %p374, %p375
      %s377 = ssub.s32 %s45, %s52
      %p378 = scmp.eq.s32.totalorder %s377, 0
      %s380 = sadd.s32 %s379, 1
      %s381 = scalar_select %p378, %s379, %s380
      %p384 = pneg %p378
      %p385 = scmp.eq.s32.totalorder %s37, 3
      %p386 = por %p384, %p385
      %p387 = scmp.ne.s32.totalorder %s379, %s382
      %p388 = scmp.eq.s32.totalorder %s37, 0
      %p389 = por %p387, %p388
      %p390 = scmp.ne.s32.totalorder %s379, %s382
      %p391 = scmp.eq.s32.totalorder %s42, 3
      %p392 = por %p390, %p391
      %p393 = scmp.ne.s32.totalorder %s382, %s383
      %p394 = scmp.eq.s32.totalorder %s42, 0
      %p395 = por %p393, %p394
      %p396 = scmp.ne.s32.totalorder %s382, %s383
      %p397 = scmp.eq.s32.totalorder %s43, 3
      %p398 = por %p396, %p397
      %p400 = scmp.ne.s32.totalorder %s383, %s399
      %p401 = scmp.eq.s32.totalorder %s43, 0
      %p402 = por %p400, %p401
      %s403 = ssub.s32 %s45, %s52
      %p404 = scmp.eq.s32.totalorder %s403, 0
      %s406 = sadd.s32 %s405, 1
      %s407 = scalar_select %p404, %s405, %s406
      %p410 = pneg %p404
      %p411 = scmp.eq.s32.totalorder %s37, 3
      %p412 = por %p410, %p411
      %p413 = scmp.ne.s32.totalorder %s405, %s408
      %p414 = scmp.eq.s32.totalorder %s37, 0
      %p415 = por %p413, %p414
      %p416 = scmp.ne.s32.totalorder %s405, %s408
      %p417 = scmp.eq.s32.totalorder %s42, 3
      %p418 = por %p416, %p417
      %p419 = scmp.ne.s32.totalorder %s408, %s409
      %p420 = scmp.eq.s32.totalorder %s42, 0
      %p421 = por %p419, %p420
      %p422 = scmp.ne.s32.totalorder %s408, %s409
      %p423 = scmp.eq.s32.totalorder %s43, 3
      %p424 = por %p422, %p423
      %p426 = scmp.ne.s32.totalorder %s409, %s425
      %p427 = scmp.eq.s32.totalorder %s43, 0
      %p428 = por %p426, %p427
      %s429 = ssub.s32 %s45, %s52
      %p430 = scmp.eq.s32.totalorder %s429, 0
      %s432 = sadd.s32 %s431, 1
      %s433 = scalar_select %p430, %s431, %s432
      %p436 = pneg %p430
      %p437 = scmp.eq.s32.totalorder %s37, 3
      %p438 = por %p436, %p437
      %p439 = scmp.ne.s32.totalorder %s431, %s434
      %p440 = scmp.eq.s32.totalorder %s37, 0
      %p441 = por %p439, %p440
      %p442 = scmp.ne.s32.totalorder %s431, %s434
      %p443 = scmp.eq.s32.totalorder %s42, 3
      %p444 = por %p442, %p443
      %p445 = scmp.ne.s32.totalorder %s434, %s435
      %p446 = scmp.eq.s32.totalorder %s42, 0
      %p447 = por %p445, %p446
      %p448 = scmp.ne.s32.totalorder %s434, %s435
      %p449 = scmp.eq.s32.totalorder %s43, 3
      %p450 = por %p448, %p449
      %p452 = scmp.ne.s32.totalorder %s435, %s451
      %p453 = scmp.eq.s32.totalorder %s43, 0
      %p454 = por %p452, %p453
      %s455 = ssub.s32 %s45, %s52
      %p456 = scmp.eq.s32.totalorder %s455, 0
      %s458 = sadd.s32 %s457, 1
      %s459 = scalar_select %p456, %s457, %s458
      %p462 = pneg %p456
      %p463 = scmp.eq.s32.totalorder %s37, 3
      %p464 = por %p462, %p463
      %p465 = scmp.ne.s32.totalorder %s457, %s460
      %p466 = scmp.eq.s32.totalorder %s37, 0
      %p467 = por %p465, %p466
      %p468 = scmp.ne.s32.totalorder %s457, %s460
      %p469 = scmp.eq.s32.totalorder %s42, 3
      %p470 = por %p468, %p469
      %p471 = scmp.ne.s32.totalorder %s460, %s461
      %p472 = scmp.eq.s32.totalorder %s42, 0
      %p473 = por %p471, %p472
      %p474 = scmp.ne.s32.totalorder %s460, %s461
      %p475 = scmp.eq.s32.totalorder %s43, 3
      %p476 = por %p474, %p475
      %p478 = scmp.ne.s32.totalorder %s461, %s477
      %p479 = scmp.eq.s32.totalorder %s43, 0
      %p480 = por %p478, %p479
      %s481 = ssub.s32 %s45, %s52
      %p482 = scmp.eq.s32.totalorder %s481, 0
      %s484 = sadd.s32 %s483, 1
      %s485 = scalar_select %p482, %s483, %s484
      %p488 = pneg %p482
      %p489 = scmp.eq.s32.totalorder %s37, 3
      %p490 = por %p488, %p489
      %p491 = scmp.ne.s32.totalorder %s483, %s486
      %p492 = scmp.eq.s32.totalorder %s37, 0
      %p493 = por %p491, %p492
      %p494 = scmp.ne.s32.totalorder %s483, %s486
      %p495 = scmp.eq.s32.totalorder %s42, 3
      %p496 = por %p494, %p495
      %p497 = scmp.ne.s32.totalorder %s486, %s487
      %p498 = scmp.eq.s32.totalorder %s42, 0
      %p499 = por %p497, %p498
      %p500 = scmp.ne.s32.totalorder %s486, %s487
      %p501 = scmp.eq.s32.totalorder %s43, 3
      %p502 = por %p500, %p501
      %p504 = scmp.ne.s32.totalorder %s487, %s503
      %p505 = scmp.eq.s32.totalorder %s43, 0
      %p506 = por %p504, %p505
      %s508 = sadd.s32 %s507, 1
      %p511 = scmp.eq.s32.totalorder %s37, 3
      %p512 = scmp.ne.s32.totalorder %s507, %s509
      %p513 = scmp.eq.s32.totalorder %s37, 0
      %p514 = por %p512, %p513
      %p515 = scmp.ne.s32.totalorder %s507, %s509
      %p516 = scmp.eq.s32.totalorder %s42, 3
      %p517 = por %p515, %p516
      %p518 = scmp.ne.s32.totalorder %s509, %s510
      %p519 = scmp.eq.s32.totalorder %s42, 0
      %p520 = por %p518, %p519
      %p521 = scmp.ne.s32.totalorder %s509, %s510
      %p522 = scmp.eq.s32.totalorder %s43, 3
      %p523 = por %p521, %p522
      %p525 = scmp.ne.s32.totalorder %s510, %s524
      %p526 = scmp.eq.s32.totalorder %s43, 0
      %p527 = por %p525, %p526
      %s528 = ssub.s32 %s44, %s56
      %p529 = scmp.eq.s32.totalorder %s528, 0
      %s531 = sadd.s32 %s530, 1
      %s532 = scalar_select %p529, %s530, %s531
      %p535 = pneg %p529
      %p536 = scmp.eq.s32.totalorder %s37, 3
      %p537 = por %p535, %p536
      %p538 = scmp.ne.s32.totalorder %s530, %s533
      %p539 = scmp.eq.s32.totalorder %s37, 0
      %p540 = por %p538, %p539
      %p541 = scmp.ne.s32.totalorder %s530, %s533
      %p542 = scmp.eq.s32.totalorder %s42, 3
      %p543 = por %p541, %p542
      %p544 = scmp.ne.s32.totalorder %s533, %s534
      %p545 = scmp.eq.s32.totalorder %s42, 0
      %p546 = por %p544, %p545
      %p547 = scmp.ne.s32.totalorder %s533, %s534
      %p548 = scmp.eq.s32.totalorder %s43, 3
      %p549 = por %p547, %p548
      %p551 = scmp.ne.s32.totalorder %s534, %s550
      %p552 = scmp.eq.s32.totalorder %s43, 0
      %p553 = por %p551, %p552
      %p554 = scmp.le.s32.totalorder 1, %s37
      %p555 = scmp.lt.s32.totalorder %s37, 5
      %p556 = pnand %p554, %p555
      %p557 = pneg %p556
      // Predicated region
      $region9: #{tpu_custom_call.1} parent=5 // pred_check
        _
      $region10: #{tpu_custom_call.1} parent=5 // pred_check_branch
        %559 = sbr.rel (%p556) target = $region12
      $region11: #{tpu_custom_call.1} parent=5 // pred_region
        %s560 = ssub.s32 %s37, 1
        // Predicated region
        $region13: #{tpu_custom_call.1} parent=11 // pred_check
          %p561 = pneg %p96
        $region14: #{tpu_custom_call.1} parent=11 // pred_check_branch
          %563 = sbr.rel (%p561) target = $region16
        $region15: #{tpu_custom_call.1} parent=11 // pred_region
          %s565 = ssub.s32 128, 128
          %566 = vsyncadd [#allocation7], %s565
          %s568 = sshll.u32 [#allocation6], 4
          %s569 = int_to_ptr.vmem [resolvable:$true] %s568
          %571 = dma.hbm_to_vmem [thread:$0]  %s1, 128, %s569, [#allocation7]
        $region16: #{tpu_custom_call.1} parent=11 // pred_fallthru
          _
        // Predicated region
        $region17: #{tpu_custom_call.1} parent=11 // pred_check
          %p572 = pneg %p117
        $region18: #{tpu_custom_call.1} parent=11 // pred_check_branch
          %574 = sbr.rel (%p572) target = $region20
        $region19: #{tpu_custom_call.1} parent=11 // pred_region
          %s576 = ssub.s32 128, 128
          %577 = vsyncadd [#allocation7], %s576
          %s579 = sshll.u32 [#allocation8], 4
          %s580 = int_to_ptr.vmem [resolvable:$true] %s579
          %582 = dma.hbm_to_vmem [thread:$0]  %s2, 128, %s580, [#allocation7]
        $region20: #{tpu_custom_call.1} parent=11 // pred_fallthru
          _
        // Predicated region
        $region21: #{tpu_custom_call.1} parent=11 // pred_check
          %p583 = pneg %p138
        $region22: #{tpu_custom_call.1} parent=11 // pred_check_branch
          %585 = sbr.rel (%p583) target = $region24
        $region23: #{tpu_custom_call.1} parent=11 // pred_region
          _
        $region24: #{tpu_custom_call.1} parent=11 // pred_fallthru
          _
        // Predicated region
        $region25: #{tpu_custom_call.1} parent=11 // pred_check
          %p586 = pneg %p159
        $region26: #{tpu_custom_call.1} parent=11 // pred_check_branch
          %588 = sbr.rel (%p586) target = $region28
        $region27: #{tpu_custom_call.1} parent=11 // pred_region
          %s590 = ssub.s32 128, 128
          %591 = vsyncadd [#allocation10], %s590
          %s593 = sshll.u32 [#allocation9], 4
          %s594 = int_to_ptr.vmem [resolvable:$true] %s593
          %596 = dma.hbm_to_vmem [thread:$0]  %s4, 128, %s594, [#allocation10]
        $region28: #{tpu_custom_call.1} parent=11 // pred_fallthru
          _
        // Predicated region
        $region29: #{tpu_custom_call.1} parent=11 // pred_check
          %p597 = pneg %p180
        $region30: #{tpu_custom_call.1} parent=11 // pred_check_branch
          %599 = sbr.rel (%p597) target = $region32
        $region31: #{tpu_custom_call.1} parent=11 // pred_region
          _
        $region32: #{tpu_custom_call.1} parent=11 // pred_fallthru
          _
        // Predicated region
        $region33: #{tpu_custom_call.1} parent=11 // pred_check
          %p600 = pneg %p201
        $region34: #{tpu_custom_call.1} parent=11 // pred_check_branch
          %602 = sbr.rel (%p600) target = $region36
        $region35: #{tpu_custom_call.1} parent=11 // pred_region
          _
        $region36: #{tpu_custom_call.1} parent=11 // pred_fallthru
          _
        // Predicated region
        $region37: #{tpu_custom_call.1} parent=11 // pred_check
          %p603 = pneg %p222
        $region38: #{tpu_custom_call.1} parent=11 // pred_check_branch
          %605 = sbr.rel (%p603) target = $region40
        $region39: #{tpu_custom_call.1} parent=11 // pred_region
          %s607 = ssub.s32 1024, 1024
          %608 = vsyncadd [#allocation10], %s607
          %s609 = sshll.u32 [#allocation11], 4
          %s610 = int_to_ptr.vmem [resolvable:$true] %s609
          %615 = dma.hbm_to_vmem [thread:$0]  %s7, 1024, %s610, [#allocation10], 64, 64, 4
        $region40: #{tpu_custom_call.1} parent=11 // pred_fallthru
          _
        // Predicated region
        $region41: #{tpu_custom_call.1} parent=11 // pred_check
          %p616 = pneg %p243
        $region42: #{tpu_custom_call.1} parent=11 // pred_check_branch
          %618 = sbr.rel (%p616) target = $region44
        $region43: #{tpu_custom_call.1} parent=11 // pred_region
          _
        $region44: #{tpu_custom_call.1} parent=11 // pred_fallthru
          _
        // Predicated region
        $region45: #{tpu_custom_call.1} parent=11 // pred_check
          %p619 = pneg %p264
        $region46: #{tpu_custom_call.1} parent=11 // pred_check_branch
          %621 = sbr.rel (%p619) target = $region48
        $region47: #{tpu_custom_call.1} parent=11 // pred_region
          %s623 = ssub.s32 1024, 1024
          %624 = vsyncadd [#allocation13], %s623
          %s625 = sshll.u32 [#allocation12], 4
          %s626 = int_to_ptr.vmem [resolvable:$true] %s625
          %631 = dma.hbm_to_vmem [thread:$0]  %s9, 1024, %s626, [#allocation13], 64, 64, 4
        $region48: #{tpu_custom_call.1} parent=11 // pred_fallthru
          _
        // Predicated region
        $region49: #{tpu_custom_call.1} parent=11 // pred_check
          %p632 = pneg %p285
        $region50: #{tpu_custom_call.1} parent=11 // pred_check_branch
          %634 = sbr.rel (%p632) target = $region52
        $region51: #{tpu_custom_call.1} parent=11 // pred_region
          _
        $region52: #{tpu_custom_call.1} parent=11 // pred_fallthru
          _
        // Predicated region
        $region53: #{tpu_custom_call.1} parent=11 // pred_check
          %p635 = pneg %p306
        $region54: #{tpu_custom_call.1} parent=11 // pred_check_branch
          %637 = sbr.rel (%p635) target = $region56
        $region55: #{tpu_custom_call.1} parent=11 // pred_region
          %s639 = ssub.s32 1024, 1024
          %640 = vsyncadd [#allocation13], %s639
          %s641 = sshll.u32 [#allocation14], 4
          %s642 = int_to_ptr.vmem [resolvable:$true] %s641
          %647 = dma.hbm_to_vmem [thread:$0]  %s11, 1024, %s642, [#allocation13], 64, 64, 4
        $region56: #{tpu_custom_call.1} parent=11 // pred_fallthru
          _
        // Predicated region
        $region57: #{tpu_custom_call.1} parent=11 // pred_check
          %p648 = pneg %p327
        $region58: #{tpu_custom_call.1} parent=11 // pred_check_branch
          %650 = sbr.rel (%p648) target = $region60
        $region59: #{tpu_custom_call.1} parent=11 // pred_region
          _
        $region60: #{tpu_custom_call.1} parent=11 // pred_fallthru
          _
        // Predicated region
        $region61: #{tpu_custom_call.1} parent=11 // pred_check
          %p651 = pneg %p348
        $region62: #{tpu_custom_call.1} parent=11 // pred_check_branch
          %653 = sbr.rel (%p651) target = $region64
        $region63: #{tpu_custom_call.1} parent=11 // pred_region
          %s655 = ssub.s32 1024, 1024
          %656 = vsyncadd [#allocation16], %s655
          %s657 = sshll.u32 [#allocation15], 4
          %s658 = int_to_ptr.vmem [resolvable:$true] %s657
          %663 = dma.hbm_to_vmem [thread:$0]  %s13, 1024, %s658, [#allocation16], 64, 64, 4
        $region64: #{tpu_custom_call.1} parent=11 // pred_fallthru
          _
        // Predicated region
        $region65: #{tpu_custom_call.1} parent=11 // pred_check
          %p664 = pneg %p369
        $region66: #{tpu_custom_call.1} parent=11 // pred_check_branch
          %666 = sbr.rel (%p664) target = $region68
        $region67: #{tpu_custom_call.1} parent=11 // pred_region
          _
        $region68: #{tpu_custom_call.1} parent=11 // pred_fallthru
          _
        // Predicated region
        $region69: #{tpu_custom_call.1} parent=11 // pred_check
          %p667 = pneg %p520
        $region70: #{tpu_custom_call.1} parent=11 // pred_check_branch
          %669 = sbr.rel (%p667) target = $region72
        $region71: #{tpu_custom_call.1} parent=11 // pred_region
          _
        $region72: #{tpu_custom_call.1} parent=11 // pred_fallthru
          _
      $region12: #{tpu_custom_call.1} parent=5 // pred_fallthru
        _
      %p670 = scmp.lt.s32.totalorder %s37, 4
      // Predicated region
      $region73: #{tpu_custom_call.1} parent=5 // pred_check
        %p671 = pneg %p670
      $region74: #{tpu_custom_call.1} parent=5 // pred_check_branch
        %673 = sbr.rel (%p671) target = $region76
      $region75: #{tpu_custom_call.1} parent=5 // pred_region
        // Predicated region
        $region77: #{tpu_custom_call.1} parent=75 // pred_check
          %p674 = pneg %p69
        $region78: #{tpu_custom_call.1} parent=75 // pred_check_branch
          %676 = sbr.rel (%p674) target = $region80
        $region79: #{tpu_custom_call.1} parent=75 // pred_region
          %s677 = sand.u32 %s37, 1
          %s678 = scalar_lea.sflag [#allocation4], %s677
          %s679 = sand.u32 %s59, 1
          %s680 = smul.addr %s679, 8
          %s681 = scalar_lea.vmem [#allocation3], %s680
          %s683 = ssub.s32 128, 128
          %684 = vsyncadd %s678, %s683
          %s685 = smul.addr %s44, 128
          %s686 = scalar_lea.hbm %s0, %s685
          %s688 = sshll.u32 %s681, 4
          %s689 = int_to_ptr.vmem [resolvable:$true] %s688
          %691 = dma.hbm_to_vmem [thread:$0]  %s686, 128, %s689, %s678
        $region80: #{tpu_custom_call.1} parent=75 // pred_fallthru
          _
        // Predicated region
        $region81: #{tpu_custom_call.1} parent=75 // pred_check
          %p692 = pneg %p389
        $region82: #{tpu_custom_call.1} parent=75 // pred_check_branch
          %694 = sbr.rel (%p692) target = $region84
        $region83: #{tpu_custom_call.1} parent=75 // pred_region
          %s695 = sand.u32 %s37, 1
          %s696 = scalar_lea.sflag [#allocation4], %s695
          %s697 = sand.u32 %s379, 1
          %s698 = smul.addr %s697, 128
          %s699 = scalar_lea.vmem [#allocation17], %s698
          %s700 = smul.u32 2, %s45
          %s702 = ssub.s32 2048, 2048
          %703 = vsyncadd %s696, %s702
          %s704 = smul.addr %s700, 64
          %s705 = scalar_lea.hbm %s15, %s704
          %s706 = sshll.u32 %s699, 4
          %s707 = int_to_ptr.vmem [resolvable:$true] %s706
          %712 = dma.hbm_to_vmem [thread:$0]  %s705, 2048, %s707, %s696, 256, 128, 8
        $region84: #{tpu_custom_call.1} parent=75 // pred_fallthru
          _
        // Predicated region
        $region85: #{tpu_custom_call.1} parent=75 // pred_check
          %p713 = pneg %p415
        $region86: #{tpu_custom_call.1} parent=75 // pred_check_branch
          %715 = sbr.rel (%p713) target = $region88
        $region87: #{tpu_custom_call.1} parent=75 // pred_region
          %s716 = smul.u32 2, %s45
          %p717 = scmp.lt.s32.totalorder %s716, 3
          %s718 = scalar_select %p717, %s716, 3
          %s719 = scalar_lea.vmem %s16, %s718
          %s720 = smul.u32 2, %s45
        $region88: #{tpu_custom_call.1} parent=75 // pred_fallthru
          _
        // Predicated region
        $region89: #{tpu_custom_call.1} parent=75 // pred_check
          %p721 = pneg %p441
        $region90: #{tpu_custom_call.1} parent=75 // pred_check_branch
          %723 = sbr.rel (%p721) target = $region92
        $region91: #{tpu_custom_call.1} parent=75 // pred_region
          %s724 = sand.u32 %s37, 1
          %s725 = scalar_lea.sflag [#allocation4], %s724
          %s726 = sand.u32 %s431, 1
          %s727 = smul.addr %s726, 128
          %s728 = scalar_lea.vmem [#allocation18], %s727
          %s729 = smul.u32 2, %s45
          %s731 = ssub.s32 2048, 2048
          %732 = vsyncadd %s725, %s731
          %s733 = smul.addr %s729, 64
          %s734 = scalar_lea.hbm %s17, %s733
          %s735 = sshll.u32 %s728, 4
          %s736 = int_to_ptr.vmem [resolvable:$true] %s735
          %741 = dma.hbm_to_vmem [thread:$0]  %s734, 2048, %s736, %s725, 256, 128, 8
        $region92: #{tpu_custom_call.1} parent=75 // pred_fallthru
          _
        // Predicated region
        $region93: #{tpu_custom_call.1} parent=75 // pred_check
          %p742 = pneg %p467
        $region94: #{tpu_custom_call.1} parent=75 // pred_check_branch
          %744 = sbr.rel (%p742) target = $region96
        $region95: #{tpu_custom_call.1} parent=75 // pred_region
          %s745 = smul.u32 2, %s45
          %p746 = scmp.lt.s32.totalorder %s745, 3
          %s747 = scalar_select %p746, %s745, 3
          %s748 = scalar_lea.vmem %s18, %s747
          %s749 = smul.u32 2, %s45
        $region96: #{tpu_custom_call.1} parent=75 // pred_fallthru
          _
        // Predicated region
        $region97: #{tpu_custom_call.1} parent=75 // pred_check
          %p750 = pneg %p493
        $region98: #{tpu_custom_call.1} parent=75 // pred_check_branch
          %752 = sbr.rel (%p750) target = $region100
        $region99: #{tpu_custom_call.1} parent=75 // pred_region
          %s753 = sand.u32 %s37, 1
          %s754 = scalar_lea.sflag [#allocation4], %s753
          %s755 = sand.u32 %s483, 1
          %s756 = smul.addr %s755, 128
          %s757 = scalar_lea.vmem [#allocation19], %s756
          %s758 = smul.u32 32, %s45
          %s760 = ssub.s32 2048, 2048
          %761 = vsyncadd %s754, %s760
          %s762 = smul.addr %s758, 64
          %s763 = scalar_lea.hbm %s19, %s762
          %s764 = sshll.u32 %s757, 4
          %s765 = int_to_ptr.vmem [resolvable:$true] %s764
          %770 = dma.hbm_to_vmem [thread:$0]  %s763, 2048, %s765, %s754, 64, 64, 4
        $region100: #{tpu_custom_call.1} parent=75 // pred_fallthru
          _
      $region76: #{tpu_custom_call.1} parent=5 // pred_fallthru
        _
      %p771 = scmp.le.s32.totalorder 1, %s37
      %p772 = scmp.lt.s32.totalorder %s37, 5
      %p773 = pnand %p771, %p772
      %p774 = pneg %p773
      // Predicated region
      $region101: #{tpu_custom_call.1} parent=5 // pred_check
        _
      $region102: #{tpu_custom_call.1} parent=5 // pred_check_branch
        %776 = sbr.rel (%p773) target = $region104
      $region103: #{tpu_custom_call.1} parent=5 // pred_region
        %s777 = ssub.s32 %s37, 1
        %s778 = sand.u32 %s42, 1
        %s779 = scalar_lea.sflag [#allocation4], %s778
        %s780 = sand.u32 %s62, 1
        %s781 = smul.addr %s780, 8
        %s782 = scalar_lea.vmem [#allocation3], %s781
        // Predicated region
        $region105: #{tpu_custom_call.1} parent=103 // pred_check
          %p783 = pneg %p75
        $region106: #{tpu_custom_call.1} parent=103 // pred_check_branch
          %785 = sbr.rel (%p783) target = $region108
        $region107: #{tpu_custom_call.1} parent=103 // pred_region
          %786 = dma.done %s779, 128
        $region108: #{tpu_custom_call.1} parent=103 // pred_fallthru
          _
        // Predicated region
        $region109: #{tpu_custom_call.1} parent=103 // pred_check
          %p787 = pneg %p96
        $region110: #{tpu_custom_call.1} parent=103 // pred_check_branch
          %789 = sbr.rel (%p787) target = $region112
        $region111: #{tpu_custom_call.1} parent=103 // pred_region
          %790 = dma.done [#allocation7], 128
        $region112: #{tpu_custom_call.1} parent=103 // pred_fallthru
          _
        // Predicated region
        $region113: #{tpu_custom_call.1} parent=103 // pred_check
          %p791 = pneg %p117
        $region114: #{tpu_custom_call.1} parent=103 // pred_check_branch
          %793 = sbr.rel (%p791) target = $region116
        $region115: #{tpu_custom_call.1} parent=103 // pred_region
          %794 = dma.done [#allocation7], 128
        $region116: #{tpu_custom_call.1} parent=103 // pred_fallthru
          _
        // Predicated region
        $region117: #{tpu_custom_call.1} parent=103 // pred_check
          %p795 = pneg %p159
        $region118: #{tpu_custom_call.1} parent=103 // pred_check_branch
          %797 = sbr.rel (%p795) target = $region120
        $region119: #{tpu_custom_call.1} parent=103 // pred_region
          %798 = dma.done [#allocation10], 128
        $region120: #{tpu_custom_call.1} parent=103 // pred_fallthru
          _
        // Predicated region
        $region121: #{tpu_custom_call.1} parent=103 // pred_check
          %p799 = pneg %p222
        $region122: #{tpu_custom_call.1} parent=103 // pred_check_branch
          %801 = sbr.rel (%p799) target = $region124
        $region123: #{tpu_custom_call.1} parent=103 // pred_region
          %802 = dma.done [#allocation10], 1024
        $region124: #{tpu_custom_call.1} parent=103 // pred_fallthru
          _
        // Predicated region
        $region125: #{tpu_custom_call.1} parent=103 // pred_check
          %p803 = pneg %p264
        $region126: #{tpu_custom_call.1} parent=103 // pred_check_branch
          %805 = sbr.rel (%p803) target = $region128
        $region127: #{tpu_custom_call.1} parent=103 // pred_region
          %806 = dma.done [#allocation13], 1024
        $region128: #{tpu_custom_call.1} parent=103 // pred_fallthru
          _
        // Predicated region
        $region129: #{tpu_custom_call.1} parent=103 // pred_check
          %p807 = pneg %p306
        $region130: #{tpu_custom_call.1} parent=103 // pred_check_branch
          %809 = sbr.rel (%p807) target = $region132
        $region131: #{tpu_custom_call.1} parent=103 // pred_region
          %810 = dma.done [#allocation13], 1024
        $region132: #{tpu_custom_call.1} parent=103 // pred_fallthru
          _
        // Predicated region
        $region133: #{tpu_custom_call.1} parent=103 // pred_check
          %p811 = pneg %p348
        $region134: #{tpu_custom_call.1} parent=103 // pred_check_branch
          %813 = sbr.rel (%p811) target = $region136
        $region135: #{tpu_custom_call.1} parent=103 // pred_region
          %814 = dma.done [#allocation16], 1024
        $region136: #{tpu_custom_call.1} parent=103 // pred_fallthru
          _
        %s815 = sand.u32 %s42, 1
        %s816 = scalar_lea.sflag [#allocation4], %s815
        %s817 = sand.u32 %s382, 1
        %s818 = smul.addr %s817, 128
        %s819 = scalar_lea.vmem [#allocation17], %s818
        // Predicated region
        $region137: #{tpu_custom_call.1} parent=103 // pred_check
          %p820 = pneg %p395
        $region138: #{tpu_custom_call.1} parent=103 // pred_check_branch
          %822 = sbr.rel (%p820) target = $region140
        $region139: #{tpu_custom_call.1} parent=103 // pred_region
          %823 = dma.done %s816, 2048
        $region140: #{tpu_custom_call.1} parent=103 // pred_fallthru
          _
        %s824 = sand.u32 %s42, 1
        %s825 = scalar_lea.sflag [#allocation4], %s824
        %s826 = sand.u32 %s434, 1
        %s827 = smul.addr %s826, 128
        %s828 = scalar_lea.vmem [#allocation18], %s827
        // Predicated region
        $region141: #{tpu_custom_call.1} parent=103 // pred_check
          %p829 = pneg %p447
        $region142: #{tpu_custom_call.1} parent=103 // pred_check_branch
          %831 = sbr.rel (%p829) target = $region144
        $region143: #{tpu_custom_call.1} parent=103 // pred_region
          %832 = dma.done %s825, 2048
        $region144: #{tpu_custom_call.1} parent=103 // pred_fallthru
          _
        %s833 = sand.u32 %s42, 1
        %s834 = scalar_lea.sflag [#allocation4], %s833
        %s835 = sand.u32 %s486, 1
        %s836 = smul.addr %s835, 128
        %s837 = scalar_lea.vmem [#allocation19], %s836
        // Predicated region
        $region145: #{tpu_custom_call.1} parent=103 // pred_check
          %p838 = pneg %p499
        $region146: #{tpu_custom_call.1} parent=103 // pred_check_branch
          %840 = sbr.rel (%p838) target = $region148
        $region147: #{tpu_custom_call.1} parent=103 // pred_region
          %841 = dma.done %s834, 2048
        $region148: #{tpu_custom_call.1} parent=103 // pred_fallthru
          _
        %s842 = sand.u32 %s42, 1
        %s843 = scalar_lea.sflag [#allocation4], %s842
        %s844 = sand.u32 %s62, 1
        %s845 = smul.addr %s844, 8
        %s846 = scalar_lea.vmem [#allocation3], %s845
        %p847 = pneg %p75
        %p848 = pneg %p72
        %p849 = pneg %p96
        %p850 = pneg %p93
        %p851 = pneg %p117
        %p852 = pneg %p114
        %p853 = pneg %p138
        %p854 = pneg %p135
        %p855 = pneg %p159
        %p856 = pneg %p156
        %p857 = pneg %p180
        %p858 = pneg %p177
        %p859 = pneg %p201
        %p860 = pneg %p198
        %p861 = pneg %p222
        %p862 = pneg %p219
        %p863 = pneg %p243
        %p864 = pneg %p240
        %p865 = pneg %p264
        %p866 = pneg %p261
        %p867 = pneg %p285
        %p868 = pneg %p282
        %p869 = pneg %p306
        %p870 = pneg %p303
        %p871 = pneg %p327
        %p872 = pneg %p324
        %p873 = pneg %p348
        %p874 = pneg %p345
        %p875 = pneg %p369
        %p876 = pneg %p366
        %s877 = sand.u32 %s42, 1
        %s878 = scalar_lea.sflag [#allocation4], %s877
        %s879 = sand.u32 %s382, 1
        %s880 = smul.addr %s879, 128
        %s881 = scalar_lea.vmem [#allocation17], %s880
        %p882 = pneg %p395
        %p883 = pneg %p392
        %s884 = smul.u32 2, %s47
        %p885 = scmp.lt.s32.totalorder %s884, 3
        %s886 = scalar_select %p885, %s884, 3
        %s887 = scalar_lea.vmem %s16, %s886
        %p888 = pneg %p421
        %p889 = pneg %p418
        %s890 = sand.u32 %s42, 1
        %s891 = scalar_lea.sflag [#allocation4], %s890
        %s892 = sand.u32 %s434, 1
        %s893 = smul.addr %s892, 128
        %s894 = scalar_lea.vmem [#allocation18], %s893
        %p895 = pneg %p447
        %p896 = pneg %p444
        %s897 = smul.u32 2, %s47
        %p898 = scmp.lt.s32.totalorder %s897, 3
        %s899 = scalar_select %p898, %s897, 3
        %s900 = scalar_lea.vmem %s18, %s899
        %p901 = pneg %p473
        %p902 = pneg %p470
        %s903 = sand.u32 %s42, 1
        %s904 = scalar_lea.sflag [#allocation4], %s903
        %s905 = sand.u32 %s486, 1
        %s906 = smul.addr %s905, 128
        %s907 = scalar_lea.vmem [#allocation19], %s906
        %p908 = pneg %p499
        %p909 = pneg %p496
        %p910 = pneg %p520
        %p911 = pneg %p517
        %p912 = pneg %p546
        %p913 = pneg %p543
        %s914 = sand.u32 %s533, 1
        %s915 = scalar_lea.sflag [#allocation5], %s914
        %s916 = sand.u32 %s533, 1
        %s917 = smul.addr %s916, 8
        %s918 = scalar_lea.vmem [#allocation20], %s917
        %s919 = smul.u32 2, %s47
        %s920 = smul.u32 2, %s47
        %p921 = scmp.lt.s32.totalorder %s920, 3
        %s922 = scalar_select %p921, %s920, 3
        %s923 = scalar_lea.vmem %s16, %s922
        %s924 = smul.u32 2, %s47
        %s925 = smul.u32 2, %s47
        %s926 = smul.u32 2, %s47
        %p927 = scmp.lt.s32.totalorder %s926, 3
        %s928 = scalar_select %p927, %s926, 3
        %s929 = scalar_lea.vmem %s18, %s928
        %s930 = smul.u32 2, %s47
        %s931 = smul.u32 32, %s47
        %p933 = scmp.eq.s32.totalorder %s47, 0
        // Predicated region
        $region149: #{tpu_custom_call.1} parent=103 // pred_check
          %p934 = pneg %p933
        $region150: #{tpu_custom_call.1} parent=103 // pred_check_branch
          %936 = sbr.rel (%p934) target = $region152
        $region151: #{tpu_custom_call.1} parent=103 // pred_region
          %v937 = vld [vmem:[%s782] sm:$0xff]
          %v938 = vld [vmem:[%s5] sm:$0x1]
          %v939 = vmul.f32 %v937, %v937
          %940 = vadd.xlane.f32.xlu0 %v939
          %v941 = vpop.xlane.xlu0 %940
          %v942 = vrcp.pop 128.0
          %v943 = vmul.f32 %v941, %v942
          %v944 = vadd.f32 %v943, 1e-05
          %v945 = vrsqrt.pop %v944
          %v946 = vmul.f32 %v937, %v945
          %v948 = vlaneseq
          %v949 = vshrl.u32 %v948, 7
          %v950 = vsub.s32 0, %v949
          %v951 = vrot.slane %v938, %v950
          %v953 = vmul.f32 %v951, %v946
          %v954 = vpack.c.bf16 %v953, %v953
          %v955 = vld [vmem:[#allocation11] sm:$0xf]
          %v956 = vld [vmem:[#allocation11 + $0x4] sm:$0xf]
          %v957 = vld [vmem:[#allocation11 + $0x8] sm:$0xf]
          %v958 = vld [vmem:[#allocation11 + $0xc] sm:$0xf]
          %v959 = vld [vmem:[#allocation11 + $0x10] sm:$0xf]
          %v960 = vld [vmem:[#allocation11 + $0x14] sm:$0xf]
          %v961 = vld [vmem:[#allocation11 + $0x18] sm:$0xf]
          %v962 = vld [vmem:[#allocation11 + $0x1c] sm:$0xf]
          %v963 = vld [vmem:[#allocation11 + $0x20] sm:$0xf]
          %v964 = vld [vmem:[#allocation11 + $0x24] sm:$0xf]
          %v965 = vld [vmem:[#allocation11 + $0x28] sm:$0xf]
          %v966 = vld [vmem:[#allocation11 + $0x2c] sm:$0xf]
          %v967 = vld [vmem:[#allocation11 + $0x30] sm:$0xf]
          %v968 = vld [vmem:[#allocation11 + $0x34] sm:$0xf]
          %v969 = vld [vmem:[#allocation11 + $0x38] sm:$0xf]
          %v970 = vld [vmem:[#allocation11 + $0x3c] sm:$0xf]
          %v971 = vld [vmem:[%s8] sm:$0x1]
          %v973 = vlaneseq
          %v974 = vshrl.u32 %v973, 7
          %v975 = vsub.s32 0, %v974
          %v976 = vrot.slane %v971, %v975
          %v994 = vunpack.c.l.b16 %v955
          %v995 = vunpack.c.l.b16 %v956
          %v996 = vunpack.c.l.b16 %v957
          %v997 = vunpack.c.l.b16 %v958
          %v998 = vunpack.c.l.b16 %v959
          %v999 = vunpack.c.l.b16 %v960
          %v1000 = vunpack.c.l.b16 %v961
          %v1001 = vunpack.c.l.b16 %v962
          %v1002 = vunpack.c.l.b16 %v963
          %v1003 = vunpack.c.l.b16 %v964
          %v1004 = vunpack.c.l.b16 %v965
          %v1005 = vunpack.c.l.b16 %v966
          %v1006 = vunpack.c.l.b16 %v967
          %v1007 = vunpack.c.l.b16 %v968
          %v1008 = vunpack.c.l.b16 %v969
          %v1009 = vunpack.c.l.b16 %v970
          %v1010 = vpack.c.b16 %v995, %v994
          %v1011 = vpack.c.b16 %v997, %v996
          %v1012 = vpack.c.b16 %v999, %v998
          %v1013 = vpack.c.b16 %v1001, %v1000
          %v1014 = vpack.c.b16 %v1003, %v1002
          %v1015 = vpack.c.b16 %v1005, %v1004
          %v1016 = vpack.c.b16 %v1007, %v1006
          %v1017 = vpack.c.b16 %v1009, %v1008
          %1026 = vmatprep.subr.bf16.mxu0 0
          %1027 = vmatpush1.bf16.msra.mxu0 %v1010
          %1028 = vmatprep.subr.bf16.mxu0 0
          %1029 = vmatpush1.bf16.msra.mxu0 %v1011
          %1030 = vmatprep.subr.bf16.mxu0 0
          %1031 = vmatpush1.bf16.msra.mxu0 %v1012
          %1032 = vmatprep.subr.bf16.mxu0 0
          %1033 = vmatpush1.bf16.msra.mxu0 %v1013
          %1034 = vmatprep.subr.bf16.mxu0 0
          %1035 = vmatpush1.bf16.msra.mxu0 %v1014
          %1036 = vmatprep.subr.bf16.mxu0 0
          %1037 = vmatpush1.bf16.msra.mxu0 %v1015
          %1038 = vmatprep.subr.bf16.mxu0 0
          %1039 = vmatpush1.bf16.msra.mxu0 %v1016
          %1040 = vmatprep.subr.bf16.mxu0 0
          %1041 = vmatpush1.bf16.msra.mxu0 %v1017
          %1042 = vmatprep.subr.bf16.mxu0 0
          %1043 = vmatpush1.bf16.msra.mxu0 0
          %1044 = vmatprep.subr.bf16.mxu0 0
          %1045 = vmatpush1.bf16.msra.mxu0 0
          %1046 = vmatprep.subr.bf16.mxu0 0
          %1047 = vmatpush1.bf16.msra.mxu0 0
          %1048 = vmatprep.subr.bf16.mxu0 0
          %1049 = vmatpush1.bf16.msra.mxu0 0
          %1050 = vmatprep.subr.bf16.mxu0 0
          %1051 = vmatpush1.bf16.msra.mxu0 0
          %1052 = vmatprep.subr.bf16.mxu0 0
          %1053 = vmatpush1.bf16.msra.mxu0 0
          %1054 = vmatprep.subr.bf16.mxu0 0
          %1055 = vmatpush1.bf16.msra.mxu0 0
          %1056 = vmatprep.subr.bf16.mxu0 0
          %1057 = vmatpush1.bf16.msra.mxu0 0
          %1058 = vmatprep.mubr.bf16.mxu0 0
          %1059 = vmatmul.mubr.bf16.gmra.mrb[0].mxu0 %v954
          %v1060 = vpop.f32.mrb[0].mxu0
          %v1061 = vadd.f32 %v976, %v1060
          %v1062 = vpop.f32.mrb[0].mxu0
          %v1063 = vpop.f32.mrb[0].mxu0
          %v1064 = vpop.f32.mrb[0].mxu0
          %1065 = vdwg.mxu0
          %v1066 = vld [vmem:[#allocation12] sm:$0xf]
          %v1067 = vld [vmem:[#allocation12 + $0x4] sm:$0xf]
          %v1068 = vld [vmem:[#allocation12 + $0x8] sm:$0xf]
          %v1069 = vld [vmem:[#allocation12 + $0xc] sm:$0xf]
          %v1070 = vld [vmem:[#allocation12 + $0x10] sm:$0xf]
          %v1071 = vld [vmem:[#allocation12 + $0x14] sm:$0xf]
          %v1072 = vld [vmem:[#allocation12 + $0x18] sm:$0xf]
          %v1073 = vld [vmem:[#allocation12 + $0x1c] sm:$0xf]
          %v1074 = vld [vmem:[#allocation12 + $0x20] sm:$0xf]
          %v1075 = vld [vmem:[#allocation12 + $0x24] sm:$0xf]
          %v1076 = vld [vmem:[#allocation12 + $0x28] sm:$0xf]
          %v1077 = vld [vmem:[#allocation12 + $0x2c] sm:$0xf]
          %v1078 = vld [vmem:[#allocation12 + $0x30] sm:$0xf]
          %v1079 = vld [vmem:[#allocation12 + $0x34] sm:$0xf]
          %v1080 = vld [vmem:[#allocation12 + $0x38] sm:$0xf]
          %v1081 = vld [vmem:[#allocation12 + $0x3c] sm:$0xf]
          %v1082 = vld [vmem:[%s10] sm:$0x1]
          %v1084 = vlaneseq
          %v1085 = vshrl.u32 %v1084, 7
          %v1086 = vsub.s32 0, %v1085
          %v1087 = vrot.slane %v1082, %v1086
          %v1105 = vunpack.c.l.b16 %v1066
          %v1106 = vunpack.c.l.b16 %v1067
          %v1107 = vunpack.c.l.b16 %v1068
          %v1108 = vunpack.c.l.b16 %v1069
          %v1109 = vunpack.c.l.b16 %v1070
          %v1110 = vunpack.c.l.b16 %v1071
          %v1111 = vunpack.c.l.b16 %v1072
          %v1112 = vunpack.c.l.b16 %v1073
          %v1113 = vunpack.c.l.b16 %v1074
          %v1114 = vunpack.c.l.b16 %v1075
          %v1115 = vunpack.c.l.b16 %v1076
          %v1116 = vunpack.c.l.b16 %v1077
          %v1117 = vunpack.c.l.b16 %v1078
          %v1118 = vunpack.c.l.b16 %v1079
          %v1119 = vunpack.c.l.b16 %v1080
          %v1120 = vunpack.c.l.b16 %v1081
          %v1121 = vpack.c.b16 %v1106, %v1105
          %v1122 = vpack.c.b16 %v1108, %v1107
          %v1123 = vpack.c.b16 %v1110, %v1109
          %v1124 = vpack.c.b16 %v1112, %v1111
          %v1125 = vpack.c.b16 %v1114, %v1113
          %v1126 = vpack.c.b16 %v1116, %v1115
          %v1127 = vpack.c.b16 %v1118, %v1117
          %v1128 = vpack.c.b16 %v1120, %v1119
          %1137 = vmatprep.subr.bf16.mxu0 0
          %1138 = vmatpush1.bf16.msra.mxu0 %v1121
          %1139 = vmatprep.subr.bf16.mxu0 0
          %1140 = vmatpush1.bf16.msra.mxu0 %v1122
          %1141 = vmatprep.subr.bf16.mxu0 0
          %1142 = vmatpush1.bf16.msra.mxu0 %v1123
          %1143 = vmatprep.subr.bf16.mxu0 0
          %1144 = vmatpush1.bf16.msra.mxu0 %v1124
          %1145 = vmatprep.subr.bf16.mxu0 0
          %1146 = vmatpush1.bf16.msra.mxu0 %v1125
          %1147 = vmatprep.subr.bf16.mxu0 0
          %1148 = vmatpush1.bf16.msra.mxu0 %v1126
          %1149 = vmatprep.subr.bf16.mxu0 0
          %1150 = vmatpush1.bf16.msra.mxu0 %v1127
          %1151 = vmatprep.subr.bf16.mxu0 0
          %1152 = vmatpush1.bf16.msra.mxu0 %v1128
          %1153 = vmatprep.subr.bf16.mxu0 0
          %1154 = vmatpush1.bf16.msra.mxu0 0
          %1155 = vmatprep.subr.bf16.mxu0 0
          %1156 = vmatpush1.bf16.msra.mxu0 0
          %1157 = vmatprep.subr.bf16.mxu0 0
          %1158 = vmatpush1.bf16.msra.mxu0 0
          %1159 = vmatprep.subr.bf16.mxu0 0
          %1160 = vmatpush1.bf16.msra.mxu0 0
          %1161 = vmatprep.subr.bf16.mxu0 0
          %1162 = vmatpush1.bf16.msra.mxu0 0
          %1163 = vmatprep.subr.bf16.mxu0 0
          %1164 = vmatpush1.bf16.msra.mxu0 0
          %1165 = vmatprep.subr.bf16.mxu0 0
          %1166 = vmatpush1.bf16.msra.mxu0 0
          %1167 = vmatprep.subr.bf16.mxu0 0
          %1168 = vmatpush1.bf16.msra.mxu0 0
          %1169 = vmatprep.mubr.bf16.mxu0 0
          %1170 = vmatmul.mubr.bf16.gmra.mrb[0].mxu0 %v954
          %v1171 = vpop.f32.mrb[0].mxu0
          %v1172 = vadd.f32 %v1087, %v1171
          %v1173 = vpop.f32.mrb[0].mxu0
          %v1174 = vpop.f32.mrb[0].mxu0
          %v1175 = vpop.f32.mrb[0].mxu0
          %1176 = vdwg.mxu0
          %v1177 = vld [vmem:[#allocation14] sm:$0xf]
          %v1178 = vld [vmem:[#allocation14 + $0x4] sm:$0xf]
          %v1179 = vld [vmem:[#allocation14 + $0x8] sm:$0xf]
          %v1180 = vld [vmem:[#allocation14 + $0xc] sm:$0xf]
          %v1181 = vld [vmem:[#allocation14 + $0x10] sm:$0xf]
          %v1182 = vld [vmem:[#allocation14 + $0x14] sm:$0xf]
          %v1183 = vld [vmem:[#allocation14 + $0x18] sm:$0xf]
          %v1184 = vld [vmem:[#allocation14 + $0x1c] sm:$0xf]
          %v1185 = vld [vmem:[#allocation14 + $0x20] sm:$0xf]
          %v1186 = vld [vmem:[#allocation14 + $0x24] sm:$0xf]
          %v1187 = vld [vmem:[#allocation14 + $0x28] sm:$0xf]
          %v1188 = vld [vmem:[#allocation14 + $0x2c] sm:$0xf]
          %v1189 = vld [vmem:[#allocation14 + $0x30] sm:$0xf]
          %v1190 = vld [vmem:[#allocation14 + $0x34] sm:$0xf]
          %v1191 = vld [vmem:[#allocation14 + $0x38] sm:$0xf]
          %v1192 = vld [vmem:[#allocation14 + $0x3c] sm:$0xf]
          %v1193 = vld [vmem:[%s12] sm:$0x1]
          %v1195 = vlaneseq
          %v1196 = vshrl.u32 %v1195, 7
          %v1197 = vsub.s32 0, %v1196
          %v1198 = vrot.slane %v1193, %v1197
          %v1216 = vunpack.c.l.b16 %v1177
          %v1217 = vunpack.c.l.b16 %v1178
          %v1218 = vunpack.c.l.b16 %v1179
          %v1219 = vunpack.c.l.b16 %v1180
          %v1220 = vunpack.c.l.b16 %v1181
          %v1221 = vunpack.c.l.b16 %v1182
          %v1222 = vunpack.c.l.b16 %v1183
          %v1223 = vunpack.c.l.b16 %v1184
          %v1224 = vunpack.c.l.b16 %v1185
          %v1225 = vunpack.c.l.b16 %v1186
          %v1226 = vunpack.c.l.b16 %v1187
          %v1227 = vunpack.c.l.b16 %v1188
          %v1228 = vunpack.c.l.b16 %v1189
          %v1229 = vunpack.c.l.b16 %v1190
          %v1230 = vunpack.c.l.b16 %v1191
          %v1231 = vunpack.c.l.b16 %v1192
          %v1232 = vpack.c.b16 %v1217, %v1216
          %v1233 = vpack.c.b16 %v1219, %v1218
          %v1234 = vpack.c.b16 %v1221, %v1220
          %v1235 = vpack.c.b16 %v1223, %v1222
          %v1236 = vpack.c.b16 %v1225, %v1224
          %v1237 = vpack.c.b16 %v1227, %v1226
          %v1238 = vpack.c.b16 %v1229, %v1228
          %v1239 = vpack.c.b16 %v1231, %v1230
          %1248 = vmatprep.subr.bf16.mxu0 0
          %1249 = vmatpush1.bf16.msra.mxu0 %v1232
          %1250 = vmatprep.subr.bf16.mxu0 0
          %1251 = vmatpush1.bf16.msra.mxu0 %v1233
          %1252 = vmatprep.subr.bf16.mxu0 0
          %1253 = vmatpush1.bf16.msra.mxu0 %v1234
          %1254 = vmatprep.subr.bf16.mxu0 0
          %1255 = vmatpush1.bf16.msra.mxu0 %v1235
          %1256 = vmatprep.subr.bf16.mxu0 0
          %1257 = vmatpush1.bf16.msra.mxu0 %v1236
          %1258 = vmatprep.subr.bf16.mxu0 0
          %1259 = vmatpush1.bf16.msra.mxu0 %v1237
          %1260 = vmatprep.subr.bf16.mxu0 0
          %1261 = vmatpush1.bf16.msra.mxu0 %v1238
          %1262 = vmatprep.subr.bf16.mxu0 0
          %1263 = vmatpush1.bf16.msra.mxu0 %v1239
          %1264 = vmatprep.subr.bf16.mxu0 0
          %1265 = vmatpush1.bf16.msra.mxu0 0
          %1266 = vmatprep.subr.bf16.mxu0 0
          %1267 = vmatpush1.bf16.msra.mxu0 0
          %1268 = vmatprep.subr.bf16.mxu0 0
          %1269 = vmatpush1.bf16.msra.mxu0 0
          %1270 = vmatprep.subr.bf16.mxu0 0
          %1271 = vmatpush1.bf16.msra.mxu0 0
          %1272 = vmatprep.subr.bf16.mxu0 0
          %1273 = vmatpush1.bf16.msra.mxu0 0
          %1274 = vmatprep.subr.bf16.mxu0 0
          %1275 = vmatpush1.bf16.msra.mxu0 0
          %1276 = vmatprep.subr.bf16.mxu0 0
          %1277 = vmatpush1.bf16.msra.mxu0 0
          %1278 = vmatprep.subr.bf16.mxu0 0
          %1279 = vmatpush1.bf16.msra.mxu0 0
          %1280 = vmatprep.mubr.bf16.mxu0 0
          %1281 = vmatmul.mubr.bf16.gmra.mrb[0].mxu0 %v954
          %v1282 = vpop.f32.mrb[0].mxu0
          %v1283 = vadd.f32 %v1198, %v1282
          %v1284 = vpop.f32.mrb[0].mxu0
          %v1285 = vpop.f32.mrb[0].mxu0
          %v1286 = vpop.f32.mrb[0].mxu0
          %1287 = vdwg.mxu0
          %v1288 = vld [vmem:[#allocation6] sm:$0xff]
          %v1289 = vld [vmem:[#allocation8] sm:$0xff]
          %v1290 = vld [vmem:[%s3] sm:$0xff]
          %v1291 = vld [vmem:[#allocation9] sm:$0xff]
          %v1292 = vmul.f32 %v1061, %v1288
          %v1293 = vsub.f32 0.0, %v1061
          %1295 = vrot.lane.b32.xlu0 %v1293, 112
          %v1296 = vpop.permute.xlu0 %1295
          %1299 = vrot.lane.b32.xlu0 %v1061, 16
          %v1300 = vpop.permute.xlu0 %1299
          %vm1302 = vcmask 130048
          %v1303 = vsel %vm1302, %v1296, %v1300
          %v1304 = vmul.f32 %v1303, %v1289
          %v1305 = vadd.f32 %v1292, %v1304
          %v1306 = vmul.f32 %v1172, %v1290
          %v1307 = vsub.f32 0.0, %v1172
          %1309 = vrot.lane.b32.xlu0 %v1307, 112
          %v1310 = vpop.permute.xlu0 %1309
          %1313 = vrot.lane.b32.xlu0 %v1172, 16
          %v1314 = vpop.permute.xlu0 %1313
          %v1316 = vsel %vm1302, %v1310, %v1314
          %v1317 = vmul.f32 %v1316, %v1291
          %v1318 = vadd.f32 %v1306, %v1317
          %1320 = vrot.lane.b32.xlu0 %v1288, 32
          %v1321 = vpop.permute.xlu0 %1320
          %v1323 = vmul.f32 %v1061, %v1321
          %1324 = vrot.lane.b32.xlu0 %v1293, 80
          %v1325 = vpop.permute.xlu0 %1324
          %1327 = vrot.lane.b32.xlu0 %v1061, 112
          %v1328 = vpop.permute.xlu0 %1327
          %v1330 = vsel %vm1302, %v1325, %v1328
          %v1331 = vmul.f32 %v1330, %v1289
          %1333 = vrot.lane.b32.xlu0 %v1331, 32
          %v1334 = vpop.permute.xlu0 %1333
          %v1336 = vadd.f32 %v1323, %v1334
          %1338 = vrot.lane.b32.xlu0 %v1290, 32
          %v1339 = vpop.permute.xlu0 %1338
          %v1341 = vmul.f32 %v1172, %v1339
          %1342 = vrot.lane.b32.xlu0 %v1307, 80
          %v1343 = vpop.permute.xlu0 %1342
          %1345 = vrot.lane.b32.xlu0 %v1172, 112
          %v1346 = vpop.permute.xlu0 %1345
          %v1348 = vsel %vm1302, %v1343, %v1346
          %v1349 = vmul.f32 %v1348, %v1291
          %1351 = vrot.lane.b32.xlu0 %v1349, 32
          %v1352 = vpop.permute.xlu0 %1351
          %v1354 = vadd.f32 %v1341, %v1352
          %1355 = vrot.lane.b32.xlu0 %v1288, 64
          %v1356 = vpop.permute.xlu0 %1355
          %v1358 = vmul.f32 %v1061, %v1356
          %1359 = vrot.lane.b32.xlu0 %v1293, 48
          %v1360 = vpop.permute.xlu0 %1359
          %1362 = vrot.lane.b32.xlu0 %v1061, 80
          %v1363 = vpop.permute.xlu0 %1362
          %v1365 = vsel %vm1302, %v1360, %v1363
          %v1366 = vmul.f32 %v1365, %v1289
          %1368 = vrot.lane.b32.xlu0 %v1366, 64
          %v1369 = vpop.permute.xlu0 %1368
          %v1371 = vadd.f32 %v1358, %v1369
          %1372 = vrot.lane.b32.xlu0 %v1290, 64
          %v1373 = vpop.permute.xlu0 %1372
          %v1375 = vmul.f32 %v1172, %v1373
          %1376 = vrot.lane.b32.xlu0 %v1307, 48
          %v1377 = vpop.permute.xlu0 %1376
          %1379 = vrot.lane.b32.xlu0 %v1172, 80
          %v1380 = vpop.permute.xlu0 %1379
          %v1382 = vsel %vm1302, %v1377, %v1380
          %v1383 = vmul.f32 %v1382, %v1291
          %1385 = vrot.lane.b32.xlu0 %v1383, 64
          %v1386 = vpop.permute.xlu0 %1385
          %v1388 = vadd.f32 %v1375, %v1386
          %1389 = vrot.lane.b32.xlu0 %v1288, 96
          %v1390 = vpop.permute.xlu0 %1389
          %v1392 = vmul.f32 %v1061, %v1390
          %1393 = vrot.lane.b32.xlu0 %v1293, 16
          %v1394 = vpop.permute.xlu0 %1393
          %1396 = vrot.lane.b32.xlu0 %v1061, 48
          %v1397 = vpop.permute.xlu0 %1396
          %v1399 = vsel %vm1302, %v1394, %v1397
          %v1400 = vmul.f32 %v1399, %v1289
          %1402 = vrot.lane.b32.xlu0 %v1400, 96
          %v1403 = vpop.permute.xlu0 %1402
          %v1405 = vadd.f32 %v1392, %v1403
          %1406 = vrot.lane.b32.xlu0 %v1290, 96
          %v1407 = vpop.permute.xlu0 %1406
          %v1409 = vmul.f32 %v1172, %v1407
          %1410 = vrot.lane.b32.xlu0 %v1307, 16
          %v1411 = vpop.permute.xlu0 %1410
          %1413 = vrot.lane.b32.xlu0 %v1172, 48
          %v1414 = vpop.permute.xlu0 %1413
          %v1416 = vsel %vm1302, %v1411, %v1414
          %v1417 = vmul.f32 %v1416, %v1291
          %1419 = vrot.lane.b32.xlu0 %v1417, 96
          %v1420 = vpop.permute.xlu0 %1419
          %v1422 = vadd.f32 %v1409, %v1420
          %1424 = vrot.lane.b32.xlu0 %v1336, 96
          %v1425 = vpop.permute.xlu0 %1424
          %1428 = vrot.lane.b32.xlu0 %v1371, 64
          %v1429 = vpop.permute.xlu0 %1428
          %1432 = vrot.lane.b32.xlu0 %v1405, 32
          %v1433 = vpop.permute.xlu0 %1432
          %v1435 = vpack.c.bf16 %v1305, %v1305
          %v1436 = vpack.c.bf16 %v1425, %v1425
          %v1437 = vpack.c.bf16 %v1429, %v1429
          %v1438 = vpack.c.bf16 %v1433, %v1433
          %1440 = vrot.lane.b32.xlu0 %v1354, 96
          %v1441 = vpop.permute.xlu0 %1440
          %1444 = vrot.lane.b32.xlu0 %v1388, 64
          %v1445 = vpop.permute.xlu0 %1444
          %1448 = vrot.lane.b32.xlu0 %v1422, 32
          %v1449 = vpop.permute.xlu0 %1448
          %v1451 = vpack.c.bf16 %v1318, %v1318
          %v1452 = vpack.c.bf16 %v1441, %v1441
          %v1453 = vpack.c.bf16 %v1445, %v1445
          %v1454 = vpack.c.bf16 %v1449, %v1449
          %1456 = vrot.lane.b32.xlu0 %v1283, 96
          %v1457 = vpop.permute.xlu0 %1456
          %1459 = vrot.lane.b32.xlu0 %v1283, 64
          %v1460 = vpop.permute.xlu0 %1459
          %1462 = vrot.lane.b32.xlu0 %v1283, 32
          %v1463 = vpop.permute.xlu0 %1462
          %v1465 = vpack.c.bf16 %v1283, %v1283
          %v1466 = vpack.c.bf16 %v1457, %v1457
          %v1467 = vpack.c.bf16 %v1460, %v1460
          %v1468 = vpack.c.bf16 %v1463, %v1463
          %vm1469 = vcmask 261120
          %v1471 = vsel %vm1469, %v1435, 0
          %v1474 = vsel %vm1469, %v1451, 0
          %1476 = vmatprep.subr.bf16.mxu0 0
          %1477 = vmatpush1.bf16.xpose.msra.mxu0 %v1474
          %1478 = vmatprep.subr.bf16.mxu0 0
          %1479 = vmatpush1.bf16.xpose.msra.mxu0 0
          %1480 = vmatprep.subr.bf16.mxu0 0
          %1481 = vmatpush1.bf16.xpose.msra.mxu0 0
          %1482 = vmatprep.subr.bf16.mxu0 0
          %1483 = vmatpush1.bf16.xpose.msra.mxu0 0
          %1484 = vmatprep.subr.bf16.mxu0 0
          %1485 = vmatpush1.bf16.xpose.msra.mxu0 0
          %1486 = vmatprep.subr.bf16.mxu0 0
          %1487 = vmatpush1.bf16.xpose.msra.mxu0 0
          %1488 = vmatprep.subr.bf16.mxu0 0
          %1489 = vmatpush1.bf16.xpose.msra.mxu0 0
          %1490 = vmatprep.subr.bf16.mxu0 0
          %1491 = vmatpush1.bf16.xpose.msra.mxu0 0
          %1492 = vmatprep.subr.bf16.mxu0 0
          %1493 = vmatpush1.bf16.xpose.msra.mxu0 0
          %1494 = vmatprep.subr.bf16.mxu0 0
          %1495 = vmatpush1.bf16.xpose.msra.mxu0 0
          %1496 = vmatprep.subr.bf16.mxu0 0
          %1497 = vmatpush1.bf16.xpose.msra.mxu0 0
          %1498 = vmatprep.subr.bf16.mxu0 0
          %1499 = vmatpush1.bf16.xpose.msra.mxu0 0
          %1500 = vmatprep.subr.bf16.mxu0 0
          %1501 = vmatpush1.bf16.xpose.msra.mxu0 0
          %1502 = vmatprep.subr.bf16.mxu0 0
          %1503 = vmatpush1.bf16.xpose.msra.mxu0 0
          %1504 = vmatprep.subr.bf16.mxu0 0
          %1505 = vmatpush1.bf16.xpose.msra.mxu0 0
          %1506 = vmatprep.subr.bf16.mxu0 0
          %1507 = vmatpush1.bf16.xpose.msra.mxu0 0
          %1508 = vmatprep.mubr.bf16.mxu0 0
          %1509 = vmatmul.mubr.bf16.gmra.mrb[0].mxu0 %v1471
          %v1510 = vpop.f32.mrb[0].mxu0
          %v1511 = vadd.f32 0.0, %v1510
          %v1512 = vpop.f32.mrb[0].mxu0
          %v1513 = vpop.f32.mrb[0].mxu0
          %v1514 = vpop.f32.mrb[0].mxu0
          %1515 = vdwg.mxu0
          %v1517 = vsel %vm1469, %v1436, 0
          %v1520 = vsel %vm1469, %v1452, 0
          %1522 = vmatprep.subr.bf16.mxu0 0
          %1523 = vmatpush1.bf16.xpose.msra.mxu0 %v1520
          %1524 = vmatprep.subr.bf16.mxu0 0
          %1525 = vmatpush1.bf16.xpose.msra.mxu0 0
          %1526 = vmatprep.subr.bf16.mxu0 0
          %1527 = vmatpush1.bf16.xpose.msra.mxu0 0
          %1528 = vmatprep.subr.bf16.mxu0 0
          %1529 = vmatpush1.bf16.xpose.msra.mxu0 0
          %1530 = vmatprep.subr.bf16.mxu0 0
          %1531 = vmatpush1.bf16.xpose.msra.mxu0 0
          %1532 = vmatprep.subr.bf16.mxu0 0
          %1533 = vmatpush1.bf16.xpose.msra.mxu0 0
          %1534 = vmatprep.subr.bf16.mxu0 0
          %1535 = vmatpush1.bf16.xpose.msra.mxu0 0
          %1536 = vmatprep.subr.bf16.mxu0 0
          %1537 = vmatpush1.bf16.xpose.msra.mxu0 0
          %1538 = vmatprep.subr.bf16.mxu0 0
          %1539 = vmatpush1.bf16.xpose.msra.mxu0 0
          %1540 = vmatprep.subr.bf16.mxu0 0
          %1541 = vmatpush1.bf16.xpose.msra.mxu0 0
          %1542 = vmatprep.subr.bf16.mxu0 0
          %1543 = vmatpush1.bf16.xpose.msra.mxu0 0
          %1544 = vmatprep.subr.bf16.mxu0 0
          %1545 = vmatpush1.bf16.xpose.msra.mxu0 0
          %1546 = vmatprep.subr.bf16.mxu0 0
          %1547 = vmatpush1.bf16.xpose.msra.mxu0 0
          %1548 = vmatprep.subr.bf16.mxu0 0
          %1549 = vmatpush1.bf16.xpose.msra.mxu0 0
          %1550 = vmatprep.subr.bf16.mxu0 0
          %1551 = vmatpush1.bf16.xpose.msra.mxu0 0
          %1552 = vmatprep.subr.bf16.mxu0 0
          %1553 = vmatpush1.bf16.xpose.msra.mxu0 0
          %1554 = vmatprep.mubr.bf16.mxu0 0
          %1555 = vmatmul.mubr.bf16.gmra.mrb[0].mxu0 %v1517
          %v1556 = vpop.f32.mrb[0].mxu0
          %v1557 = vadd.f32 0.0, %v1556
          %v1558 = vpop.f32.mrb[0].mxu0
          %v1559 = vpop.f32.mrb[0].mxu0
          %v1560 = vpop.f32.mrb[0].mxu0
          %1561 = vdwg.mxu0
          %v1563 = vsel %vm1469, %v1437, 0
          %v1566 = vsel %vm1469, %v1453, 0
          %1568 = vmatprep.subr.bf16.mxu0 0
          %1569 = vmatpush1.bf16.xpose.msra.mxu0 %v1566
          %1570 = vmatprep.subr.bf16.mxu0 0
          %1571 = vmatpush1.bf16.xpose.msra.mxu0 0
          %1572 = vmatprep.subr.bf16.mxu0 0
          %1573 = vmatpush1.bf16.xpose.msra.mxu0 0
          %1574 = vmatprep.subr.bf16.mxu0 0
          %1575 = vmatpush1.bf16.xpose.msra.mxu0 0
          %1576 = vmatprep.subr.bf16.mxu0 0
          %1577 = vmatpush1.bf16.xpose.msra.mxu0 0
          %1578 = vmatprep.subr.bf16.mxu0 0
          %1579 = vmatpush1.bf16.xpose.msra.mxu0 0
          %1580 = vmatprep.subr.bf16.mxu0 0
          %1581 = vmatpush1.bf16.xpose.msra.mxu0 0
          %1582 = vmatprep.subr.bf16.mxu0 0
          %1583 = vmatpush1.bf16.xpose.msra.mxu0 0
          %1584 = vmatprep.subr.bf16.mxu0 0
          %1585 = vmatpush1.bf16.xpose.msra.mxu0 0
          %1586 = vmatprep.subr.bf16.mxu0 0
          %1587 = vmatpush1.bf16.xpose.msra.mxu0 0
          %1588 = vmatprep.subr.bf16.mxu0 0
          %1589 = vmatpush1.bf16.xpose.msra.mxu0 0
          %1590 = vmatprep.subr.bf16.mxu0 0
          %1591 = vmatpush1.bf16.xpose.msra.mxu0 0
          %1592 = vmatprep.subr.bf16.mxu0 0
          %1593 = vmatpush1.bf16.xpose.msra.mxu0 0
          %1594 = vmatprep.subr.bf16.mxu0 0
          %1595 = vmatpush1.bf16.xpose.msra.mxu0 0
          %1596 = vmatprep.subr.bf16.mxu0 0
          %1597 = vmatpush1.bf16.xpose.msra.mxu0 0
          %1598 = vmatprep.subr.bf16.mxu0 0
          %1599 = vmatpush1.bf16.xpose.msra.mxu0 0
          %1600 = vmatprep.mubr.bf16.mxu0 0
          %1601 = vmatmul.mubr.bf16.gmra.mrb[0].mxu0 %v1563
          %v1602 = vpop.f32.mrb[0].mxu0
          %v1603 = vadd.f32 0.0, %v1602
          %v1604 = vpop.f32.mrb[0].mxu0
          %v1605 = vpop.f32.mrb[0].mxu0
          %v1606 = vpop.f32.mrb[0].mxu0
          %1607 = vdwg.mxu0
          %v1609 = vsel %vm1469, %v1438, 0
          %v1612 = vsel %vm1469, %v1454, 0
          %1614 = vmatprep.subr.bf16.mxu0 0
          %1615 = vmatpush1.bf16.xpose.msra.mxu0 %v1612
          %1616 = vmatprep.subr.bf16.mxu0 0
          %1617 = vmatpush1.bf16.xpose.msra.mxu0 0
          %1618 = vmatprep.subr.bf16.mxu0 0
          %1619 = vmatpush1.bf16.xpose.msra.mxu0 0
          %1620 = vmatprep.subr.bf16.mxu0 0
          %1621 = vmatpush1.bf16.xpose.msra.mxu0 0
          %1622 = vmatprep.subr.bf16.mxu0 0
          %1623 = vmatpush1.bf16.xpose.msra.mxu0 0
          %1624 = vmatprep.subr.bf16.mxu0 0
          %1625 = vmatpush1.bf16.xpose.msra.mxu0 0
          %1626 = vmatprep.subr.bf16.mxu0 0
          %1627 = vmatpush1.bf16.xpose.msra.mxu0 0
          %1628 = vmatprep.subr.bf16.mxu0 0
          %1629 = vmatpush1.bf16.xpose.msra.mxu0 0
          %1630 = vmatprep.subr.bf16.mxu0 0
          %1631 = vmatpush1.bf16.xpose.msra.mxu0 0
          %1632 = vmatprep.subr.bf16.mxu0 0
          %1633 = vmatpush1.bf16.xpose.msra.mxu0 0
          %1634 = vmatprep.subr.bf16.mxu0 0
          %1635 = vmatpush1.bf16.xpose.msra.mxu0 0
          %1636 = vmatprep.subr.bf16.mxu0 0
          %1637 = vmatpush1.bf16.xpose.msra.mxu0 0
          %1638 = vmatprep.subr.bf16.mxu0 0
          %1639 = vmatpush1.bf16.xpose.msra.mxu0 0
          %1640 = vmatprep.subr.bf16.mxu0 0
          %1641 = vmatpush1.bf16.xpose.msra.mxu0 0
          %1642 = vmatprep.subr.bf16.mxu0 0
          %1643 = vmatpush1.bf16.xpose.msra.mxu0 0
          %1644 = vmatprep.subr.bf16.mxu0 0
          %1645 = vmatpush1.bf16.xpose.msra.mxu0 0
          %1646 = vmatprep.mubr.bf16.mxu0 0
          %1647 = vmatmul.mubr.bf16.gmra.mrb[0].mxu0 %v1609
          %v1648 = vpop.f32.mrb[0].mxu0
          %v1649 = vadd.f32 0.0, %v1648
          %v1650 = vpop.f32.mrb[0].mxu0
          %v1651 = vpop.f32.mrb[0].mxu0
          %v1652 = vpop.f32.mrb[0].mxu0
          %1653 = vdwg.mxu0
          %v1654 = vlaneseq
          %v1655 = vshrl.u32 %v1654, 7
          %v1656 = vlaneseq
          %v1657 = vand.u32 %v1656, 127
          %vm1658 = vcmp.ge.s32.totalorder %v1655, %v1657
          %v1659 = vsel %vm1658, 1, 0
          %vm1660 = vcmp.eq.s32.totalorder %v1659, 1
          %v1661 = vsel %vm1660, %v1511, -1e+30
          %v1662 = vsel %vm1660, %v1557, -1e+30
          %v1663 = vsel %vm1660, %v1603, -1e+30
          %v1664 = vsel %vm1660, %v1649, -1e+30
          %vm1665 = vcmask 64512
          %v1666 = vsel %vm1665, %v1661, -inf
          %1667 = vmax.xlane.f32.xlu0 %v1666
          %v1668 = vpop.xlane.xlu0 %1667
          %v1669 = vsel %vm1665, %v1662, -inf
          %1670 = vmax.xlane.f32.xlu0 %v1669
          %v1671 = vpop.xlane.xlu0 %1670
          %v1672 = vsel %vm1665, %v1663, -inf
          %1673 = vmax.xlane.f32.xlu0 %v1672
          %v1674 = vpop.xlane.xlu0 %1673
          %v1675 = vsel %vm1665, %v1664, -inf
          %1676 = vmax.xlane.f32.xlu0 %v1675
          %v1677 = vpop.xlane.xlu0 %1676
          %v1678 = vsub.f32 %v1661, %v1668
          %v1679 = vsub.f32 %v1662, %v1671
          %v1680 = vsub.f32 %v1663, %v1674
          %v1681 = vsub.f32 %v1664, %v1677
          %v1682 = vmul.f32 %v1678, 1.442695
          %v1683 = vpow.pop %v1682
          %v1684 = vmul.f32 %v1679, 1.442695
          %v1685 = vpow.pop %v1684
          %v1686 = vmul.f32 %v1680, 1.442695
          %v1687 = vpow.pop %v1686
          %v1688 = vmul.f32 %v1681, 1.442695
          %v1689 = vpow.pop %v1688
          %v1690 = vsel %vm1665, %v1683, 0.0
          %1691 = vadd.xlane.f32.xlu0 %v1690
          %v1692 = vpop.xlane.xlu0 %1691
          %v1693 = vsel %vm1665, %v1685, 0.0
          %1694 = vadd.xlane.f32.xlu0 %v1693
          %v1695 = vpop.xlane.xlu0 %1694
          %v1696 = vsel %vm1665, %v1687, 0.0
          %1697 = vadd.xlane.f32.xlu0 %v1696
          %v1698 = vpop.xlane.xlu0 %1697
          %v1699 = vsel %vm1665, %v1689, 0.0
          %1700 = vadd.xlane.f32.xlu0 %v1699
          %v1701 = vpop.xlane.xlu0 %1700
          %v1702 = vrcp.pop %v1692
          %v1703 = vrcp.pop %v1695
          %v1704 = vrcp.pop %v1698
          %v1705 = vrcp.pop %v1701
          %v1706 = vmul.f32 %v1683, %v1702
          %v1707 = vmul.f32 %v1685, %v1703
          %v1708 = vmul.f32 %v1687, %v1704
          %v1709 = vmul.f32 %v1689, %v1705
          %v1710 = vpack.c.bf16 %v1706, %v1706
          %v1711 = vpack.c.bf16 %v1707, %v1707
          %v1712 = vpack.c.bf16 %v1708, %v1708
          %v1713 = vpack.c.bf16 %v1709, %v1709
          %v1715 = vsel %vm1665, %v1710, 0
          %vm1717 = vcmask 1043456
          %v1719 = vsel %vm1717, %v1465, 0
          %1721 = vmatprep.subr.bf16.mxu0 0
          %1722 = vmatpush1.bf16.msra.mxu0 %v1719
          %1723 = vmatprep.subr.bf16.mxu0 0
          %1724 = vmatpush1.bf16.msra.mxu0 0
          %1725 = vmatprep.subr.bf16.mxu0 0
          %1726 = vmatpush1.bf16.msra.mxu0 0
          %1727 = vmatprep.subr.bf16.mxu0 0
          %1728 = vmatpush1.bf16.msra.mxu0 0
          %1729 = vmatprep.subr.bf16.mxu0 0
          %1730 = vmatpush1.bf16.msra.mxu0 0
          %1731 = vmatprep.subr.bf16.mxu0 0
          %1732 = vmatpush1.bf16.msra.mxu0 0
          %1733 = vmatprep.subr.bf16.mxu0 0
          %1734 = vmatpush1.bf16.msra.mxu0 0
          %1735 = vmatprep.subr.bf16.mxu0 0
          %1736 = vmatpush1.bf16.msra.mxu0 0
          %1737 = vmatprep.subr.bf16.mxu0 0
          %1738 = vmatpush1.bf16.msra.mxu0 0
          %1739 = vmatprep.subr.bf16.mxu0 0
          %1740 = vmatpush1.bf16.msra.mxu0 0
          %1741 = vmatprep.subr.bf16.mxu0 0
          %1742 = vmatpush1.bf16.msra.mxu0 0
          %1743 = vmatprep.subr.bf16.mxu0 0
          %1744 = vmatpush1.bf16.msra.mxu0 0
          %1745 = vmatprep.subr.bf16.mxu0 0
          %1746 = vmatpush1.bf16.msra.mxu0 0
          %1747 = vmatprep.subr.bf16.mxu0 0
          %1748 = vmatpush1.bf16.msra.mxu0 0
          %1749 = vmatprep.subr.bf16.mxu0 0
          %1750 = vmatpush1.bf16.msra.mxu0 0
          %1751 = vmatprep.subr.bf16.mxu0 0
          %1752 = vmatpush1.bf16.msra.mxu0 0
          %1753 = vmatprep.mubr.bf16.mxu0 0
          %1754 = vmatmul.mubr.bf16.gmra.mrb[0].mxu0 %v1715
          %v1755 = vpop.f32.mrb[0].mxu0
          %v1756 = vadd.f32 0.0, %v1755
          %v1757 = vpop.f32.mrb[0].mxu0
          %v1758 = vpop.f32.mrb[0].mxu0
          %v1759 = vpop.f32.mrb[0].mxu0
          %1760 = vdwg.mxu0
          %v1762 = vsel %vm1665, %v1711, 0
          %v1765 = vsel %vm1717, %v1466, 0
          %1767 = vmatprep.subr.bf16.mxu0 0
          %1768 = vmatpush1.bf16.msra.mxu0 %v1765
          %1769 = vmatprep.subr.bf16.mxu0 0
          %1770 = vmatpush1.bf16.msra.mxu0 0
          %1771 = vmatprep.subr.bf16.mxu0 0
          %1772 = vmatpush1.bf16.msra.mxu0 0
          %1773 = vmatprep.subr.bf16.mxu0 0
          %1774 = vmatpush1.bf16.msra.mxu0 0
          %1775 = vmatprep.subr.bf16.mxu0 0
          %1776 = vmatpush1.bf16.msra.mxu0 0
          %1777 = vmatprep.subr.bf16.mxu0 0
          %1778 = vmatpush1.bf16.msra.mxu0 0
          %1779 = vmatprep.subr.bf16.mxu0 0
          %1780 = vmatpush1.bf16.msra.mxu0 0
          %1781 = vmatprep.subr.bf16.mxu0 0
          %1782 = vmatpush1.bf16.msra.mxu0 0
          %1783 = vmatprep.subr.bf16.mxu0 0
          %1784 = vmatpush1.bf16.msra.mxu0 0
          %1785 = vmatprep.subr.bf16.mxu0 0
          %1786 = vmatpush1.bf16.msra.mxu0 0
          %1787 = vmatprep.subr.bf16.mxu0 0
          %1788 = vmatpush1.bf16.msra.mxu0 0
          %1789 = vmatprep.subr.bf16.mxu0 0
          %1790 = vmatpush1.bf16.msra.mxu0 0
          %1791 = vmatprep.subr.bf16.mxu0 0
          %1792 = vmatpush1.bf16.msra.mxu0 0
          %1793 = vmatprep.subr.bf16.mxu0 0
          %1794 = vmatpush1.bf16.msra.mxu0 0
          %1795 = vmatprep.subr.bf16.mxu0 0
          %1796 = vmatpush1.bf16.msra.mxu0 0
          %1797 = vmatprep.subr.bf16.mxu0 0
          %1798 = vmatpush1.bf16.msra.mxu0 0
          %1799 = vmatprep.mubr.bf16.mxu0 0
          %1800 = vmatmul.mubr.bf16.gmra.mrb[0].mxu0 %v1762
          %v1801 = vpop.f32.mrb[0].mxu0
          %v1802 = vadd.f32 0.0, %v1801
          %v1803 = vpop.f32.mrb[0].mxu0
          %v1804 = vpop.f32.mrb[0].mxu0
          %v1805 = vpop.f32.mrb[0].mxu0
          %1806 = vdwg.mxu0
          %v1808 = vsel %vm1665, %v1712, 0
          %v1811 = vsel %vm1717, %v1467, 0
          %1813 = vmatprep.subr.bf16.mxu0 0
          %1814 = vmatpush1.bf16.msra.mxu0 %v1811
          %1815 = vmatprep.subr.bf16.mxu0 0
          %1816 = vmatpush1.bf16.msra.mxu0 0
          %1817 = vmatprep.subr.bf16.mxu0 0
          %1818 = vmatpush1.bf16.msra.mxu0 0
          %1819 = vmatprep.subr.bf16.mxu0 0
          %1820 = vmatpush1.bf16.msra.mxu0 0
          %1821 = vmatprep.subr.bf16.mxu0 0
          %1822 = vmatpush1.bf16.msra.mxu0 0
          %1823 = vmatprep.subr.bf16.mxu0 0
          %1824 = vmatpush1.bf16.msra.mxu0 0
          %1825 = vmatprep.subr.bf16.mxu0 0
          %1826 = vmatpush1.bf16.msra.mxu0 0
          %1827 = vmatprep.subr.bf16.mxu0 0
          %1828 = vmatpush1.bf16.msra.mxu0 0
          %1829 = vmatprep.subr.bf16.mxu0 0
          %1830 = vmatpush1.bf16.msra.mxu0 0
          %1831 = vmatprep.subr.bf16.mxu0 0
          %1832 = vmatpush1.bf16.msra.mxu0 0
          %1833 = vmatprep.subr.bf16.mxu0 0
          %1834 = vmatpush1.bf16.msra.mxu0 0
          %1835 = vmatprep.subr.bf16.mxu0 0
          %1836 = vmatpush1.bf16.msra.mxu0 0
          %1837 = vmatprep.subr.bf16.mxu0 0
          %1838 = vmatpush1.bf16.msra.mxu0 0
          %1839 = vmatprep.subr.bf16.mxu0 0
          %1840 = vmatpush1.bf16.msra.mxu0 0
          %1841 = vmatprep.subr.bf16.mxu0 0
          %1842 = vmatpush1.bf16.msra.mxu0 0
          %1843 = vmatprep.subr.bf16.mxu0 0
          %1844 = vmatpush1.bf16.msra.mxu0 0
          %1845 = vmatprep.mubr.bf16.mxu0 0
          %1846 = vmatmul.mubr.bf16.gmra.mrb[0].mxu0 %v1808
          %v1847 = vpop.f32.mrb[0].mxu0
          %v1848 = vadd.f32 0.0, %v1847
          %v1849 = vpop.f32.mrb[0].mxu0
          %v1850 = vpop.f32.mrb[0].mxu0
          %v1851 = vpop.f32.mrb[0].mxu0
          %1852 = vdwg.mxu0
          %v1854 = vsel %vm1665, %v1713, 0
          %v1857 = vsel %vm1717, %v1468, 0
          %1859 = vmatprep.subr.bf16.mxu0 0
          %1860 = vmatpush1.bf16.msra.mxu0 %v1857
          %1861 = vmatprep.subr.bf16.mxu0 0
          %1862 = vmatpush1.bf16.msra.mxu0 0
          %1863 = vmatprep.subr.bf16.mxu0 0
          %1864 = vmatpush1.bf16.msra.mxu0 0
          %1865 = vmatprep.subr.bf16.mxu0 0
          %1866 = vmatpush1.bf16.msra.mxu0 0
          %1867 = vmatprep.subr.bf16.mxu0 0
          %1868 = vmatpush1.bf16.msra.mxu0 0
          %1869 = vmatprep.subr.bf16.mxu0 0
          %1870 = vmatpush1.bf16.msra.mxu0 0
          %1871 = vmatprep.subr.bf16.mxu0 0
          %1872 = vmatpush1.bf16.msra.mxu0 0
          %1873 = vmatprep.subr.bf16.mxu0 0
          %1874 = vmatpush1.bf16.msra.mxu0 0
          %1875 = vmatprep.subr.bf16.mxu0 0
          %1876 = vmatpush1.bf16.msra.mxu0 0
          %1877 = vmatprep.subr.bf16.mxu0 0
          %1878 = vmatpush1.bf16.msra.mxu0 0
          %1879 = vmatprep.subr.bf16.mxu0 0
          %1880 = vmatpush1.bf16.msra.mxu0 0
          %1881 = vmatprep.subr.bf16.mxu0 0
          %1882 = vmatpush1.bf16.msra.mxu0 0
          %1883 = vmatprep.subr.bf16.mxu0 0
          %1884 = vmatpush1.bf16.msra.mxu0 0
          %1885 = vmatprep.subr.bf16.mxu0 0
          %1886 = vmatpush1.bf16.msra.mxu0 0
          %1887 = vmatprep.subr.bf16.mxu0 0
          %1888 = vmatpush1.bf16.msra.mxu0 0
          %1889 = vmatprep.subr.bf16.mxu0 0
          %1890 = vmatpush1.bf16.msra.mxu0 0
          %1891 = vmatprep.mubr.bf16.mxu0 0
          %1892 = vmatmul.mubr.bf16.gmra.mrb[0].mxu0 %v1854
          %v1893 = vpop.f32.mrb[0].mxu0
          %v1894 = vadd.f32 0.0, %v1893
          %v1895 = vpop.f32.mrb[0].mxu0
          %v1896 = vpop.f32.mrb[0].mxu0
          %v1897 = vpop.f32.mrb[0].mxu0
          %1898 = vdwg.mxu0
          %1900 = vrot.lane.b32.xlu0 %v1802, 32
          %v1901 = vpop.permute.xlu0 %1900
          %1904 = vrot.lane.b32.xlu0 %v1848, 64
          %v1905 = vpop.permute.xlu0 %1904
          %1908 = vrot.lane.b32.xlu0 %v1894, 96
          %v1909 = vpop.permute.xlu0 %1908
          %v1911 = vsel %vm1469, %v1756, %v1901
          %vm1912 = vcmask 523264
          %v1913 = vsel %vm1912, %v1911, %v1905
          %vm1914 = vcmask 785408
          %v1915 = vsel %vm1914, %v1913, %v1909
          %v1916 = vpack.c.bf16 %v1915, %v1915
          %v1917 = vld [vmem:[#allocation15] sm:$0xf]
          %v1918 = vld [vmem:[#allocation15 + $0x4] sm:$0xf]
          %v1919 = vld [vmem:[#allocation15 + $0x8] sm:$0xf]
          %v1920 = vld [vmem:[#allocation15 + $0xc] sm:$0xf]
          %v1921 = vld [vmem:[#allocation15 + $0x10] sm:$0xf]
          %v1922 = vld [vmem:[#allocation15 + $0x14] sm:$0xf]
          %v1923 = vld [vmem:[#allocation15 + $0x18] sm:$0xf]
          %v1924 = vld [vmem:[#allocation15 + $0x1c] sm:$0xf]
          %v1925 = vld [vmem:[#allocation15 + $0x20] sm:$0xf]
          %v1926 = vld [vmem:[#allocation15 + $0x24] sm:$0xf]
          %v1927 = vld [vmem:[#allocation15 + $0x28] sm:$0xf]
          %v1928 = vld [vmem:[#allocation15 + $0x2c] sm:$0xf]
          %v1929 = vld [vmem:[#allocation15 + $0x30] sm:$0xf]
          %v1930 = vld [vmem:[#allocation15 + $0x34] sm:$0xf]
          %v1931 = vld [vmem:[#allocation15 + $0x38] sm:$0xf]
          %v1932 = vld [vmem:[#allocation15 + $0x3c] sm:$0xf]
          %v1933 = vld [vmem:[%s14] sm:$0x1]
          %v1935 = vlaneseq
          %v1936 = vshrl.u32 %v1935, 7
          %v1937 = vsub.s32 0, %v1936
          %v1938 = vrot.slane %v1933, %v1937
          %v1956 = vunpack.c.l.b16 %v1917
          %v1957 = vunpack.c.l.b16 %v1918
          %v1958 = vunpack.c.l.b16 %v1919
          %v1959 = vunpack.c.l.b16 %v1920
          %v1960 = vunpack.c.l.b16 %v1921
          %v1961 = vunpack.c.l.b16 %v1922
          %v1962 = vunpack.c.l.b16 %v1923
          %v1963 = vunpack.c.l.b16 %v1924
          %v1964 = vunpack.c.l.b16 %v1925
          %v1965 = vunpack.c.l.b16 %v1926
          %v1966 = vunpack.c.l.b16 %v1927
          %v1967 = vunpack.c.l.b16 %v1928
          %v1968 = vunpack.c.l.b16 %v1929
          %v1969 = vunpack.c.l.b16 %v1930
          %v1970 = vunpack.c.l.b16 %v1931
          %v1971 = vunpack.c.l.b16 %v1932
          %v1972 = vpack.c.b16 %v1957, %v1956
          %v1973 = vpack.c.b16 %v1959, %v1958
          %v1974 = vpack.c.b16 %v1961, %v1960
          %v1975 = vpack.c.b16 %v1963, %v1962
          %v1976 = vpack.c.b16 %v1965, %v1964
          %v1977 = vpack.c.b16 %v1967, %v1966
          %v1978 = vpack.c.b16 %v1969, %v1968
          %v1979 = vpack.c.b16 %v1971, %v1970
          %1988 = vmatprep.subr.bf16.mxu0 0
          %1989 = vmatpush1.bf16.msra.mxu0 %v1972
          %1990 = vmatprep.subr.bf16.mxu0 0
          %1991 = vmatpush1.bf16.msra.mxu0 %v1973
          %1992 = vmatprep.subr.bf16.mxu0 0
          %1993 = vmatpush1.bf16.msra.mxu0 %v1974
          %1994 = vmatprep.subr.bf16.mxu0 0
          %1995 = vmatpush1.bf16.msra.mxu0 %v1975
          %1996 = vmatprep.subr.bf16.mxu0 0
          %1997 = vmatpush1.bf16.msra.mxu0 %v1976
          %1998 = vmatprep.subr.bf16.mxu0 0
          %1999 = vmatpush1.bf16.msra.mxu0 %v1977
          %2000 = vmatprep.subr.bf16.mxu0 0
          %2001 = vmatpush1.bf16.msra.mxu0 %v1978
          %2002 = vmatprep.subr.bf16.mxu0 0
          %2003 = vmatpush1.bf16.msra.mxu0 %v1979
          %2004 = vmatprep.subr.bf16.mxu0 0
          %2005 = vmatpush1.bf16.msra.mxu0 0
          %2006 = vmatprep.subr.bf16.mxu0 0
          %2007 = vmatpush1.bf16.msra.mxu0 0
          %2008 = vmatprep.subr.bf16.mxu0 0
          %2009 = vmatpush1.bf16.msra.mxu0 0
          %2010 = vmatprep.subr.bf16.mxu0 0
          %2011 = vmatpush1.bf16.msra.mxu0 0
          %2012 = vmatprep.subr.bf16.mxu0 0
          %2013 = vmatpush1.bf16.msra.mxu0 0
          %2014 = vmatprep.subr.bf16.mxu0 0
          %2015 = vmatpush1.bf16.msra.mxu0 0
          %2016 = vmatprep.subr.bf16.mxu0 0
          %2017 = vmatpush1.bf16.msra.mxu0 0
          %2018 = vmatprep.subr.bf16.mxu0 0
          %2019 = vmatpush1.bf16.msra.mxu0 0
          %2020 = vmatprep.mubr.bf16.mxu0 0
          %2021 = vmatmul.mubr.bf16.gmra.mrb[0].mxu0 %v1916
          %v2022 = vpop.f32.mrb[0].mxu0
          %v2023 = vadd.f32 %v1938, %v2022
          %v2024 = vpop.f32.mrb[0].mxu0
          %v2025 = vpop.f32.mrb[0].mxu0
          %v2026 = vpop.f32.mrb[0].mxu0
          %2027 = vdwg.mxu0
          %v2028 = vadd.f32 %v937, %v2023
          %v2029 = vld [vmem:[%s6] sm:$0x1]
          %v2030 = vmul.f32 %v2028, %v2028
          %2031 = vadd.xlane.f32.xlu0 %v2030
          %v2032 = vpop.xlane.xlu0 %2031
          %v2033 = vmul.f32 %v2032, %v942
          %v2034 = vadd.f32 %v2033, 1e-05
          %v2035 = vrsqrt.pop %v2034
          %v2036 = vmul.f32 %v2028, %v2035
          %v2038 = vlaneseq
          %v2039 = vshrl.u32 %v2038, 7
          %v2040 = vsub.s32 0, %v2039
          %v2041 = vrot.slane %v2029, %v2040
          %v2043 = vmul.f32 %v2041, %v2036
          %v2044 = vpack.c.bf16 %v2043, %v2043
          %2045 = vst [vmem:[#allocation2] sm:$0xf] %v2044
          %v2046 = vld [vmem:[%s20] sm:$0x1]
          %v2048 = vlaneseq
          %v2049 = vshrl.u32 %v2048, 7
          %v2050 = vsub.s32 0, %v2049
          %v2051 = vrot.slane %v2046, %v2050
          %v2053 = vadd.f32 %v2028, %v2051
          %2054 = vst [vmem:[%s918] sm:$0xff] %v2053
        $region152: #{tpu_custom_call.1} parent=103 // pred_fallthru
          _
        %v2055 = vld [vmem:[#allocation2] sm:$0xf]
        %v2056 = vld [vmem:[%s819] sm:$0xff]
        %v2057 = vld [vmem:[%s819 + $0x8] sm:$0xff]
        %v2058 = vld [vmem:[%s819 + $0x10] sm:$0xff]
        %v2059 = vld [vmem:[%s819 + $0x18] sm:$0xff]
        %v2060 = vld [vmem:[%s819 + $0x20] sm:$0xff]
        %v2061 = vld [vmem:[%s819 + $0x28] sm:$0xff]
        %v2062 = vld [vmem:[%s819 + $0x30] sm:$0xff]
        %v2063 = vld [vmem:[%s819 + $0x38] sm:$0xff]
        %v2064 = vld [vmem:[%s819 + $0x40] sm:$0xff]
        %v2065 = vld [vmem:[%s819 + $0x48] sm:$0xff]
        %v2066 = vld [vmem:[%s819 + $0x50] sm:$0xff]
        %v2067 = vld [vmem:[%s819 + $0x58] sm:$0xff]
        %v2068 = vld [vmem:[%s819 + $0x60] sm:$0xff]
        %v2069 = vld [vmem:[%s819 + $0x68] sm:$0xff]
        %v2070 = vld [vmem:[%s819 + $0x70] sm:$0xff]
        %v2071 = vld [vmem:[%s819 + $0x78] sm:$0xff]
        %v2072 = vld [vmem:[%s923] sm:$0x3]
        %v2074 = vlaneseq
        %v2075 = vshrl.u32 %v2074, 7
        %v2076 = vsub.s32 0, %v2075
        %v2077 = vrot.slane %v2072, %v2076
        %v2078 = vlaneseq
        %v2079 = vshrl.u32 %v2078, 7
        %v2080 = vsub.s32 1, %v2079
        %v2081 = vrot.slane %v2072, %v2080
        %v2100 = vunpack.c.l.b16 %v2056
        %v2101 = vunpack.c.h.b16 %v2056
        %v2102 = vunpack.c.l.b16 %v2057
        %v2103 = vunpack.c.h.b16 %v2057
        %v2104 = vunpack.c.l.b16 %v2058
        %v2105 = vunpack.c.h.b16 %v2058
        %v2106 = vunpack.c.l.b16 %v2059
        %v2107 = vunpack.c.h.b16 %v2059
        %v2108 = vunpack.c.l.b16 %v2060
        %v2109 = vunpack.c.h.b16 %v2060
        %v2110 = vunpack.c.l.b16 %v2061
        %v2111 = vunpack.c.h.b16 %v2061
        %v2112 = vunpack.c.l.b16 %v2062
        %v2113 = vunpack.c.h.b16 %v2062
        %v2114 = vunpack.c.l.b16 %v2063
        %v2115 = vunpack.c.h.b16 %v2063
        %v2116 = vunpack.c.l.b16 %v2064
        %v2117 = vunpack.c.h.b16 %v2064
        %v2118 = vunpack.c.l.b16 %v2065
        %v2119 = vunpack.c.h.b16 %v2065
        %v2120 = vunpack.c.l.b16 %v2066
        %v2121 = vunpack.c.h.b16 %v2066
        %v2122 = vunpack.c.l.b16 %v2067
        %v2123 = vunpack.c.h.b16 %v2067
        %v2124 = vunpack.c.l.b16 %v2068
        %v2125 = vunpack.c.h.b16 %v2068
        %v2126 = vunpack.c.l.b16 %v2069
        %v2127 = vunpack.c.h.b16 %v2069
        %v2128 = vunpack.c.l.b16 %v2070
        %v2129 = vunpack.c.h.b16 %v2070
        %v2130 = vunpack.c.l.b16 %v2071
        %v2131 = vunpack.c.h.b16 %v2071
        %v2132 = vpack.c.b16 %v2102, %v2100
        %v2133 = vpack.c.b16 %v2103, %v2101
        %v2134 = vpack.c.b16 %v2106, %v2104
        %v2135 = vpack.c.b16 %v2107, %v2105
        %v2136 = vpack.c.b16 %v2110, %v2108
        %v2137 = vpack.c.b16 %v2111, %v2109
        %v2138 = vpack.c.b16 %v2114, %v2112
        %v2139 = vpack.c.b16 %v2115, %v2113
        %v2140 = vpack.c.b16 %v2118, %v2116
        %v2141 = vpack.c.b16 %v2119, %v2117
        %v2142 = vpack.c.b16 %v2122, %v2120
        %v2143 = vpack.c.b16 %v2123, %v2121
        %v2144 = vpack.c.b16 %v2126, %v2124
        %v2145 = vpack.c.b16 %v2127, %v2125
        %v2146 = vpack.c.b16 %v2130, %v2128
        %v2147 = vpack.c.b16 %v2131, %v2129
        %2164 = vmatprep.subr.bf16.mxu0 %v2133
        %2165 = vmatpush1.bf16.msra.mxu0 %v2132
        %2166 = vmatprep.subr.bf16.mxu0 %v2135
        %2167 = vmatpush1.bf16.msra.mxu0 %v2134
        %2168 = vmatprep.subr.bf16.mxu0 %v2137
        %2169 = vmatpush1.bf16.msra.mxu0 %v2136
        %2170 = vmatprep.subr.bf16.mxu0 %v2139
        %2171 = vmatpush1.bf16.msra.mxu0 %v2138
        %2172 = vmatprep.subr.bf16.mxu0 %v2141
        %2173 = vmatpush1.bf16.msra.mxu0 %v2140
        %2174 = vmatprep.subr.bf16.mxu0 %v2143
        %2175 = vmatpush1.bf16.msra.mxu0 %v2142
        %2176 = vmatprep.subr.bf16.mxu0 %v2145
        %2177 = vmatpush1.bf16.msra.mxu0 %v2144
        %2178 = vmatprep.subr.bf16.mxu0 %v2147
        %2179 = vmatpush1.bf16.msra.mxu0 %v2146
        %2180 = vmatprep.subr.bf16.mxu0 0
        %2181 = vmatpush1.bf16.msra.mxu0 0
        %2182 = vmatprep.subr.bf16.mxu0 0
        %2183 = vmatpush1.bf16.msra.mxu0 0
        %2184 = vmatprep.subr.bf16.mxu0 0
        %2185 = vmatpush1.bf16.msra.mxu0 0
        %2186 = vmatprep.subr.bf16.mxu0 0
        %2187 = vmatpush1.bf16.msra.mxu0 0
        %2188 = vmatprep.subr.bf16.mxu0 0
        %2189 = vmatpush1.bf16.msra.mxu0 0
        %2190 = vmatprep.subr.bf16.mxu0 0
        %2191 = vmatpush1.bf16.msra.mxu0 0
        %2192 = vmatprep.subr.bf16.mxu0 0
        %2193 = vmatpush1.bf16.msra.mxu0 0
        %2194 = vmatprep.subr.bf16.mxu0 0
        %2195 = vmatpush1.bf16.msra.mxu0 0
        %2196 = vmatprep.mubr.bf16.mxu0 0
        %2197 = vmatmul.mubr.bf16.gmra.mrb[0].mxu0 %v2055
        %v2198 = vpop.f32.mrb[0].mxu0
        %v2199 = vadd.f32 %v2077, %v2198
        %v2200 = vpop.f32.mrb[0].mxu0
        %v2201 = vadd.f32 %v2081, %v2200
        %v2202 = vpop.f32.mrb[0].mxu0
        %v2203 = vpop.f32.mrb[0].mxu0
        %2204 = vdwg.mxu0
        %v2205 = vld [vmem:[%s828] sm:$0xff]
        %v2206 = vld [vmem:[%s828 + $0x8] sm:$0xff]
        %v2207 = vld [vmem:[%s828 + $0x10] sm:$0xff]
        %v2208 = vld [vmem:[%s828 + $0x18] sm:$0xff]
        %v2209 = vld [vmem:[%s828 + $0x20] sm:$0xff]
        %v2210 = vld [vmem:[%s828 + $0x28] sm:$0xff]
        %v2211 = vld [vmem:[%s828 + $0x30] sm:$0xff]
        %v2212 = vld [vmem:[%s828 + $0x38] sm:$0xff]
        %v2213 = vld [vmem:[%s828 + $0x40] sm:$0xff]
        %v2214 = vld [vmem:[%s828 + $0x48] sm:$0xff]
        %v2215 = vld [vmem:[%s828 + $0x50] sm:$0xff]
        %v2216 = vld [vmem:[%s828 + $0x58] sm:$0xff]
        %v2217 = vld [vmem:[%s828 + $0x60] sm:$0xff]
        %v2218 = vld [vmem:[%s828 + $0x68] sm:$0xff]
        %v2219 = vld [vmem:[%s828 + $0x70] sm:$0xff]
        %v2220 = vld [vmem:[%s828 + $0x78] sm:$0xff]
        %v2221 = vld [vmem:[%s929] sm:$0x3]
        %v2223 = vlaneseq
        %v2224 = vshrl.u32 %v2223, 7
        %v2225 = vsub.s32 0, %v2224
        %v2226 = vrot.slane %v2221, %v2225
        %v2227 = vlaneseq
        %v2228 = vshrl.u32 %v2227, 7
        %v2229 = vsub.s32 1, %v2228
        %v2230 = vrot.slane %v2221, %v2229
        %v2249 = vunpack.c.l.b16 %v2205
        %v2250 = vunpack.c.h.b16 %v2205
        %v2251 = vunpack.c.l.b16 %v2206
        %v2252 = vunpack.c.h.b16 %v2206
        %v2253 = vunpack.c.l.b16 %v2207
        %v2254 = vunpack.c.h.b16 %v2207
        %v2255 = vunpack.c.l.b16 %v2208
        %v2256 = vunpack.c.h.b16 %v2208
        %v2257 = vunpack.c.l.b16 %v2209
        %v2258 = vunpack.c.h.b16 %v2209
        %v2259 = vunpack.c.l.b16 %v2210
        %v2260 = vunpack.c.h.b16 %v2210
        %v2261 = vunpack.c.l.b16 %v2211
        %v2262 = vunpack.c.h.b16 %v2211
        %v2263 = vunpack.c.l.b16 %v2212
        %v2264 = vunpack.c.h.b16 %v2212
        %v2265 = vunpack.c.l.b16 %v2213
        %v2266 = vunpack.c.h.b16 %v2213
        %v2267 = vunpack.c.l.b16 %v2214
        %v2268 = vunpack.c.h.b16 %v2214
        %v2269 = vunpack.c.l.b16 %v2215
        %v2270 = vunpack.c.h.b16 %v2215
        %v2271 = vunpack.c.l.b16 %v2216
        %v2272 = vunpack.c.h.b16 %v2216
        %v2273 = vunpack.c.l.b16 %v2217
        %v2274 = vunpack.c.h.b16 %v2217
        %v2275 = vunpack.c.l.b16 %v2218
        %v2276 = vunpack.c.h.b16 %v2218
        %v2277 = vunpack.c.l.b16 %v2219
        %v2278 = vunpack.c.h.b16 %v2219
        %v2279 = vunpack.c.l.b16 %v2220
        %v2280 = vunpack.c.h.b16 %v2220
        %v2281 = vpack.c.b16 %v2251, %v2249
        %v2282 = vpack.c.b16 %v2252, %v2250
        %v2283 = vpack.c.b16 %v2255, %v2253
        %v2284 = vpack.c.b16 %v2256, %v2254
        %v2285 = vpack.c.b16 %v2259, %v2257
        %v2286 = vpack.c.b16 %v2260, %v2258
        %v2287 = vpack.c.b16 %v2263, %v2261
        %v2288 = vpack.c.b16 %v2264, %v2262
        %v2289 = vpack.c.b16 %v2267, %v2265
        %v2290 = vpack.c.b16 %v2268, %v2266
        %v2291 = vpack.c.b16 %v2271, %v2269
        %v2292 = vpack.c.b16 %v2272, %v2270
        %v2293 = vpack.c.b16 %v2275, %v2273
        %v2294 = vpack.c.b16 %v2276, %v2274
        %v2295 = vpack.c.b16 %v2279, %v2277
        %v2296 = vpack.c.b16 %v2280, %v2278
        %2313 = vmatprep.subr.bf16.mxu0 %v2282
        %2314 = vmatpush1.bf16.msra.mxu0 %v2281
        %2315 = vmatprep.subr.bf16.mxu0 %v2284
        %2316 = vmatpush1.bf16.msra.mxu0 %v2283
        %2317 = vmatprep.subr.bf16.mxu0 %v2286
        %2318 = vmatpush1.bf16.msra.mxu0 %v2285
        %2319 = vmatprep.subr.bf16.mxu0 %v2288
        %2320 = vmatpush1.bf16.msra.mxu0 %v2287
        %2321 = vmatprep.subr.bf16.mxu0 %v2290
        %2322 = vmatpush1.bf16.msra.mxu0 %v2289
        %2323 = vmatprep.subr.bf16.mxu0 %v2292
        %2324 = vmatpush1.bf16.msra.mxu0 %v2291
        %2325 = vmatprep.subr.bf16.mxu0 %v2294
        %2326 = vmatpush1.bf16.msra.mxu0 %v2293
        %2327 = vmatprep.subr.bf16.mxu0 %v2296
        %2328 = vmatpush1.bf16.msra.mxu0 %v2295
        %2329 = vmatprep.subr.bf16.mxu0 0
        %2330 = vmatpush1.bf16.msra.mxu0 0
        %2331 = vmatprep.subr.bf16.mxu0 0
        %2332 = vmatpush1.bf16.msra.mxu0 0
        %2333 = vmatprep.subr.bf16.mxu0 0
        %2334 = vmatpush1.bf16.msra.mxu0 0
        %2335 = vmatprep.subr.bf16.mxu0 0
        %2336 = vmatpush1.bf16.msra.mxu0 0
        %2337 = vmatprep.subr.bf16.mxu0 0
        %2338 = vmatpush1.bf16.msra.mxu0 0
        %2339 = vmatprep.subr.bf16.mxu0 0
        %2340 = vmatpush1.bf16.msra.mxu0 0
        %2341 = vmatprep.subr.bf16.mxu0 0
        %2342 = vmatpush1.bf16.msra.mxu0 0
        %2343 = vmatprep.subr.bf16.mxu0 0
        %2344 = vmatpush1.bf16.msra.mxu0 0
        %2345 = vmatprep.mubr.bf16.mxu0 0
        %2346 = vmatmul.mubr.bf16.gmra.mrb[0].mxu0 %v2055
        %v2347 = vpop.f32.mrb[0].mxu0
        %v2348 = vadd.f32 %v2226, %v2347
        %v2349 = vpop.f32.mrb[0].mxu0
        %v2350 = vadd.f32 %v2230, %v2349
        %v2351 = vpop.f32.mrb[0].mxu0
        %v2352 = vpop.f32.mrb[0].mxu0
        %2353 = vdwg.mxu0
        %v2354 = vxor.u32 %v2199, 2147483648
        %v2355 = vxor.u32 %v2201, 2147483648
        %v2356 = vmul.f32 %v2354, 1.442695
        %v2357 = vpow.pop %v2356
        %v2358 = vmul.f32 %v2355, 1.442695
        %v2359 = vpow.pop %v2358
        %v2360 = vadd.f32 %v2357, 1.0
        %v2361 = vadd.f32 %v2359, 1.0
        %v2362 = vrcp.pop %v2360
        %v2363 = vmul.f32 1.0, %v2362
        %v2364 = vrcp.pop %v2361
        %v2365 = vmul.f32 1.0, %v2364
        %v2366 = vmul.f32 %v2199, %v2363
        %v2367 = vmul.f32 %v2201, %v2365
        %v2368 = vmul.f32 %v2366, %v2348
        %v2369 = vmul.f32 %v2367, %v2350
        %v2370 = vld [vmem:[%s918] sm:$0xff]
        %v2371 = vpack.c.bf16 %v2368, %v2368
        %v2372 = vpack.c.bf16 %v2369, %v2369
        %v2373 = vld [vmem:[%s837] sm:$0xf]
        %v2374 = vld [vmem:[%s837 + $0x4] sm:$0xf]
        %v2375 = vld [vmem:[%s837 + $0x8] sm:$0xf]
        %v2376 = vld [vmem:[%s837 + $0xc] sm:$0xf]
        %v2377 = vld [vmem:[%s837 + $0x10] sm:$0xf]
        %v2378 = vld [vmem:[%s837 + $0x14] sm:$0xf]
        %v2379 = vld [vmem:[%s837 + $0x18] sm:$0xf]
        %v2380 = vld [vmem:[%s837 + $0x1c] sm:$0xf]
        %v2381 = vld [vmem:[%s837 + $0x20] sm:$0xf]
        %v2382 = vld [vmem:[%s837 + $0x24] sm:$0xf]
        %v2383 = vld [vmem:[%s837 + $0x28] sm:$0xf]
        %v2384 = vld [vmem:[%s837 + $0x2c] sm:$0xf]
        %v2385 = vld [vmem:[%s837 + $0x30] sm:$0xf]
        %v2386 = vld [vmem:[%s837 + $0x34] sm:$0xf]
        %v2387 = vld [vmem:[%s837 + $0x38] sm:$0xf]
        %v2388 = vld [vmem:[%s837 + $0x3c] sm:$0xf]
        %v2389 = vld [vmem:[%s837 + $0x40] sm:$0xf]
        %v2390 = vld [vmem:[%s837 + $0x44] sm:$0xf]
        %v2391 = vld [vmem:[%s837 + $0x48] sm:$0xf]
        %v2392 = vld [vmem:[%s837 + $0x4c] sm:$0xf]
        %v2393 = vld [vmem:[%s837 + $0x50] sm:$0xf]
        %v2394 = vld [vmem:[%s837 + $0x54] sm:$0xf]
        %v2395 = vld [vmem:[%s837 + $0x58] sm:$0xf]
        %v2396 = vld [vmem:[%s837 + $0x5c] sm:$0xf]
        %v2397 = vld [vmem:[%s837 + $0x60] sm:$0xf]
        %v2398 = vld [vmem:[%s837 + $0x64] sm:$0xf]
        %v2399 = vld [vmem:[%s837 + $0x68] sm:$0xf]
        %v2400 = vld [vmem:[%s837 + $0x6c] sm:$0xf]
        %v2401 = vld [vmem:[%s837 + $0x70] sm:$0xf]
        %v2402 = vld [vmem:[%s837 + $0x74] sm:$0xf]
        %v2403 = vld [vmem:[%s837 + $0x78] sm:$0xf]
        %v2404 = vld [vmem:[%s837 + $0x7c] sm:$0xf]
        %v2437 = vunpack.c.l.b16 %v2373
        %v2438 = vunpack.c.l.b16 %v2374
        %v2439 = vunpack.c.l.b16 %v2375
        %v2440 = vunpack.c.l.b16 %v2376
        %v2441 = vunpack.c.l.b16 %v2377
        %v2442 = vunpack.c.l.b16 %v2378
        %v2443 = vunpack.c.l.b16 %v2379
        %v2444 = vunpack.c.l.b16 %v2380
        %v2445 = vunpack.c.l.b16 %v2381
        %v2446 = vunpack.c.l.b16 %v2382
        %v2447 = vunpack.c.l.b16 %v2383
        %v2448 = vunpack.c.l.b16 %v2384
        %v2449 = vunpack.c.l.b16 %v2385
        %v2450 = vunpack.c.l.b16 %v2386
        %v2451 = vunpack.c.l.b16 %v2387
        %v2452 = vunpack.c.l.b16 %v2388
        %v2453 = vunpack.c.l.b16 %v2389
        %v2454 = vunpack.c.l.b16 %v2390
        %v2455 = vunpack.c.l.b16 %v2391
        %v2456 = vunpack.c.l.b16 %v2392
        %v2457 = vunpack.c.l.b16 %v2393
        %v2458 = vunpack.c.l.b16 %v2394
        %v2459 = vunpack.c.l.b16 %v2395
        %v2460 = vunpack.c.l.b16 %v2396
        %v2461 = vunpack.c.l.b16 %v2397
        %v2462 = vunpack.c.l.b16 %v2398
        %v2463 = vunpack.c.l.b16 %v2399
        %v2464 = vunpack.c.l.b16 %v2400
        %v2465 = vunpack.c.l.b16 %v2401
        %v2466 = vunpack.c.l.b16 %v2402
        %v2467 = vunpack.c.l.b16 %v2403
        %v2468 = vunpack.c.l.b16 %v2404
        %v2469 = vpack.c.b16 %v2438, %v2437
        %v2470 = vpack.c.b16 %v2440, %v2439
        %v2471 = vpack.c.b16 %v2442, %v2441
        %v2472 = vpack.c.b16 %v2444, %v2443
        %v2473 = vpack.c.b16 %v2446, %v2445
        %v2474 = vpack.c.b16 %v2448, %v2447
        %v2475 = vpack.c.b16 %v2450, %v2449
        %v2476 = vpack.c.b16 %v2452, %v2451
        %v2477 = vpack.c.b16 %v2454, %v2453
        %v2478 = vpack.c.b16 %v2456, %v2455
        %v2479 = vpack.c.b16 %v2458, %v2457
        %v2480 = vpack.c.b16 %v2460, %v2459
        %v2481 = vpack.c.b16 %v2462, %v2461
        %v2482 = vpack.c.b16 %v2464, %v2463
        %v2483 = vpack.c.b16 %v2466, %v2465
        %v2484 = vpack.c.b16 %v2468, %v2467
        %2501 = vmatprep.subr.bf16.mxu0 0
        %2502 = vmatpush1.bf16.msra.mxu0 %v2469
        %2503 = vmatprep.subr.bf16.mxu0 0
        %2504 = vmatpush1.bf16.msra.mxu0 %v2470
        %2505 = vmatprep.subr.bf16.mxu0 0
        %2506 = vmatpush1.bf16.msra.mxu0 %v2471
        %2507 = vmatprep.subr.bf16.mxu0 0
        %2508 = vmatpush1.bf16.msra.mxu0 %v2472
        %2509 = vmatprep.subr.bf16.mxu0 0
        %2510 = vmatpush1.bf16.msra.mxu0 %v2473
        %2511 = vmatprep.subr.bf16.mxu0 0
        %2512 = vmatpush1.bf16.msra.mxu0 %v2474
        %2513 = vmatprep.subr.bf16.mxu0 0
        %2514 = vmatpush1.bf16.msra.mxu0 %v2475
        %2515 = vmatprep.subr.bf16.mxu0 0
        %2516 = vmatpush1.bf16.msra.mxu0 %v2476
        %2517 = vmatprep.subr.bf16.mxu0 0
        %2518 = vmatpush1.bf16.msra.mxu0 %v2477
        %2519 = vmatprep.subr.bf16.mxu0 0
        %2520 = vmatpush1.bf16.msra.mxu0 %v2478
        %2521 = vmatprep.subr.bf16.mxu0 0
        %2522 = vmatpush1.bf16.msra.mxu0 %v2479
        %2523 = vmatprep.subr.bf16.mxu0 0
        %2524 = vmatpush1.bf16.msra.mxu0 %v2480
        %2525 = vmatprep.subr.bf16.mxu0 0
        %2526 = vmatpush1.bf16.msra.mxu0 %v2481
        %2527 = vmatprep.subr.bf16.mxu0 0
        %2528 = vmatpush1.bf16.msra.mxu0 %v2482
        %2529 = vmatprep.subr.bf16.mxu0 0
        %2530 = vmatpush1.bf16.msra.mxu0 %v2483
        %2531 = vmatprep.subr.bf16.mxu0 0
        %2532 = vmatpush1.bf16.msra.mxu0 %v2484
        %2533 = vmatprep.mubr.bf16.mxu0 %v2372
        %2534 = vmatmul.mubr.bf16.gmra.mrb[0].mxu0 %v2371
        %v2535 = vpop.f32.mrb[0].mxu0
        %v2536 = vadd.f32 0.0, %v2535
        %v2537 = vpop.f32.mrb[0].mxu0
        %v2538 = vpop.f32.mrb[0].mxu0
        %v2539 = vpop.f32.mrb[0].mxu0
        %2540 = vdwg.mxu0
        %v2541 = vadd.f32 %v2370, %v2536
        %2542 = vst [vmem:[%s918] sm:$0xff] %v2541
        %s2543 = sand.u32 %s533, 1
        %s2544 = scalar_lea.sflag [#allocation5], %s2543
        %s2545 = sand.u32 %s533, 1
        %s2546 = smul.addr %s2545, 8
        %s2547 = scalar_lea.vmem [#allocation20], %s2546
        // Predicated region
        $region153: #{tpu_custom_call.1} parent=103 // pred_check
          %p2548 = pneg %p543
        $region154: #{tpu_custom_call.1} parent=103 // pred_check_branch
          %2550 = sbr.rel (%p2548) target = $region156
        $region155: #{tpu_custom_call.1} parent=103 // pred_region
          %s2552 = ssub.s32 128, 128
          %2553 = vsyncadd %s2544, %s2552
          %s2554 = smul.addr %s46, 128
          %s2555 = scalar_lea.hbm %s21, %s2554
          %s2557 = sshll.u32 %s2547, 4
          %s2558 = int_to_ptr.vmem [resolvable:$true] %s2557
          %2560 = dma.vmem_to_hbm [thread:$0]  %s2558, 128, %s2555, %s2544
        $region156: #{tpu_custom_call.1} parent=103 // pred_fallthru
          _
      $region104: #{tpu_custom_call.1} parent=5 // pred_fallthru
        _
      %p2561 = scmp.le.s32.totalorder 2, %s37
      // Predicated region
      $region157: #{tpu_custom_call.1} parent=5 // pred_check
        %p2562 = pneg %p2561
      $region158: #{tpu_custom_call.1} parent=5 // pred_check_branch
        %2564 = sbr.rel (%p2562) target = $region160
      $region159: #{tpu_custom_call.1} parent=5 // pred_region
        %s2565 = ssub.s32 %s37, 2
        // Predicated region
        $region161: #{tpu_custom_call.1} parent=159 // pred_check
          %p2566 = pneg %p549
        $region162: #{tpu_custom_call.1} parent=159 // pred_check_branch
          %2568 = sbr.rel (%p2566) target = $region164
        $region163: #{tpu_custom_call.1} parent=159 // pred_region
          %s2569 = sand.u32 %s534, 1
          %s2570 = scalar_lea.sflag [#allocation5], %s2569
          %s2571 = sand.u32 %s534, 1
          %s2572 = smul.addr %s2571, 8
          %s2573 = scalar_lea.vmem [#allocation20], %s2572
          %2574 = dma.done %s2570, 128
        $region164: #{tpu_custom_call.1} parent=159 // pred_fallthru
          _
      $region160: #{tpu_custom_call.1} parent=5 // pred_fallthru
        _
    $region6: #{tpu_custom_call.1} parent=1 // loop_footer
      %s41 = sadd.s32 1, %s37
    $region7: #{tpu_custom_call.1} parent=1 // loop_footer_branch
      %36 = sbr.rel target = $region3
    $region8: #{tpu_custom_call.1} parent=1 // loop_exit
      _
    %2575 = vsyncpa [#allocation4], 1
    %s2576 = scalar_lea.sflag [#allocation4], 1
    %2577 = vsyncpa %s2576, 1
    %2578 = vsyncpa [#allocation7], 1
    %2579 = vsyncpa [#allocation10], 1
    %2580 = vsyncpa [#allocation13], 1
    %2581 = vsyncpa [#allocation16], 1
    %2582 = vsyncpa [#allocation5], 1
    %s2583 = scalar_lea.sflag [#allocation5], 1
    %2584 = vsyncpa %s2583, 1

</llo_original>
